<compile_context>
chip_gen: v5e
topology: v5e:2x2
jax: 0.10.0
libtpu: 0.0.40
codegen_flags: <defaults>
</compile_context>

<pallas_src>
import jax
import jax.numpy as jnp
from jax.experimental import pallas as pl
from jax.experimental.pallas import tpu as pltpu

B = 8      # batch
E = 128    # opt.input_encoding_size
R = 128    # opt.rnn_size
H = 128    # opt.att_hid_size  (packing below assumes H == R)
L = 16     # att_size (number of attention locations)

F32 = jnp.float32
BF16 = jnp.bfloat16

# Row offsets of the 9 LSTM weight pieces inside the packed w_lstm slab:
# [wi0_xt, wi0_fc, wh0,  wi1_h0, wi1_att1, wh1,  wi2_h1, wi2_att2, wh2]
_LSTM_ROWS = [E, R, R, R, R, R, R, R, R]
_LSTM_OFF = [0]
for _r in _LSTM_ROWS:
    _LSTM_OFF.append(_LSTM_OFF[-1] + _r)


# ----------------------------------------------------------------------------
# Shared math (used both inside the Pallas kernel and by the pure-JAX bf16
# reference, so both follow the identical bf16-matmul / f32-accumulate recipe).
# ----------------------------------------------------------------------------
def _mm(x, w):
    """bf16 MXU matmul with f32 accumulation."""
    return jnp.dot(x.astype(BF16), w.astype(BF16), preferred_element_type=F32)


def _lstm(parts, h_prev, wh, bias, c_prev):
    """LSTMCore forward (maxout input transform).

    `parts`: list of (activation, weight) pairs replacing i2h(cat(activations)).
    `bias`: pre-folded (i2h.bias + h2h.bias), shape (1, 5R), f32.
    """
    s = bias + _mm(h_prev, wh)                       # (B, 5R) f32
    for x, w_part in parts:
        s = s + _mm(x, w_part)
    sig = jax.nn.sigmoid(s[:, :3 * R])
    in_gate = sig[:, 0 * R:1 * R]
    forget_gate = sig[:, 1 * R:2 * R]
    out_gate = sig[:, 2 * R:3 * R]
    in_transform = jnp.maximum(s[:, 3 * R:4 * R], s[:, 4 * R:5 * R])
    next_c = forget_gate * c_prev + in_gate * in_transform
    next_h = out_gate * jnp.tanh(next_c)
    return next_h, next_c


def _attention(query, att_bf, patt_f32, wa, ba, wal):
    """Additive attention + softmax over att locations + weighted sum.

    Scores are a lane-dense (B, L) tile; the alpha_net bias is dropped (softmax is
    shift-invariant so it is a mathematical no-op).  `wal` is the alpha_net weight as a
    (1, H) f32 row; `att_bf` stays bf16 for the weighted sum (accumulated in f32).
    """
    att_h = _mm(query, wa) + ba                                  # (B, H) f32
    dot = jnp.tanh(patt_f32 + att_h[:, None, :])                 # (B, L, H) f32
    scores = jnp.sum(dot * wal[None, :, :], axis=-1)             # (B, L) f32
    m = jnp.max(scores, axis=-1, keepdims=True)
    e = jnp.exp(scores - m)
    weight = e / jnp.sum(e, axis=-1, keepdims=True)              # (B, L)
    # TODO(synk): att_masks path (mask * weight, renormalize) not wired; default is None.
    wprod = (weight.astype(BF16)[:, :, None] * att_bf).astype(F32)
    return jnp.sum(wprod, axis=1)                                # (B, R) f32


def _step_math(xt, fc, att_bf, patt_f32, h_prev, c_prev, wl, wa, bl, misc):
    """One full StackAttCore step.

    `wl`/`wa`/`bl`/`misc` are packed parameter slabs; they may be VMEM Refs (inside the
    Pallas kernel) or jnp arrays (pure-JAX reference) -- only static slicing is applied,
    which for a Ref loads lazily at the point of use (short vreg liveness).
    """
    w = lambda k: wl[_LSTM_OFF[k]:_LSTM_OFF[k + 1], :]   # k-th packed LSTM weight piece

    # layer 0: lstm0(cat([xt, fc_feats], 1)) -> split accumulating dots (no VMEM concat)
    h0, c0 = _lstm([(xt, w(0)), (fc, w(1))], h_prev[0], w(2), bl[0:1, :], c_prev[0])
    # att1(h0)
    a1 = _attention(h0, att_bf, patt_f32, wa[0:R, :], misc[0:1, :], misc[3:4, :])
    # layer 1: lstm1(cat([h0, att_res_1], 1))
    h1, c1 = _lstm([(h0, w(3)), (a1, w(4))], h_prev[1], w(5), bl[1:2, :], c_prev[1])
    # att2(h1 + emb2(att_res_1))
    q2 = h1 + _mm(a1, wa[2 * R:3 * R, :]) + misc[2:3, :]
    a2 = _attention(q2, att_bf, patt_f32, wa[R:2 * R, :], misc[1:2, :], misc[4:5, :])
    # layer 2: lstm2(cat([h1, att_res_2], 1))
    h2, c2 = _lstm([(h1, w(6)), (a2, w(7))], h_prev[2], w(8), bl[2:3, :], c_prev[2])
    return (h0, h1, h2), (c0, c1, c2)


# ----------------------------------------------------------------------------
# The fused Pallas kernel: T StackAttCore steps (grid=(T,)), weights VMEM-resident.
# ----------------------------------------------------------------------------
def stack_att_core_kernel(xt_ref, fc_ref, att_ref, patt_ref, sh_ref, sc_ref,
                          wl_ref, wa_ref, bl_ref, misc_ref,
                          out_ref, outh_ref, outc_ref,
                          h_scr, c_scr):
    t = pl.program_id(0)

    @pl.when(t == 0)
    def _init():
        h_scr[...] = sh_ref[...]
        c_scr[...] = sc_ref[...]

    xt = xt_ref[0]                          # (B, E)   bf16   (per-step block)
    fc = fc_ref[...]                        # (B, R)   bf16   (resident)
    att_bf = att_ref[...]                   # (B, L, R) bf16  (resident)
    patt_f32 = patt_ref[...].astype(F32)    # (B, L, H) f32
    h_prev = h_scr[...]                     # (3, B, R) f32 carry
    c_prev = c_scr[...]

    (h0, h1, h2), (c0, c1, c2) = _step_math(
        xt, fc, att_bf, patt_f32, h_prev, c_prev,
        wl_ref, wa_ref, bl_ref, misc_ref)

    out_ref[0] = h2            # per-step module output h_2
    h_scr[0] = h0
    h_scr[1] = h1
    h_scr[2] = h2
    c_scr[0] = c0
    c_scr[1] = c1
    c_scr[2] = c2

    @pl.when(t == pl.num_programs(0) - 1)
    def _finalize():
        outh_ref[...] = h_scr[...]
        outc_ref[...] = c_scr[...]


def prepare_params(p):
    """One-time prep: split concat weights, fold biases, pack into 4 slabs, cast matmul
    weights to bf16.  Call ONCE outside any per-step loop."""
    assert H == R, "packing below assumes att_hid_size == rnn_size"
    w_lstm = jnp.concatenate([
        p["wi0"][:E], p["wi0"][E:], p["wh0"],     # lstm0: xt-part, fc-part, h2h
        p["wi1"][:R], p["wi1"][R:], p["wh1"],     # lstm1: h0-part, att1-part, h2h
        p["wi2"][:R], p["wi2"][R:], p["wh2"],     # lstm2: h1-part, att2-part, h2h
    ], axis=0).astype(BF16)                                                    # (E+8R, 5R)
    w_att = jnp.concatenate([p["wa1"], p["wa2"], p["wemb2"]], axis=0).astype(BF16)  # (3R, H)
    b_lstm = jnp.stack([p["bi0"] + p["bh0"],
                        p["bi1"] + p["bh1"],
                        p["bi2"] + p["bh2"]], axis=0).astype(F32)              # (3, 5R)
    misc = jnp.zeros((8, H), F32)                 # pad to a full 8-sublane tile
    misc = misc.at[0].set(p["ba1"])               # att1.h2att bias
    misc = misc.at[1].set(p["ba2"])               # att2.h2att bias
    misc = misc.at[2].set(p["bemb2"])             # emb2 bias
    misc = misc.at[3].set(p["wal1"][:, 0])        # att1.alpha_net weight (lane row)
    misc = misc.at[4].set(p["wal2"][:, 0])        # att2.alpha_net weight (lane row)
    # alpha_net biases (bal1/bal2) intentionally dropped: softmax is shift-invariant.
    return {"w_lstm": w_lstm, "w_att": w_att, "b_lstm": b_lstm, "misc": misc}


@jax.jit
def stack_att_core_steps(xt_seq, fc_feats, att_feats, p_att_feats, state, kp):
    """Fused T-step StackAttCore (teacher-forced / scoring): xt_seq is (T, B, E).

    Returns (per-step h2 of shape (T, B, R), final (new_h, new_c) each (3, B, R))."""
    T_, B_, E_ = xt_seq.shape
    sh, sc = state
    wl, wa, bl, misc = kp["w_lstm"], kp["w_att"], kp["b_lstm"], kp["misc"]

    outs, new_h, new_c = pl.pallas_call(
        stack_att_core_kernel,
        out_shape=(
            jax.ShapeDtypeStruct((T_, B_, R), F32),
            jax.ShapeDtypeStruct((3, B_, R), F32),
            jax.ShapeDtypeStruct((3, B_, R), F32),
        ),
        grid_spec=pltpu.PrefetchScalarGridSpec(
            num_scalar_prefetch=0,
            grid=(T_,),
            in_specs=[
                pl.BlockSpec((1, B_, E_), lambda t: (t, 0, 0)),     # xt: advances per step
                pl.BlockSpec((B_, R), lambda t: (0, 0)),            # fc_feats: resident
                pl.BlockSpec((B_, L, R), lambda t: (0, 0, 0)),      # att_feats: resident
                pl.BlockSpec((B_, L, H), lambda t: (0, 0, 0)),      # p_att_feats: resident
                pl.BlockSpec((3, B_, R), lambda t: (0, 0, 0)),      # initial h
                pl.BlockSpec((3, B_, R), lambda t: (0, 0, 0)),      # initial c
                pl.BlockSpec(wl.shape, lambda t: (0, 0)),           # packed LSTM weights (resident)
                pl.BlockSpec(wa.shape, lambda t: (0, 0)),           # packed att/emb2 weights
                pl.BlockSpec(bl.shape, lambda t: (0, 0)),           # packed LSTM biases
                pl.BlockSpec(misc.shape, lambda t: (0, 0)),         # att biases + alpha_net rows
            ],
            out_specs=(
                pl.BlockSpec((1, B_, R), lambda t: (t, 0, 0)),      # per-step h2
                pl.BlockSpec((3, B_, R), lambda t: (0, 0, 0)),      # final h (written on last step)
                pl.BlockSpec((3, B_, R), lambda t: (0, 0, 0)),      # final c
            ),
            scratch_shapes=[
                pltpu.VMEM((3, B_, R), F32),                        # h carry across steps
                pltpu.VMEM((3, B_, R), F32),                        # c carry across steps
            ],
        ),
        compiler_params=pltpu.CompilerParams(
            dimension_semantics=("arbitrary",),      # recurrent step axis
            vmem_limit_bytes=16 << 20,               # actual footprint ~4 MiB
        ),
    )(xt_seq.astype(BF16), fc_feats.astype(BF16), att_feats.astype(BF16),
      p_att_feats.astype(BF16), sh, sc, wl, wa, bl, misc)
    return outs, (new_h, new_c)


def stack_att_core(xt, fc_feats, att_feats, p_att_feats, state, kp):
    """Single-step StackAttCore.forward semantics: returns (h2, (new_h, new_c))."""
    outs, new_state = stack_att_core_steps(xt[None], fc_feats, att_feats, p_att_feats, state, kp)
    return outs[0], new_state


# ----------------------------------------------------------------------------
# Pure-JAX references.
# ----------------------------------------------------------------------------
def ref_forward_steps(xt_seq, fc_feats, att_feats, p_att_feats, state, kp):
    """bf16-consistent reference: iterates the exact shared step math on packed params."""
    sh, sc = state
    xt_b = xt_seq.astype(BF16)
    fc_b = fc_feats.astype(BF16)
    att_bf = att_feats.astype(BF16)
    patt_f32 = p_att_feats.astype(BF16).astype(F32)
    h = [sh[0], sh[1], sh[2]]
    c = [sc[0], sc[1], sc[2]]
    outs = []
    for t in range(xt_seq.shape[0]):
        (h0, h1, h2), (c0, c1, c2) = _step_math(
            xt_b[t], fc_b, att_bf, patt_f32, h, c,
            kp["w_lstm"], kp["w_att"], kp["b_lstm"], kp["misc"])
        h, c = [h0, h1, h2], [c0, c1, c2]
        outs.append(h2)
    return jnp.stack(outs), (jnp.stack(h), jnp.stack(c))


def ref_forward_f32(xt_seq, fc_feats, att_feats, p_att_feats, state, p):
    """Full f32 reference of the original PyTorch module math (bounds the bf16 drift)."""
    def lstm(x, h_prev, c_prev, wi, bi, wh, bh):
        s = x @ wi + bi + h_prev @ wh + bh
        sig = jax.nn.sigmoid(s[:, :3 * R])
        ig, fg, og = sig[:, :R], sig[:, R:2 * R], sig[:, 2 * R:3 * R]
        it = jnp.maximum(s[:, 3 * R:4 * R], s[:, 4 * R:5 * R])
        nc = fg * c_prev + ig * it
        return og * jnp.tanh(nc), nc

    def attn(hq, wa, ba, wal, bal):
        att_h = hq @ wa + ba
        dot = jnp.tanh(p_att_feats + att_h[:, None, :])
        sc_ = (dot.reshape(-1, H) @ wal + bal).reshape(B, L)
        w = jax.nn.softmax(sc_, axis=-1)
        return jnp.einsum('bl,blr->br', w, att_feats)

    sh, sc = state
    h = [sh[0], sh[1], sh[2]]
    c = [sc[0], sc[1], sc[2]]
    outs = []
    for t in range(xt_seq.shape[0]):
        h0, c0 = lstm(jnp.concatenate([xt_seq[t], fc_feats], 1), h[0], c[0],
                      p["wi0"], p["bi0"], p["wh0"], p["bh0"])
        a1 = attn(h0, p["wa1"], p["ba1"], p["wal1"], p["bal1"])
        h1, c1 = lstm(jnp.concatenate([h0, a1], 1), h[1], c[1],
                      p["wi1"], p["bi1"], p["wh1"], p["bh1"])
        a2 = attn(h1 + a1 @ p["wemb2"] + p["bemb2"], p["wa2"], p["ba2"], p["wal2"], p["bal2"])
        h2, c2 = lstm(jnp.concatenate([h1, a2], 1), h[2], c[2],
                      p["wi2"], p["bi2"], p["wh2"], p["bh2"])
        h, c = [h0, h1, h2], [c0, c1, c2]
        outs.append(h2)
    return jnp.stack(outs), (jnp.stack(h), jnp.stack(c))


# ----------------------------------------------------------------------------
# Deterministic parameter initialization (torch nn.Linear style, in-script).
# ----------------------------------------------------------------------------
def init_params(key):
    keys = iter(jax.random.split(key, 64))

    def lin(in_f, out_f):
        bound = 1.0 / float(in_f) ** 0.5
        w = jax.random.uniform(next(keys), (in_f, out_f), F32, -bound, bound)
        b = jax.random.uniform(next(keys), (out_f,), F32, -bound, bound)
        return w, b

    p = {}
    p["wi0"], p["bi0"] = lin(E + R, 5 * R)     # lstm0.i2h
    p["wh0"], p["bh0"] = lin(R, 5 * R)         # lstm0.h2h
    p["wi1"], p["bi1"] = lin(2 * R, 5 * R)     # lstm1.i2h
    p["wh1"], p["bh1"] = lin(R, 5 * R)         # lstm1.h2h
    p["wi2"], p["bi2"] = lin(2 * R, 5 * R)     # lstm2.i2h
    p["wh2"], p["bh2"] = lin(R, 5 * R)         # lstm2.h2h
    p["wa1"], p["ba1"] = lin(R, H)             # att1.h2att
    p["wal1"], p["bal1"] = lin(H, 1)           # att1.alpha_net
    p["wa2"], p["ba2"] = lin(R, H)             # att2.h2att
    p["wal2"], p["bal2"] = lin(H, 1)           # att2.alpha_net
    p["wemb2"], p["bemb2"] = lin(R, R)         # emb2
    return p


if __name__ == "__main__":
    key = jax.random.PRNGKey(0)
    k_in, k_par = jax.random.split(key)
    ks = jax.random.split(k_in, 6)

    T = 4
    xt_seq = jax.random.normal(ks[0], (T, B, E), F32)
    fc_feats = jax.random.normal(ks[1], (B, R), F32)
    att_feats = jax.random.normal(ks[2], (B, L, R), F32)
    p_att_feats = jax.random.normal(ks[3], (B, L, H), F32)
    state_h = 0.1 * jax.random.normal(ks[4], (3, B, R), F32)
    state_c = 0.1 * jax.random.normal(ks[5], (3, B, R), F32)
    state = (state_h, state_c)

    p = init_params(k_par)
    kp = prepare_params(p)            # called once; weights packed + cast to bf16 here only

    # Fused multi-step call: weights stay VMEM-resident across the T steps.
    outs, (new_h, new_c) = stack_att_core_steps(xt_seq, fc_feats, att_feats, p_att_feats, state, kp)
    jax.block_until_ready((outs, new_h, new_c))

    # Single-step module-forward semantics (T=1).
    out1, _ = stack_att_core(xt_seq[0], fc_feats, att_feats, p_att_feats, state, kp)
    jax.block_until_ready(out1)

    # Tight check vs. the bf16-consistent pure-JAX reference (identical math recipe).
    r_outs, (r_h, r_c) = ref_forward_steps(xt_seq, fc_feats, att_feats, p_att_feats, state, kp)
    assert jnp.allclose(outs, r_outs, rtol=3e-3, atol=3e-3), "outs mismatch vs bf16 ref"
    assert jnp.allclose(new_h, r_h, rtol=3e-3, atol=3e-3), "state h mismatch vs bf16 ref"
    assert jnp.allclose(new_c, r_c, rtol=3e-3, atol=3e-3), "state c mismatch vs bf16 ref"
    assert jnp.allclose(out1, r_outs[0], rtol=3e-3, atol=3e-3), "single-step mismatch vs bf16 ref"

    # Loose check vs. the full-f32 original-module reference: bounds accumulated bf16 drift
    # through 3 chained LSTMs + 2 attentions per step over T steps.
    f_outs, (f_h, f_c) = ref_forward_f32(xt_seq, fc_feats, att_feats, p_att_feats, state, p)
    assert jnp.allclose(outs, f_outs, rtol=0.15, atol=0.1), "outs drifted vs f32 ref"
    assert jnp.allclose(new_h, f_h, rtol=0.15, atol=0.1), "state h drifted vs f32 ref"
    assert jnp.allclose(new_c, f_c, rtol=0.15, atol=0.1), "state c drifted vs f32 ref"

    print("KERNEL_OK")
</pallas_src>

<mosaic_0001>
module attributes {stable_mosaic.version = 11 : i64} {
  func.func @stack_att_core_kernel(%arg0: i32, %arg1: memref<1x8x128xbf16, #tpu.memory_space<vmem>>, %arg2: memref<8x128xbf16, #tpu.memory_space<vmem>>, %arg3: memref<8x16x128xbf16, #tpu.memory_space<vmem>>, %arg4: memref<8x16x128xbf16, #tpu.memory_space<vmem>>, %arg5: memref<3x8x128xf32, #tpu.memory_space<vmem>>, %arg6: memref<3x8x128xf32, #tpu.memory_space<vmem>>, %arg7: memref<1152x640xbf16, #tpu.memory_space<vmem>>, %arg8: memref<384x128xbf16, #tpu.memory_space<vmem>>, %arg9: memref<3x640xf32, #tpu.memory_space<vmem>>, %arg10: memref<8x128xf32, #tpu.memory_space<vmem>>, %arg11: memref<1x8x128xf32, #tpu.memory_space<vmem>>, %arg12: memref<3x8x128xf32, #tpu.memory_space<vmem>>, %arg13: memref<3x8x128xf32, #tpu.memory_space<vmem>>, %arg14: memref<3x8x128xf32, #tpu.memory_space<vmem>>, %arg15: memref<3x8x128xf32, #tpu.memory_space<vmem>>) attributes {dimension_semantics = [#tpu.dimension_semantics<arbitrary>], iteration_bounds = array<i64: 4>, scalar_prefetch = 0 : i64, scratch_operands = 2 : i64, tpu.core_type = #tpu.core_type<tc>, window_params = [{transform_indices = @transform_0, window_bounds = array<i64: 1, 8, 128>}, {pipeline_mode = #tpu.pipeline_mode<synchronous>, transform_indices = @transform_1, window_bounds = array<i64: 8, 128>}, {pipeline_mode = #tpu.pipeline_mode<synchronous>, transform_indices = @transform_2, window_bounds = array<i64: 8, 16, 128>}, {pipeline_mode = #tpu.pipeline_mode<synchronous>, transform_indices = @transform_3, window_bounds = array<i64: 8, 16, 128>}, {pipeline_mode = #tpu.pipeline_mode<synchronous>, transform_indices = @transform_4, window_bounds = array<i64: 3, 8, 128>}, {pipeline_mode = #tpu.pipeline_mode<synchronous>, transform_indices = @transform_5, window_bounds = array<i64: 3, 8, 128>}, {pipeline_mode = #tpu.pipeline_mode<synchronous>, transform_indices = @transform_6, window_bounds = array<i64: 1152, 640>}, {pipeline_mode = #tpu.pipeline_mode<synchronous>, transform_indices = @transform_7, window_bounds = array<i64: 384, 128>}, {pipeline_mode = #tpu.pipeline_mode<synchronous>, transform_indices = @transform_8, window_bounds = array<i64: 3, 640>}, {pipeline_mode = #tpu.pipeline_mode<synchronous>, transform_indices = @transform_9, window_bounds = array<i64: 8, 128>}, {transform_indices = @transform_10, window_bounds = array<i64: 1, 8, 128>}, {pipeline_mode = #tpu.pipeline_mode<synchronous>, transform_indices = @transform_11, window_bounds = array<i64: 3, 8, 128>}, {pipeline_mode = #tpu.pipeline_mode<synchronous>, transform_indices = @transform_12, window_bounds = array<i64: 3, 8, 128>}]} {
    %c0_i32 = arith.constant 0 : i32
    %0 = arith.cmpi eq, %arg0, %c0_i32 : i32
    %1 = arith.extui %0 : i1 to i32
    %c0_i32_0 = arith.constant 0 : i32
    %2 = arith.cmpi ne, %1, %c0_i32_0 : i32
    scf.if %2 {
      %c0_89 = arith.constant 0 : index
      %c0_90 = arith.constant 0 : index
      %c0_91 = arith.constant 0 : index
      %205 = vector.load %arg5[%c0_89, %c0_90, %c0_91] : memref<3x8x128xf32, #tpu.memory_space<vmem>>, vector<3x8x128xf32>
      %c0_92 = arith.constant 0 : index
      %c0_93 = arith.constant 0 : index
      %c0_94 = arith.constant 0 : index
      %206 = vector.load %arg14[%c0_92, %c0_93, %c0_94] : memref<3x8x128xf32, #tpu.memory_space<vmem>>, vector<3x8x128xf32>
      tpu.vector_store %arg14[%c0_92, %c0_93, %c0_94], %205 {strides = array<i32>} : memref<3x8x128xf32, #tpu.memory_space<vmem>>, vector<3x8x128xf32>,
      %c0_95 = arith.constant 0 : index
      %c0_96 = arith.constant 0 : index
      %c0_97 = arith.constant 0 : index
      %207 = vector.load %arg6[%c0_95, %c0_96, %c0_97] : memref<3x8x128xf32, #tpu.memory_space<vmem>>, vector<3x8x128xf32>
      %c0_98 = arith.constant 0 : index
      %c0_99 = arith.constant 0 : index
      %c0_100 = arith.constant 0 : index
      %208 = vector.load %arg15[%c0_98, %c0_99, %c0_100] : memref<3x8x128xf32, #tpu.memory_space<vmem>>, vector<3x8x128xf32>
      tpu.vector_store %arg15[%c0_98, %c0_99, %c0_100], %207 {strides = array<i32>} : memref<3x8x128xf32, #tpu.memory_space<vmem>>, vector<3x8x128xf32>,
    } else {
    }
    %c0 = arith.constant 0 : index
    %c0_1 = arith.constant 0 : index
    %c0_2 = arith.constant 0 : index
    %3 = vector.load %arg1[%c0, %c0_1, %c0_2] : memref<1x8x128xbf16, #tpu.memory_space<vmem>>, vector<1x8x128xbf16>
    %4 = vector.shape_cast %3 : vector<1x8x128xbf16> to vector<8x128xbf16>
    %c0_3 = arith.constant 0 : index
    %c0_4 = arith.constant 0 : index
    %5 = vector.load %arg2[%c0_3, %c0_4] : memref<8x128xbf16, #tpu.memory_space<vmem>>, vector<8x128xbf16>
    %c0_5 = arith.constant 0 : index
    %c0_6 = arith.constant 0 : index
    %c0_7 = arith.constant 0 : index
    %6 = vector.load %arg3[%c0_5, %c0_6, %c0_7] : memref<8x16x128xbf16, #tpu.memory_space<vmem>>, vector<8x16x128xbf16>
    %c0_8 = arith.constant 0 : index
    %c0_9 = arith.constant 0 : index
    %c0_10 = arith.constant 0 : index
    %7 = vector.load %arg4[%c0_8, %c0_9, %c0_10] : memref<8x16x128xbf16, #tpu.memory_space<vmem>>, vector<8x16x128xbf16>
    %8 = arith.extf %7 : vector<8x16x128xbf16> to vector<8x16x128xf32>
    %c0_11 = arith.constant 0 : index
    %c0_12 = arith.constant 0 : index
    %c0_13 = arith.constant 0 : index
    %9 = vector.load %arg14[%c0_11, %c0_12, %c0_13] : memref<3x8x128xf32, #tpu.memory_space<vmem>>, vector<3x8x128xf32>
    %c0_14 = arith.constant 0 : index
    %c0_15 = arith.constant 0 : index
    %c0_16 = arith.constant 0 : index
    %10 = vector.load %arg15[%c0_14, %c0_15, %c0_16] : memref<3x8x128xf32, #tpu.memory_space<vmem>>, vector<3x8x128xf32>
    %c0_17 = arith.constant 0 : index
    %c0_18 = arith.constant 0 : index
    %11 = vector.load %arg7[%c0_17, %c0_18] : memref<1152x640xbf16, #tpu.memory_space<vmem>>, vector<128x640xbf16>
    %c128 = arith.constant 128 : index
    %c0_19 = arith.constant 0 : index
    %12 = vector.load %arg7[%c128, %c0_19] : memref<1152x640xbf16, #tpu.memory_space<vmem>>, vector<128x640xbf16>
    %13 = vector.extract_strided_slice %9 {offsets = [0, 0, 0], sizes = [1, 8, 128], strides = [1, 1, 1]} : vector<3x8x128xf32> to vector<1x8x128xf32>
    %14 = vector.shape_cast %13 : vector<1x8x128xf32> to vector<8x128xf32>
    %c256 = arith.constant 256 : index
    %c0_20 = arith.constant 0 : index
    %15 = vector.load %arg7[%c256, %c0_20] : memref<1152x640xbf16, #tpu.memory_space<vmem>>, vector<128x640xbf16>
    %c0_21 = arith.constant 0 : index
    %c0_22 = arith.constant 0 : index
    %16 = vector.load %arg9[%c0_21, %c0_22] : memref<3x640xf32, #tpu.memory_space<vmem>>, vector<1x640xf32>
    %17 = vector.extract_strided_slice %10 {offsets = [0, 0, 0], sizes = [1, 8, 128], strides = [1, 1, 1]} : vector<3x8x128xf32> to vector<1x8x128xf32>
    %18 = vector.shape_cast %17 : vector<1x8x128xf32> to vector<8x128xf32>
    %19 = arith.truncf %14 : vector<8x128xf32> to vector<8x128xbf16>
    %cst = arith.constant dense<0.000000e+00> : vector<8x640xf32>
    %20 = tpu.matmul %19, %15, %cst {dimension_numbers = #tpu.dot_dimension_numbers<[1], [0], [0], [1], [0, 0, 1, 1], [], []>} : vector<8x128xbf16>, vector<128x640xbf16>, vector<8x640xf32> -> vector<8x640xf32>
    %21 = vector.broadcast %16 : vector<1x640xf32> to vector<8x640xf32>
    %22 = arith.addf %21, %20 : vector<8x640xf32>
    %cst_23 = arith.constant dense<0.000000e+00> : vector<8x640xf32>
    %23 = tpu.matmul %4, %11, %cst_23 {dimension_numbers = #tpu.dot_dimension_numbers<[1], [0], [0], [1], [0, 0, 1, 1], [], []>} : vector<8x128xbf16>, vector<128x640xbf16>, vector<8x640xf32> -> vector<8x640xf32>
    %24 = arith.addf %22, %23 : vector<8x640xf32>
    %cst_24 = arith.constant dense<0.000000e+00> : vector<8x640xf32>
    %25 = tpu.matmul %5, %12, %cst_24 {dimension_numbers = #tpu.dot_dimension_numbers<[1], [0], [0], [1], [0, 0, 1, 1], [], []>} : vector<8x128xbf16>, vector<128x640xbf16>, vector<8x640xf32> -> vector<8x640xf32>
    %26 = arith.addf %24, %25 : vector<8x640xf32>
    %27 = vector.extract_strided_slice %26 {offsets = [0, 0], sizes = [8, 384], strides = [1, 1]} : vector<8x640xf32> to vector<8x384xf32>
    %28 = arith.negf %27 : vector<8x384xf32>
    %29 = math.exp %28 : vector<8x384xf32>
    %cst_25 = arith.constant 1.000000e+00 : f32
    %30 = vector.broadcast %cst_25 : f32 to vector<8x384xf32>
    %31 = arith.addf %30, %29 : vector<8x384xf32>
    %32 = arith.divf %30, %31 : vector<8x384xf32>
    %33 = vector.extract_strided_slice %32 {offsets = [0, 0], sizes = [8, 128], strides = [1, 1]} : vector<8x384xf32> to vector<8x128xf32>
    %34 = vector.extract_strided_slice %32 {offsets = [0, 128], sizes = [8, 128], strides = [1, 1]} : vector<8x384xf32> to vector<8x128xf32>
    %35 = vector.extract_strided_slice %32 {offsets = [0, 256], sizes = [8, 128], strides = [1, 1]} : vector<8x384xf32> to vector<8x128xf32>
    %36 = vector.extract_strided_slice %26 {offsets = [0, 384], sizes = [8, 128], strides = [1, 1]} : vector<8x640xf32> to vector<8x128xf32>
    %37 = vector.extract_strided_slice %26 {offsets = [0, 512], sizes = [8, 128], strides = [1, 1]} : vector<8x640xf32> to vector<8x128xf32>
    %38 = arith.maximumf %36, %37 : vector<8x128xf32>
    %39 = arith.mulf %34, %18 : vector<8x128xf32>
    %40 = arith.mulf %33, %38 : vector<8x128xf32>
    %41 = arith.addf %39, %40 : vector<8x128xf32>
    %42 = math.tanh %41 : vector<8x128xf32>
    %43 = arith.mulf %35, %42 : vector<8x128xf32>
    %c0_26 = arith.constant 0 : index
    %c0_27 = arith.constant 0 : index
    %44 = vector.load %arg8[%c0_26, %c0_27] : memref<384x128xbf16, #tpu.memory_space<vmem>>, vector<128x128xbf16>
    %c0_28 = arith.constant 0 : index
    %c0_29 = arith.constant 0 : index
    %45 = vector.load %arg10[%c0_28, %c0_29] : memref<8x128xf32, #tpu.memory_space<vmem>>, vector<1x128xf32>
    %c3 = arith.constant 3 : index
    %c0_30 = arith.constant 0 : index
    %46 = vector.load %arg10[%c3, %c0_30] : memref<8x128xf32, #tpu.memory_space<vmem>>, vector<1x128xf32>
    %47 = arith.truncf %43 : vector<8x128xf32> to vector<8x128xbf16>
    %cst_31 = arith.constant dense<0.000000e+00> : vector<8x128xf32>
    %48 = tpu.matmul %47, %44, %cst_31 {dimension_numbers = #tpu.dot_dimension_numbers<[1], [0], [0], [1], [0, 0, 1, 1], [], []>} : vector<8x128xbf16>, vector<128x128xbf16>, vector<8x128xf32> -> vector<8x128xf32>
    %49 = vector.broadcast %45 : vector<1x128xf32> to vector<8x128xf32>
    %50 = arith.addf %48, %49 : vector<8x128xf32>
    %51 = vector.shape_cast %50 : vector<8x128xf32> to vector<8x1x128xf32>
    %52 = vector.broadcast %51 : vector<8x1x128xf32> to vector<8x16x128xf32>
    %53 = arith.addf %8, %52 : vector<8x16x128xf32>
    %54 = math.tanh %53 : vector<8x16x128xf32>
    %55 = vector.shape_cast %46 : vector<1x128xf32> to vector<1x1x128xf32>
    %56 = vector.broadcast %55 : vector<1x1x128xf32> to vector<8x16x128xf32>
    %57 = arith.mulf %54, %56 : vector<8x16x128xf32>
    %cst_32 = arith.constant dense<0.000000e+00> : vector<8x16xf32>
    %58 = vector.multi_reduction <add>, %57, %cst_32 [2] : vector<8x16x128xf32> to vector<8x16xf32>
    %cst_33 = arith.constant dense<0xFF800000> : vector<8xf32>
    %59 = vector.multi_reduction <maximumf>, %58, %cst_33 [1] : vector<8x16xf32> to vector<8xf32>
    %60 = vector.shape_cast %59 : vector<8xf32> to vector<8x1xf32>
    %61 = vector.broadcast %60 : vector<8x1xf32> to vector<8x16xf32>
    %62 = arith.subf %58, %61 : vector<8x16xf32>
    %63 = math.exp %62 : vector<8x16xf32>
    %cst_34 = arith.constant dense<0.000000e+00> : vector<8xf32>
    %64 = vector.multi_reduction <add>, %63, %cst_34 [1] : vector<8x16xf32> to vector<8xf32>
    %65 = vector.shape_cast %64 : vector<8xf32> to vector<8x1xf32>
    %66 = vector.broadcast %65 : vector<8x1xf32> to vector<8x16xf32>
    %67 = arith.divf %63, %66 : vector<8x16xf32>
    %68 = arith.truncf %67 : vector<8x16xf32> to vector<8x16xbf16>
    %69 = vector.shape_cast %68 : vector<8x16xbf16> to vector<8x16x1xbf16>
    %70 = vector.broadcast %69 : vector<8x16x1xbf16> to vector<8x16x128xbf16>
    %71 = arith.mulf %70, %6 : vector<8x16x128xbf16>
    %72 = arith.extf %71 : vector<8x16x128xbf16> to vector<8x16x128xf32>
    %cst_35 = arith.constant dense<0.000000e+00> : vector<8x128xf32>
    %73 = vector.multi_reduction <add>, %72, %cst_35 [1] : vector<8x16x128xf32> to vector<8x128xf32>
    %c384 = arith.constant 384 : index
    %c0_36 = arith.constant 0 : index
    %74 = vector.load %arg7[%c384, %c0_36] : memref<1152x640xbf16, #tpu.memory_space<vmem>>, vector<128x640xbf16>
    %c512 = arith.constant 512 : index
    %c0_37 = arith.constant 0 : index
    %75 = vector.load %arg7[%c512, %c0_37] : memref<1152x640xbf16, #tpu.memory_space<vmem>>, vector<128x640xbf16>
    %76 = vector.extract_strided_slice %9 {offsets = [1, 0, 0], sizes = [1, 8, 128], strides = [1, 1, 1]} : vector<3x8x128xf32> to vector<1x8x128xf32>
    %77 = vector.shape_cast %76 : vector<1x8x128xf32> to vector<8x128xf32>
    %c640 = arith.constant 640 : index
    %c0_38 = arith.constant 0 : index
    %78 = vector.load %arg7[%c640, %c0_38] : memref<1152x640xbf16, #tpu.memory_space<vmem>>, vector<128x640xbf16>
    %c1 = arith.constant 1 : index
    %c0_39 = arith.constant 0 : index
    %79 = vector.load %arg9[%c1, %c0_39] : memref<3x640xf32, #tpu.memory_space<vmem>>, vector<1x640xf32>
    %80 = vector.extract_strided_slice %10 {offsets = [1, 0, 0], sizes = [1, 8, 128], strides = [1, 1, 1]} : vector<3x8x128xf32> to vector<1x8x128xf32>
    %81 = vector.shape_cast %80 : vector<1x8x128xf32> to vector<8x128xf32>
    %82 = arith.truncf %77 : vector<8x128xf32> to vector<8x128xbf16>
    %cst_40 = arith.constant dense<0.000000e+00> : vector<8x640xf32>
    %83 = tpu.matmul %82, %78, %cst_40 {dimension_numbers = #tpu.dot_dimension_numbers<[1], [0], [0], [1], [0, 0, 1, 1], [], []>} : vector<8x128xbf16>, vector<128x640xbf16>, vector<8x640xf32> -> vector<8x640xf32>
    %84 = vector.broadcast %79 : vector<1x640xf32> to vector<8x640xf32>
    %85 = arith.addf %84, %83 : vector<8x640xf32>
    %86 = arith.truncf %43 : vector<8x128xf32> to vector<8x128xbf16>
    %cst_41 = arith.constant dense<0.000000e+00> : vector<8x640xf32>
    %87 = tpu.matmul %86, %74, %cst_41 {dimension_numbers = #tpu.dot_dimension_numbers<[1], [0], [0], [1], [0, 0, 1, 1], [], []>} : vector<8x128xbf16>, vector<128x640xbf16>, vector<8x640xf32> -> vector<8x640xf32>
    %88 = arith.addf %85, %87 : vector<8x640xf32>
    %89 = arith.truncf %73 : vector<8x128xf32> to vector<8x128xbf16>
    %cst_42 = arith.constant dense<0.000000e+00> : vector<8x640xf32>
    %90 = tpu.matmul %89, %75, %cst_42 {dimension_numbers = #tpu.dot_dimension_numbers<[1], [0], [0], [1], [0, 0, 1, 1], [], []>} : vector<8x128xbf16>, vector<128x640xbf16>, vector<8x640xf32> -> vector<8x640xf32>
    %91 = arith.addf %88, %90 : vector<8x640xf32>
    %92 = vector.extract_strided_slice %91 {offsets = [0, 0], sizes = [8, 384], strides = [1, 1]} : vector<8x640xf32> to vector<8x384xf32>
    %93 = arith.negf %92 : vector<8x384xf32>
    %94 = math.exp %93 : vector<8x384xf32>
    %cst_43 = arith.constant 1.000000e+00 : f32
    %95 = vector.broadcast %cst_43 : f32 to vector<8x384xf32>
    %96 = arith.addf %95, %94 : vector<8x384xf32>
    %97 = arith.divf %95, %96 : vector<8x384xf32>
    %98 = vector.extract_strided_slice %97 {offsets = [0, 0], sizes = [8, 128], strides = [1, 1]} : vector<8x384xf32> to vector<8x128xf32>
    %99 = vector.extract_strided_slice %97 {offsets = [0, 128], sizes = [8, 128], strides = [1, 1]} : vector<8x384xf32> to vector<8x128xf32>
    %100 = vector.extract_strided_slice %97 {offsets = [0, 256], sizes = [8, 128], strides = [1, 1]} : vector<8x384xf32> to vector<8x128xf32>
    %101 = vector.extract_strided_slice %91 {offsets = [0, 384], sizes = [8, 128], strides = [1, 1]} : vector<8x640xf32> to vector<8x128xf32>
    %102 = vector.extract_strided_slice %91 {offsets = [0, 512], sizes = [8, 128], strides = [1, 1]} : vector<8x640xf32> to vector<8x128xf32>
    %103 = arith.maximumf %101, %102 : vector<8x128xf32>
    %104 = arith.mulf %99, %81 : vector<8x128xf32>
    %105 = arith.mulf %98, %103 : vector<8x128xf32>
    %106 = arith.addf %104, %105 : vector<8x128xf32>
    %107 = math.tanh %106 : vector<8x128xf32>
    %108 = arith.mulf %100, %107 : vector<8x128xf32>
    %c256_44 = arith.constant 256 : index
    %c0_45 = arith.constant 0 : index
    %109 = vector.load %arg8[%c256_44, %c0_45] : memref<384x128xbf16, #tpu.memory_space<vmem>>, vector<128x128xbf16>
    %110 = arith.truncf %73 : vector<8x128xf32> to vector<8x128xbf16>
    %cst_46 = arith.constant dense<0.000000e+00> : vector<8x128xf32>
    %111 = tpu.matmul %110, %109, %cst_46 {dimension_numbers = #tpu.dot_dimension_numbers<[1], [0], [0], [1], [0, 0, 1, 1], [], []>} : vector<8x128xbf16>, vector<128x128xbf16>, vector<8x128xf32> -> vector<8x128xf32>
    %112 = arith.addf %108, %111 : vector<8x128xf32>
    %c2 = arith.constant 2 : index
    %c0_47 = arith.constant 0 : index
    %113 = vector.load %arg10[%c2, %c0_47] : memref<8x128xf32, #tpu.memory_space<vmem>>, vector<1x128xf32>
    %114 = vector.broadcast %113 : vector<1x128xf32> to vector<8x128xf32>
    %115 = arith.addf %112, %114 : vector<8x128xf32>
    %c128_48 = arith.constant 128 : index
    %c0_49 = arith.constant 0 : index
    %116 = vector.load %arg8[%c128_48, %c0_49] : memref<384x128xbf16, #tpu.memory_space<vmem>>, vector<128x128xbf16>
    %c1_50 = arith.constant 1 : index
    %c0_51 = arith.constant 0 : index
    %117 = vector.load %arg10[%c1_50, %c0_51] : memref<8x128xf32, #tpu.memory_space<vmem>>, vector<1x128xf32>
    %c4 = arith.constant 4 : index
    %c0_52 = arith.constant 0 : index
    %118 = vector.load %arg10[%c4, %c0_52] : memref<8x128xf32, #tpu.memory_space<vmem>>, vector<1x128xf32>
    %119 = arith.truncf %115 : vector<8x128xf32> to vector<8x128xbf16>
    %cst_53 = arith.constant dense<0.000000e+00> : vector<8x128xf32>
    %120 = tpu.matmul %119, %116, %cst_53 {dimension_numbers = #tpu.dot_dimension_numbers<[1], [0], [0], [1], [0, 0, 1, 1], [], []>} : vector<8x128xbf16>, vector<128x128xbf16>, vector<8x128xf32> -> vector<8x128xf32>
    %121 = vector.broadcast %117 : vector<1x128xf32> to vector<8x128xf32>
    %122 = arith.addf %120, %121 : vector<8x128xf32>
    %123 = vector.shape_cast %122 : vector<8x128xf32> to vector<8x1x128xf32>
    %124 = vector.broadcast %123 : vector<8x1x128xf32> to vector<8x16x128xf32>
    %125 = arith.addf %8, %124 : vector<8x16x128xf32>
    %126 = math.tanh %125 : vector<8x16x128xf32>
    %127 = vector.shape_cast %118 : vector<1x128xf32> to vector<1x1x128xf32>
    %128 = vector.broadcast %127 : vector<1x1x128xf32> to vector<8x16x128xf32>
    %129 = arith.mulf %126, %128 : vector<8x16x128xf32>
    %cst_54 = arith.constant dense<0.000000e+00> : vector<8x16xf32>
    %130 = vector.multi_reduction <add>, %129, %cst_54 [2] : vector<8x16x128xf32> to vector<8x16xf32>
    %cst_55 = arith.constant dense<0xFF800000> : vector<8xf32>
    %131 = vector.multi_reduction <maximumf>, %130, %cst_55 [1] : vector<8x16xf32> to vector<8xf32>
    %132 = vector.shape_cast %131 : vector<8xf32> to vector<8x1xf32>
    %133 = vector.broadcast %132 : vector<8x1xf32> to vector<8x16xf32>
    %134 = arith.subf %130, %133 : vector<8x16xf32>
    %135 = math.exp %134 : vector<8x16xf32>
    %cst_56 = arith.constant dense<0.000000e+00> : vector<8xf32>
    %136 = vector.multi_reduction <add>, %135, %cst_56 [1] : vector<8x16xf32> to vector<8xf32>
    %137 = vector.shape_cast %136 : vector<8xf32> to vector<8x1xf32>
    %138 = vector.broadcast %137 : vector<8x1xf32> to vector<8x16xf32>
    %139 = arith.divf %135, %138 : vector<8x16xf32>
    %140 = arith.truncf %139 : vector<8x16xf32> to vector<8x16xbf16>
    %141 = vector.shape_cast %140 : vector<8x16xbf16> to vector<8x16x1xbf16>
    %142 = vector.broadcast %141 : vector<8x16x1xbf16> to vector<8x16x128xbf16>
    %143 = arith.mulf %142, %6 : vector<8x16x128xbf16>
    %144 = arith.extf %143 : vector<8x16x128xbf16> to vector<8x16x128xf32>
    %cst_57 = arith.constant dense<0.000000e+00> : vector<8x128xf32>
    %145 = vector.multi_reduction <add>, %144, %cst_57 [1] : vector<8x16x128xf32> to vector<8x128xf32>
    %c768 = arith.constant 768 : index
    %c0_58 = arith.constant 0 : index
    %146 = vector.load %arg7[%c768, %c0_58] : memref<1152x640xbf16, #tpu.memory_space<vmem>>, vector<128x640xbf16>
    %c896 = arith.constant 896 : index
    %c0_59 = arith.constant 0 : index
    %147 = vector.load %arg7[%c896, %c0_59] : memref<1152x640xbf16, #tpu.memory_space<vmem>>, vector<128x640xbf16>
    %148 = vector.extract_strided_slice %9 {offsets = [2, 0, 0], sizes = [1, 8, 128], strides = [1, 1, 1]} : vector<3x8x128xf32> to vector<1x8x128xf32>
    %149 = vector.shape_cast %148 : vector<1x8x128xf32> to vector<8x128xf32>
    %c1024 = arith.constant 1024 : index
    %c0_60 = arith.constant 0 : index
    %150 = vector.load %arg7[%c1024, %c0_60] : memref<1152x640xbf16, #tpu.memory_space<vmem>>, vector<128x640xbf16>
    %c2_61 = arith.constant 2 : index
    %c0_62 = arith.constant 0 : index
    %151 = vector.load %arg9[%c2_61, %c0_62] : memref<3x640xf32, #tpu.memory_space<vmem>>, vector<1x640xf32>
    %152 = vector.extract_strided_slice %10 {offsets = [2, 0, 0], sizes = [1, 8, 128], strides = [1, 1, 1]} : vector<3x8x128xf32> to vector<1x8x128xf32>
    %153 = vector.shape_cast %152 : vector<1x8x128xf32> to vector<8x128xf32>
    %154 = arith.truncf %149 : vector<8x128xf32> to vector<8x128xbf16>
    %cst_63 = arith.constant dense<0.000000e+00> : vector<8x640xf32>
    %155 = tpu.matmul %154, %150, %cst_63 {dimension_numbers = #tpu.dot_dimension_numbers<[1], [0], [0], [1], [0, 0, 1, 1], [], []>} : vector<8x128xbf16>, vector<128x640xbf16>, vector<8x640xf32> -> vector<8x640xf32>
    %156 = vector.broadcast %151 : vector<1x640xf32> to vector<8x640xf32>
    %157 = arith.addf %156, %155 : vector<8x640xf32>
    %158 = arith.truncf %108 : vector<8x128xf32> to vector<8x128xbf16>
    %cst_64 = arith.constant dense<0.000000e+00> : vector<8x640xf32>
    %159 = tpu.matmul %158, %146, %cst_64 {dimension_numbers = #tpu.dot_dimension_numbers<[1], [0], [0], [1], [0, 0, 1, 1], [], []>} : vector<8x128xbf16>, vector<128x640xbf16>, vector<8x640xf32> -> vector<8x640xf32>
    %160 = arith.addf %157, %159 : vector<8x640xf32>
    %161 = arith.truncf %145 : vector<8x128xf32> to vector<8x128xbf16>
    %cst_65 = arith.constant dense<0.000000e+00> : vector<8x640xf32>
    %162 = tpu.matmul %161, %147, %cst_65 {dimension_numbers = #tpu.dot_dimension_numbers<[1], [0], [0], [1], [0, 0, 1, 1], [], []>} : vector<8x128xbf16>, vector<128x640xbf16>, vector<8x640xf32> -> vector<8x640xf32>
    %163 = arith.addf %160, %162 : vector<8x640xf32>
    %164 = vector.extract_strided_slice %163 {offsets = [0, 0], sizes = [8, 384], strides = [1, 1]} : vector<8x640xf32> to vector<8x384xf32>
    %165 = arith.negf %164 : vector<8x384xf32>
    %166 = math.exp %165 : vector<8x384xf32>
    %cst_66 = arith.constant 1.000000e+00 : f32
    %167 = vector.broadcast %cst_66 : f32 to vector<8x384xf32>
    %168 = arith.addf %167, %166 : vector<8x384xf32>
    %169 = arith.divf %167, %168 : vector<8x384xf32>
    %170 = vector.extract_strided_slice %169 {offsets = [0, 0], sizes = [8, 128], strides = [1, 1]} : vector<8x384xf32> to vector<8x128xf32>
    %171 = vector.extract_strided_slice %169 {offsets = [0, 128], sizes = [8, 128], strides = [1, 1]} : vector<8x384xf32> to vector<8x128xf32>
    %172 = vector.extract_strided_slice %169 {offsets = [0, 256], sizes = [8, 128], strides = [1, 1]} : vector<8x384xf32> to vector<8x128xf32>
    %173 = vector.extract_strided_slice %163 {offsets = [0, 384], sizes = [8, 128], strides = [1, 1]} : vector<8x640xf32> to vector<8x128xf32>
    %174 = vector.extract_strided_slice %163 {offsets = [0, 512], sizes = [8, 128], strides = [1, 1]} : vector<8x640xf32> to vector<8x128xf32>
    %175 = arith.maximumf %173, %174 : vector<8x128xf32>
    %176 = arith.mulf %171, %153 : vector<8x128xf32>
    %177 = arith.mulf %170, %175 : vector<8x128xf32>
    %178 = arith.addf %176, %177 : vector<8x128xf32>
    %179 = math.tanh %178 : vector<8x128xf32>
    %180 = arith.mulf %172, %179 : vector<8x128xf32>
    %c0_67 = arith.constant 0 : index
    %c0_68 = arith.constant 0 : index
    %c0_69 = arith.constant 0 : index
    %181 = vector.load %arg11[%c0_67, %c0_68, %c0_69] : memref<1x8x128xf32, #tpu.memory_space<vmem>>, vector<1x8x128xf32>
    %182 = vector.shape_cast %181 : vector<1x8x128xf32> to vector<8x128xf32>
    %183 = vector.shape_cast %180 : vector<8x128xf32> to vector<1x8x128xf32>
    tpu.vector_store %arg11[%c0_67, %c0_68, %c0_69], %183 {strides = array<i32>} : memref<1x8x128xf32, #tpu.memory_space<vmem>>, vector<1x8x128xf32>,
    %c0_70 = arith.constant 0 : index
    %c0_71 = arith.constant 0 : index
    %c0_72 = arith.constant 0 : index
    %184 = vector.load %arg14[%c0_70, %c0_71, %c0_72] : memref<3x8x128xf32, #tpu.memory_space<vmem>>, vector<1x8x128xf32>
    %185 = vector.shape_cast %184 : vector<1x8x128xf32> to vector<8x128xf32>
    %186 = vector.shape_cast %43 : vector<8x128xf32> to vector<1x8x128xf32>
    tpu.vector_store %arg14[%c0_70, %c0_71, %c0_72], %186 {strides = array<i32>} : memref<3x8x128xf32, #tpu.memory_space<vmem>>, vector<1x8x128xf32>,
    %c1_73 = arith.constant 1 : index
    %c0_74 = arith.constant 0 : index
    %c0_75 = arith.constant 0 : index
    %187 = vector.load %arg14[%c1_73, %c0_74, %c0_75] : memref<3x8x128xf32, #tpu.memory_space<vmem>>, vector<1x8x128xf32>
    %188 = vector.shape_cast %187 : vector<1x8x128xf32> to vector<8x128xf32>
    %189 = vector.shape_cast %108 : vector<8x128xf32> to vector<1x8x128xf32>
    tpu.vector_store %arg14[%c1_73, %c0_74, %c0_75], %189 {strides = array<i32>} : memref<3x8x128xf32, #tpu.memory_space<vmem>>, vector<1x8x128xf32>,
    %c2_76 = arith.constant 2 : index
    %c0_77 = arith.constant 0 : index
    %c0_78 = arith.constant 0 : index
    %190 = vector.load %arg14[%c2_76, %c0_77, %c0_78] : memref<3x8x128xf32, #tpu.memory_space<vmem>>, vector<1x8x128xf32>
    %191 = vector.shape_cast %190 : vector<1x8x128xf32> to vector<8x128xf32>
    %192 = vector.shape_cast %180 : vector<8x128xf32> to vector<1x8x128xf32>
    tpu.vector_store %arg14[%c2_76, %c0_77, %c0_78], %192 {strides = array<i32>} : memref<3x8x128xf32, #tpu.memory_space<vmem>>, vector<1x8x128xf32>,
    %c0_79 = arith.constant 0 : index
    %c0_80 = arith.constant 0 : index
    %c0_81 = arith.constant 0 : index
    %193 = vector.load %arg15[%c0_79, %c0_80, %c0_81] : memref<3x8x128xf32, #tpu.memory_space<vmem>>, vector<1x8x128xf32>
    %194 = vector.shape_cast %193 : vector<1x8x128xf32> to vector<8x128xf32>
    %195 = vector.shape_cast %41 : vector<8x128xf32> to vector<1x8x128xf32>
    tpu.vector_store %arg15[%c0_79, %c0_80, %c0_81], %195 {strides = array<i32>} : memref<3x8x128xf32, #tpu.memory_space<vmem>>, vector<1x8x128xf32>,
    %c1_82 = arith.constant 1 : index
    %c0_83 = arith.constant 0 : index
    %c0_84 = arith.constant 0 : index
    %196 = vector.load %arg15[%c1_82, %c0_83, %c0_84] : memref<3x8x128xf32, #tpu.memory_space<vmem>>, vector<1x8x128xf32>
    %197 = vector.shape_cast %196 : vector<1x8x128xf32> to vector<8x128xf32>
    %198 = vector.shape_cast %106 : vector<8x128xf32> to vector<1x8x128xf32>
    tpu.vector_store %arg15[%c1_82, %c0_83, %c0_84], %198 {strides = array<i32>} : memref<3x8x128xf32, #tpu.memory_space<vmem>>, vector<1x8x128xf32>,
    %c2_85 = arith.constant 2 : index
    %c0_86 = arith.constant 0 : index
    %c0_87 = arith.constant 0 : index
    %199 = vector.load %arg15[%c2_85, %c0_86, %c0_87] : memref<3x8x128xf32, #tpu.memory_space<vmem>>, vector<1x8x128xf32>
    %200 = vector.shape_cast %199 : vector<1x8x128xf32> to vector<8x128xf32>
    %201 = vector.shape_cast %178 : vector<8x128xf32> to vector<1x8x128xf32>
    tpu.vector_store %arg15[%c2_85, %c0_86, %c0_87], %201 {strides = array<i32>} : memref<3x8x128xf32, #tpu.memory_space<vmem>>, vector<1x8x128xf32>,
    %c3_i32 = arith.constant 3 : i32
    %202 = arith.cmpi eq, %arg0, %c3_i32 : i32
    %203 = arith.extui %202 : i1 to i32
    %c0_i32_88 = arith.constant 0 : i32
    %204 = arith.cmpi ne, %203, %c0_i32_88 : i32
    scf.if %204 {
      %c0_89 = arith.constant 0 : index
      %c0_90 = arith.constant 0 : index
      %c0_91 = arith.constant 0 : index
      %205 = vector.load %arg14[%c0_89, %c0_90, %c0_91] : memref<3x8x128xf32, #tpu.memory_space<vmem>>, vector<3x8x128xf32>
      %c0_92 = arith.constant 0 : index
      %c0_93 = arith.constant 0 : index
      %c0_94 = arith.constant 0 : index
      %206 = vector.load %arg12[%c0_92, %c0_93, %c0_94] : memref<3x8x128xf32, #tpu.memory_space<vmem>>, vector<3x8x128xf32>
      tpu.vector_store %arg12[%c0_92, %c0_93, %c0_94], %205 {strides = array<i32>} : memref<3x8x128xf32, #tpu.memory_space<vmem>>, vector<3x8x128xf32>,
      %c0_95 = arith.constant 0 : index
      %c0_96 = arith.constant 0 : index
      %c0_97 = arith.constant 0 : index
      %207 = vector.load %arg15[%c0_95, %c0_96, %c0_97] : memref<3x8x128xf32, #tpu.memory_space<vmem>>, vector<3x8x128xf32>
      %c0_98 = arith.constant 0 : index
      %c0_99 = arith.constant 0 : index
      %c0_100 = arith.constant 0 : index
      %208 = vector.load %arg13[%c0_98, %c0_99, %c0_100] : memref<3x8x128xf32, #tpu.memory_space<vmem>>, vector<3x8x128xf32>
      tpu.vector_store %arg13[%c0_98, %c0_99, %c0_100], %207 {strides = array<i32>} : memref<3x8x128xf32, #tpu.memory_space<vmem>>, vector<3x8x128xf32>,
    } else {
    }
    return
  }
  func.func @transform_0(%arg0: i32) -> (i32, i32, i32) {
    %c0_i32 = arith.constant 0 : i32
    %c0_i32_0 = arith.constant 0 : i32
    %c0_i32_1 = arith.constant 0 : i32
    return %arg0, %c0_i32, %c0_i32_0 : i32, i32, i32
  }
  func.func @transform_1(%arg0: i32) -> (i32, i32) {
    %c0_i32 = arith.constant 0 : i32
    %c0_i32_0 = arith.constant 0 : i32
    %c0_i32_1 = arith.constant 0 : i32
    return %c0_i32, %c0_i32_0 : i32, i32
  }
  func.func @transform_2(%arg0: i32) -> (i32, i32, i32) {
    %c0_i32 = arith.constant 0 : i32
    %c0_i32_0 = arith.constant 0 : i32
    %c0_i32_1 = arith.constant 0 : i32
    %c0_i32_2 = arith.constant 0 : i32
    return %c0_i32, %c0_i32_0, %c0_i32_1 : i32, i32, i32
  }
  func.func @transform_3(%arg0: i32) -> (i32, i32, i32) {
    %c0_i32 = arith.constant 0 : i32
    %c0_i32_0 = arith.constant 0 : i32
    %c0_i32_1 = arith.constant 0 : i32
    %c0_i32_2 = arith.constant 0 : i32
    return %c0_i32, %c0_i32_0, %c0_i32_1 : i32, i32, i32
  }
  func.func @transform_4(%arg0: i32) -> (i32, i32, i32) {
    %c0_i32 = arith.constant 0 : i32
    %c0_i32_0 = arith.constant 0 : i32
    %c0_i32_1 = arith.constant 0 : i32
    %c0_i32_2 = arith.constant 0 : i32
    return %c0_i32, %c0_i32_0, %c0_i32_1 : i32, i32, i32
  }
  func.func @transform_5(%arg0: i32) -> (i32, i32, i32) {
    %c0_i32 = arith.constant 0 : i32
    %c0_i32_0 = arith.constant 0 : i32
    %c0_i32_1 = arith.constant 0 : i32
    %c0_i32_2 = arith.constant 0 : i32
    return %c0_i32, %c0_i32_0, %c0_i32_1 : i32, i32, i32
  }
  func.func @transform_6(%arg0: i32) -> (i32, i32) {
    %c0_i32 = arith.constant 0 : i32
    %c0_i32_0 = arith.constant 0 : i32
    %c0_i32_1 = arith.constant 0 : i32
    return %c0_i32, %c0_i32_0 : i32, i32
  }
  func.func @transform_7(%arg0: i32) -> (i32, i32) {
    %c0_i32 = arith.constant 0 : i32
    %c0_i32_0 = arith.constant 0 : i32
    %c0_i32_1 = arith.constant 0 : i32
    return %c0_i32, %c0_i32_0 : i32, i32
  }
  func.func @transform_8(%arg0: i32) -> (i32, i32) {
    %c0_i32 = arith.constant 0 : i32
    %c0_i32_0 = arith.constant 0 : i32
    %c0_i32_1 = arith.constant 0 : i32
    return %c0_i32, %c0_i32_0 : i32, i32
  }
  func.func @transform_9(%arg0: i32) -> (i32, i32) {
    %c0_i32 = arith.constant 0 : i32
    %c0_i32_0 = arith.constant 0 : i32
    %c0_i32_1 = arith.constant 0 : i32
    return %c0_i32, %c0_i32_0 : i32, i32
  }
  func.func @transform_10(%arg0: i32) -> (i32, i32, i32) {
    %c0_i32 = arith.constant 0 : i32
    %c0_i32_0 = arith.constant 0 : i32
    %c0_i32_1 = arith.constant 0 : i32
    return %arg0, %c0_i32, %c0_i32_0 : i32, i32, i32
  }
  func.func @transform_11(%arg0: i32) -> (i32, i32, i32) {
    %c0_i32 = arith.constant 0 : i32
    %c0_i32_0 = arith.constant 0 : i32
    %c0_i32_1 = arith.constant 0 : i32
    %c0_i32_2 = arith.constant 0 : i32
    return %c0_i32, %c0_i32_0, %c0_i32_1 : i32, i32, i32
  }
  func.func @transform_12(%arg0: i32) -> (i32, i32, i32) {
    %c0_i32 = arith.constant 0 : i32
    %c0_i32_0 = arith.constant 0 : i32
    %c0_i32_1 = arith.constant 0 : i32
    %c0_i32_2 = arith.constant 0 : i32
    return %c0_i32, %c0_i32_0, %c0_i32_1 : i32, i32, i32
  }
}

</mosaic_0001>

<llo_original>
// kernel: stack_att_core_steps.1
$region0: #{stack_att_core_steps.1}
  #allocation0 [shape = 'u32[]', space=smem, size = 0x4, offset = 0x4, fixed_abs, tag = 'smem constant byte address 0x4 - core index']
  #allocation1 [shape = 'u32[72,128]{1,0:T(1,128)}', space=vmem, size = 0x9000, scoped, tag = 'internal scratch']
  #allocation2 [shape = 'f32[3,8,128]{2,1,0:T(8,128)}', space=vmem, size = 0x3000, scoped, tag = 'scratch operand']
  #allocation3 [shape = 'f32[3,8,128]{2,1,0:T(8,128)}', space=vmem, size = 0x3000, scoped, tag = 'scratch operand']
  %s0 = inlined_call_operand.vmem [shape: bf16[4,8,128], index: 0, kind: input, shape index: {}]
  %s1 = inlined_call_operand.vmem [shape: bf16[8,128], index: 1, kind: input, shape index: {}]
  %s2 = inlined_call_operand.vmem [shape: bf16[8,16,128], index: 2, kind: input, shape index: {}]
  %s3 = inlined_call_operand.vmem [shape: bf16[8,16,128], index: 3, kind: input, shape index: {}]
  %s4 = inlined_call_operand.hbm [shape: f32[3,8,128], index: 4, kind: input, shape index: {}]
  %s5 = inlined_call_operand.hbm [shape: f32[3,8,128], index: 5, kind: input, shape index: {}]
  %s6 = inlined_call_operand.hbm [shape: bf16[1152,640], index: 6, kind: input, shape index: {}]
  %s7 = inlined_call_operand.hbm [shape: bf16[384,128], index: 7, kind: input, shape index: {}]
  %s8 = inlined_call_operand.hbm [shape: f32[3,640], index: 8, kind: input, shape index: {}]
  %s9 = inlined_call_operand.hbm [shape: f32[8,128], index: 9, kind: input, shape index: {}]
  %s10 = inlined_call_operand.hbm [shape: f32[4,8,128], index: 10, kind: output, shape index: {0}]
  %s11 = inlined_call_operand.hbm [shape: f32[3,8,128], index: 11, kind: output, shape index: {1}]
  %s12 = inlined_call_operand.hbm [shape: f32[3,8,128], index: 12, kind: output, shape index: {2}]
  %13 = xla_tuple %s10, %s11, %s12
  %s14 = sld [smem:[#allocation0]]
  $region121: #{stack_att_core_steps.1} parent=0
    _
  %s16 = ssub.s32 1, %s14
  %s17 = scalar_select 0, %s16, %s14
  $region1: #{stack_att_core_steps.1} parent=0
    #allocation4 [shape = 'u8[12288]{0}', space=vmem, size = 0x3000, scoped, tag = 'input window, operand 4, single buffered']
    #allocation5 [shape = 's32[2]{0}', space=sflag, size = 0x8, scoped, tag = 'scoped memory for stack_att_core_steps.1']
    #allocation6 [shape = 's32[2]{0}', space=sflag, size = 0x8, scoped, tag = 'scoped memory for stack_att_core_steps.1']
    #allocation7 [shape = 'u8[12288]{0}', space=vmem, size = 0x3000, scoped, tag = 'input window, operand 5, single buffered']
    #allocation8 [shape = 's32[1]{0}', space=sflag, size = 0x4, scoped, tag = 'scoped memory for stack_att_core_steps.1']
    #allocation9 [shape = 'u8[1474560]{0}', space=vmem, size = 0x168000, scoped, tag = 'input window, operand 6, single buffered']
    #allocation10 [shape = 'u8[98304]{0}', space=vmem, size = 0x18000, scoped, tag = 'input window, operand 7, single buffered']
    #allocation11 [shape = 's32[1]{0}', space=sflag, size = 0x4, scoped, tag = 'scoped memory for stack_att_core_steps.1']
    #allocation12 [shape = 'u8[10240]{0}', space=vmem, size = 0x2800, scoped, tag = 'input window, operand 8, single buffered']
    #allocation13 [shape = 'u8[4096]{0}', space=vmem, size = 0x1000, scoped, tag = 'input window, operand 9, single buffered']
    #allocation14 [shape = 's32[1]{0}', space=sflag, size = 0x4, scoped, tag = 'scoped memory for stack_att_core_steps.1']
    #allocation15 [shape = 'u8[8192]{0}', space=vmem, size = 0x2000, scoped, tag = 'output window, operand 0']
    #allocation16 [shape = 'u8[12288]{0}', space=vmem, size = 0x3000, scoped, tag = 'output window, operand 1, single buffered']
    #allocation17 [shape = 's32[1]{0}', space=sflag, size = 0x4, scoped, tag = 'scoped memory for stack_att_core_steps.1']
    #allocation18 [shape = 'u8[12288]{0}', space=vmem, size = 0x3000, scoped, tag = 'output window, operand 2, single buffered']
    %18 = vsyncpa [#allocation5], 0
    %19 = vsyncpa [#allocation8], 0
    %20 = vsyncpa [#allocation11], 0
    %21 = vsyncpa [#allocation14], 0
    %22 = vsyncpa [#allocation6], 0
    %s23 = scalar_lea.sflag [#allocation6], 1
    %24 = vsyncpa %s23, 0
    %25 = vsyncpa [#allocation17], 0
    loop: start=0, step=1, limit=6
    $region2: #{stack_att_core_steps.1} parent=1 // loop_pre_header
      _
    $region3: #{stack_att_core_steps.1} parent=1 // loop_header
      %s27 = sphi 0, %s31
      %p28 = scmp.ge.s32.totalorder %s27, 6
      %s37 = sphi 0, %s39
      %s40 = sphi 0, %s37
      %s41 = sphi 0, %s40
      %s57 = sphi 0, %s41
      %s61 = sphi 0, %s61
      %s63 = sphi 0, %s61
      %s64 = sphi 0, %s63
      %s78 = sphi 0, %s64
      %s82 = sphi 0, %s82
      %s84 = sphi 0, %s82
      %s85 = sphi 0, %s84
      %s99 = sphi 0, %s85
      %s103 = sphi 0, %s103
      %s105 = sphi 0, %s103
      %s106 = sphi 0, %s105
      %s120 = sphi 0, %s106
      %s124 = sphi 0, %s124
      %s126 = sphi 0, %s124
      %s127 = sphi 0, %s126
      %s141 = sphi 0, %s127
      %s145 = sphi 0, %s145
      %s147 = sphi 0, %s145
      %s148 = sphi 0, %s147
      %s162 = sphi 0, %s148
      %s166 = sphi 0, %s166
      %s168 = sphi 0, %s166
      %s169 = sphi 0, %s168
      %s183 = sphi 0, %s169
      %s187 = sphi 0, %s187
      %s189 = sphi 0, %s187
      %s190 = sphi 0, %s189
      %s204 = sphi 0, %s190
      %s208 = sphi 0, %s208
      %s210 = sphi 0, %s208
      %s211 = sphi 0, %s210
      %s225 = sphi 0, %s211
      %s229 = sphi 0, %s229
      %s231 = sphi 0, %s229
      %s232 = sphi 0, %s231
      %s246 = sphi 0, %s232
      %s252 = sphi 0, %s254
      %s255 = sphi 0, %s252
      %s256 = sphi 0, %s255
      %s272 = sphi 0, %s256
      %s276 = sphi 0, %s276
      %s278 = sphi 0, %s276
      %s279 = sphi 0, %s278
      %s293 = sphi 0, %s279
      %s297 = sphi 0, %s297
      %s299 = sphi 0, %s297
      %s300 = sphi 0, %s299
      %s314 = sphi 0, %s300
    $region4: #{stack_att_core_steps.1} parent=1 // loop_header_branch
      %30 = sbr.rel (%p28) target = $region8
    $region5: #{stack_att_core_steps.1} parent=1 // loop_body
      %s32 = ssub.s32 %s27, 1
      %s33 = ssub.s32 %s27, 2
      %s34 = sadd.s32 %s27, 1
      %s35 = ssub.s32 %s27, %s34
      %p36 = scmp.eq.s32.totalorder %s35, 0
      %s38 = sadd.s32 %s37, 1
      %s39 = scalar_select %p36, %s37, %s38
      %p42 = pneg %p36
      %p43 = scmp.eq.s32.totalorder %s27, 3
      %p44 = por %p42, %p43
      %p45 = scmp.ne.s32.totalorder %s37, %s40
      %p46 = scmp.eq.s32.totalorder %s27, 0
      %p47 = por %p45, %p46
      %p48 = scmp.ne.s32.totalorder %s37, %s40
      %p49 = scmp.eq.s32.totalorder %s32, 3
      %p50 = por %p48, %p49
      %p51 = scmp.ne.s32.totalorder %s40, %s41
      %p52 = scmp.eq.s32.totalorder %s32, 0
      %p53 = por %p51, %p52
      %p54 = scmp.ne.s32.totalorder %s40, %s41
      %p55 = scmp.eq.s32.totalorder %s33, 3
      %p56 = por %p54, %p55
      %p58 = scmp.ne.s32.totalorder %s41, %s57
      %p59 = scmp.eq.s32.totalorder %s33, 0
      %p60 = por %p58, %p59
      %s62 = sadd.s32 %s61, 1
      %p65 = scmp.eq.s32.totalorder %s27, 3
      %p66 = scmp.ne.s32.totalorder %s61, %s63
      %p67 = scmp.eq.s32.totalorder %s27, 0
      %p68 = por %p66, %p67
      %p69 = scmp.ne.s32.totalorder %s61, %s63
      %p70 = scmp.eq.s32.totalorder %s32, 3
      %p71 = por %p69, %p70
      %p72 = scmp.ne.s32.totalorder %s63, %s64
      %p73 = scmp.eq.s32.totalorder %s32, 0
      %p74 = por %p72, %p73
      %p75 = scmp.ne.s32.totalorder %s63, %s64
      %p76 = scmp.eq.s32.totalorder %s33, 3
      %p77 = por %p75, %p76
      %p79 = scmp.ne.s32.totalorder %s64, %s78
      %p80 = scmp.eq.s32.totalorder %s33, 0
      %p81 = por %p79, %p80
      %s83 = sadd.s32 %s82, 1
      %p86 = scmp.eq.s32.totalorder %s27, 3
      %p87 = scmp.ne.s32.totalorder %s82, %s84
      %p88 = scmp.eq.s32.totalorder %s27, 0
      %p89 = por %p87, %p88
      %p90 = scmp.ne.s32.totalorder %s82, %s84
      %p91 = scmp.eq.s32.totalorder %s32, 3
      %p92 = por %p90, %p91
      %p93 = scmp.ne.s32.totalorder %s84, %s85
      %p94 = scmp.eq.s32.totalorder %s32, 0
      %p95 = por %p93, %p94
      %p96 = scmp.ne.s32.totalorder %s84, %s85
      %p97 = scmp.eq.s32.totalorder %s33, 3
      %p98 = por %p96, %p97
      %p100 = scmp.ne.s32.totalorder %s85, %s99
      %p101 = scmp.eq.s32.totalorder %s33, 0
      %p102 = por %p100, %p101
      %s104 = sadd.s32 %s103, 1
      %p107 = scmp.eq.s32.totalorder %s27, 3
      %p108 = scmp.ne.s32.totalorder %s103, %s105
      %p109 = scmp.eq.s32.totalorder %s27, 0
      %p110 = por %p108, %p109
      %p111 = scmp.ne.s32.totalorder %s103, %s105
      %p112 = scmp.eq.s32.totalorder %s32, 3
      %p113 = por %p111, %p112
      %p114 = scmp.ne.s32.totalorder %s105, %s106
      %p115 = scmp.eq.s32.totalorder %s32, 0
      %p116 = por %p114, %p115
      %p117 = scmp.ne.s32.totalorder %s105, %s106
      %p118 = scmp.eq.s32.totalorder %s33, 3
      %p119 = por %p117, %p118
      %p121 = scmp.ne.s32.totalorder %s106, %s120
      %p122 = scmp.eq.s32.totalorder %s33, 0
      %p123 = por %p121, %p122
      %s125 = sadd.s32 %s124, 1
      %p128 = scmp.eq.s32.totalorder %s27, 3
      %p129 = scmp.ne.s32.totalorder %s124, %s126
      %p130 = scmp.eq.s32.totalorder %s27, 0
      %p131 = por %p129, %p130
      %p132 = scmp.ne.s32.totalorder %s124, %s126
      %p133 = scmp.eq.s32.totalorder %s32, 3
      %p134 = por %p132, %p133
      %p135 = scmp.ne.s32.totalorder %s126, %s127
      %p136 = scmp.eq.s32.totalorder %s32, 0
      %p137 = por %p135, %p136
      %p138 = scmp.ne.s32.totalorder %s126, %s127
      %p139 = scmp.eq.s32.totalorder %s33, 3
      %p140 = por %p138, %p139
      %p142 = scmp.ne.s32.totalorder %s127, %s141
      %p143 = scmp.eq.s32.totalorder %s33, 0
      %p144 = por %p142, %p143
      %s146 = sadd.s32 %s145, 1
      %p149 = scmp.eq.s32.totalorder %s27, 3
      %p150 = scmp.ne.s32.totalorder %s145, %s147
      %p151 = scmp.eq.s32.totalorder %s27, 0
      %p152 = por %p150, %p151
      %p153 = scmp.ne.s32.totalorder %s145, %s147
      %p154 = scmp.eq.s32.totalorder %s32, 3
      %p155 = por %p153, %p154
      %p156 = scmp.ne.s32.totalorder %s147, %s148
      %p157 = scmp.eq.s32.totalorder %s32, 0
      %p158 = por %p156, %p157
      %p159 = scmp.ne.s32.totalorder %s147, %s148
      %p160 = scmp.eq.s32.totalorder %s33, 3
      %p161 = por %p159, %p160
      %p163 = scmp.ne.s32.totalorder %s148, %s162
      %p164 = scmp.eq.s32.totalorder %s33, 0
      %p165 = por %p163, %p164
      %s167 = sadd.s32 %s166, 1
      %p170 = scmp.eq.s32.totalorder %s27, 3
      %p171 = scmp.ne.s32.totalorder %s166, %s168
      %p172 = scmp.eq.s32.totalorder %s27, 0
      %p173 = por %p171, %p172
      %p174 = scmp.ne.s32.totalorder %s166, %s168
      %p175 = scmp.eq.s32.totalorder %s32, 3
      %p176 = por %p174, %p175
      %p177 = scmp.ne.s32.totalorder %s168, %s169
      %p178 = scmp.eq.s32.totalorder %s32, 0
      %p179 = por %p177, %p178
      %p180 = scmp.ne.s32.totalorder %s168, %s169
      %p181 = scmp.eq.s32.totalorder %s33, 3
      %p182 = por %p180, %p181
      %p184 = scmp.ne.s32.totalorder %s169, %s183
      %p185 = scmp.eq.s32.totalorder %s33, 0
      %p186 = por %p184, %p185
      %s188 = sadd.s32 %s187, 1
      %p191 = scmp.eq.s32.totalorder %s27, 3
      %p192 = scmp.ne.s32.totalorder %s187, %s189
      %p193 = scmp.eq.s32.totalorder %s27, 0
      %p194 = por %p192, %p193
      %p195 = scmp.ne.s32.totalorder %s187, %s189
      %p196 = scmp.eq.s32.totalorder %s32, 3
      %p197 = por %p195, %p196
      %p198 = scmp.ne.s32.totalorder %s189, %s190
      %p199 = scmp.eq.s32.totalorder %s32, 0
      %p200 = por %p198, %p199
      %p201 = scmp.ne.s32.totalorder %s189, %s190
      %p202 = scmp.eq.s32.totalorder %s33, 3
      %p203 = por %p201, %p202
      %p205 = scmp.ne.s32.totalorder %s190, %s204
      %p206 = scmp.eq.s32.totalorder %s33, 0
      %p207 = por %p205, %p206
      %s209 = sadd.s32 %s208, 1
      %p212 = scmp.eq.s32.totalorder %s27, 3
      %p213 = scmp.ne.s32.totalorder %s208, %s210
      %p214 = scmp.eq.s32.totalorder %s27, 0
      %p215 = por %p213, %p214
      %p216 = scmp.ne.s32.totalorder %s208, %s210
      %p217 = scmp.eq.s32.totalorder %s32, 3
      %p218 = por %p216, %p217
      %p219 = scmp.ne.s32.totalorder %s210, %s211
      %p220 = scmp.eq.s32.totalorder %s32, 0
      %p221 = por %p219, %p220
      %p222 = scmp.ne.s32.totalorder %s210, %s211
      %p223 = scmp.eq.s32.totalorder %s33, 3
      %p224 = por %p222, %p223
      %p226 = scmp.ne.s32.totalorder %s211, %s225
      %p227 = scmp.eq.s32.totalorder %s33, 0
      %p228 = por %p226, %p227
      %s230 = sadd.s32 %s229, 1
      %p233 = scmp.eq.s32.totalorder %s27, 3
      %p234 = scmp.ne.s32.totalorder %s229, %s231
      %p235 = scmp.eq.s32.totalorder %s27, 0
      %p236 = por %p234, %p235
      %p237 = scmp.ne.s32.totalorder %s229, %s231
      %p238 = scmp.eq.s32.totalorder %s32, 3
      %p239 = por %p237, %p238
      %p240 = scmp.ne.s32.totalorder %s231, %s232
      %p241 = scmp.eq.s32.totalorder %s32, 0
      %p242 = por %p240, %p241
      %p243 = scmp.ne.s32.totalorder %s231, %s232
      %p244 = scmp.eq.s32.totalorder %s33, 3
      %p245 = por %p243, %p244
      %p247 = scmp.ne.s32.totalorder %s232, %s246
      %p248 = scmp.eq.s32.totalorder %s33, 0
      %p249 = por %p247, %p248
      %s250 = ssub.s32 %s27, %s34
      %p251 = scmp.eq.s32.totalorder %s250, 0
      %s253 = sadd.s32 %s252, 1
      %s254 = scalar_select %p251, %s252, %s253
      %p257 = pneg %p251
      %p258 = scmp.eq.s32.totalorder %s27, 3
      %p259 = por %p257, %p258
      %p260 = scmp.ne.s32.totalorder %s252, %s255
      %p261 = scmp.eq.s32.totalorder %s27, 0
      %p262 = por %p260, %p261
      %p263 = scmp.ne.s32.totalorder %s252, %s255
      %p264 = scmp.eq.s32.totalorder %s32, 3
      %p265 = por %p263, %p264
      %p266 = scmp.ne.s32.totalorder %s255, %s256
      %p267 = scmp.eq.s32.totalorder %s32, 0
      %p268 = por %p266, %p267
      %p269 = scmp.ne.s32.totalorder %s255, %s256
      %p270 = scmp.eq.s32.totalorder %s33, 3
      %p271 = por %p269, %p270
      %p273 = scmp.ne.s32.totalorder %s256, %s272
      %p274 = scmp.eq.s32.totalorder %s33, 0
      %p275 = por %p273, %p274
      %s277 = sadd.s32 %s276, 1
      %p280 = scmp.eq.s32.totalorder %s27, 3
      %p281 = scmp.ne.s32.totalorder %s276, %s278
      %p282 = scmp.eq.s32.totalorder %s27, 0
      %p283 = por %p281, %p282
      %p284 = scmp.ne.s32.totalorder %s276, %s278
      %p285 = scmp.eq.s32.totalorder %s32, 3
      %p286 = por %p284, %p285
      %p287 = scmp.ne.s32.totalorder %s278, %s279
      %p288 = scmp.eq.s32.totalorder %s32, 0
      %p289 = por %p287, %p288
      %p290 = scmp.ne.s32.totalorder %s278, %s279
      %p291 = scmp.eq.s32.totalorder %s33, 3
      %p292 = por %p290, %p291
      %p294 = scmp.ne.s32.totalorder %s279, %s293
      %p295 = scmp.eq.s32.totalorder %s33, 0
      %p296 = por %p294, %p295
      %s298 = sadd.s32 %s297, 1
      %p301 = scmp.eq.s32.totalorder %s27, 3
      %p302 = scmp.ne.s32.totalorder %s297, %s299
      %p303 = scmp.eq.s32.totalorder %s27, 0
      %p304 = por %p302, %p303
      %p305 = scmp.ne.s32.totalorder %s297, %s299
      %p306 = scmp.eq.s32.totalorder %s32, 3
      %p307 = por %p305, %p306
      %p308 = scmp.ne.s32.totalorder %s299, %s300
      %p309 = scmp.eq.s32.totalorder %s32, 0
      %p310 = por %p308, %p309
      %p311 = scmp.ne.s32.totalorder %s299, %s300
      %p312 = scmp.eq.s32.totalorder %s33, 3
      %p313 = por %p311, %p312
      %p315 = scmp.ne.s32.totalorder %s300, %s314
      %p316 = scmp.eq.s32.totalorder %s33, 0
      %p317 = por %p315, %p316
      %p318 = scmp.le.s32.totalorder 1, %s27
      %p319 = scmp.lt.s32.totalorder %s27, 5
      %p320 = pnand %p318, %p319
      %p321 = pneg %p320
      // Predicated region
      $region9: #{stack_att_core_steps.1} parent=5 // pred_check
        _
      $region10: #{stack_att_core_steps.1} parent=5 // pred_check_branch
        %323 = sbr.rel (%p320) target = $region12
      $region11: #{stack_att_core_steps.1} parent=5 // pred_region
        %s324 = ssub.s32 %s27, 1
        // Predicated region
        $region13: #{stack_att_core_steps.1} parent=11 // pred_check
          %p325 = pneg %p74
        $region14: #{stack_att_core_steps.1} parent=11 // pred_check_branch
          %327 = sbr.rel (%p325) target = $region16
        $region15: #{stack_att_core_steps.1} parent=11 // pred_region
          _
        $region16: #{stack_att_core_steps.1} parent=11 // pred_fallthru
          _
        // Predicated region
        $region17: #{stack_att_core_steps.1} parent=11 // pred_check
          %p328 = pneg %p95
        $region18: #{stack_att_core_steps.1} parent=11 // pred_check_branch
          %330 = sbr.rel (%p328) target = $region20
        $region19: #{stack_att_core_steps.1} parent=11 // pred_region
          _
        $region20: #{stack_att_core_steps.1} parent=11 // pred_fallthru
          _
        // Predicated region
        $region21: #{stack_att_core_steps.1} parent=11 // pred_check
          %p331 = pneg %p116
        $region22: #{stack_att_core_steps.1} parent=11 // pred_check_branch
          %333 = sbr.rel (%p331) target = $region24
        $region23: #{stack_att_core_steps.1} parent=11 // pred_region
          _
        $region24: #{stack_att_core_steps.1} parent=11 // pred_fallthru
          _
        // Predicated region
        $region25: #{stack_att_core_steps.1} parent=11 // pred_check
          %p334 = pneg %p137
        $region26: #{stack_att_core_steps.1} parent=11 // pred_check_branch
          %336 = sbr.rel (%p334) target = $region28
        $region27: #{stack_att_core_steps.1} parent=11 // pred_region
          %338 = vsyncadd [#allocation5], 0
          %s339 = sshll.u32 %s4, 4
          %s340 = int_to_ptr.hbm [resolvable:$true] %s339
          %s341 = sshll.u32 [#allocation4], 4
          %s342 = int_to_ptr.vmem [resolvable:$true] %s341
          %347 = dma.hbm_to_vmem [thread:$0]  %s340, 384, %s342, [#allocation5], 128, 128, 8
        $region28: #{stack_att_core_steps.1} parent=11 // pred_fallthru
          _
        // Predicated region
        $region29: #{stack_att_core_steps.1} parent=11 // pred_check
          %p348 = pneg %p158
        $region30: #{stack_att_core_steps.1} parent=11 // pred_check_branch
          %350 = sbr.rel (%p348) target = $region32
        $region31: #{stack_att_core_steps.1} parent=11 // pred_region
          %352 = vsyncadd [#allocation8], 0
          %s353 = sshll.u32 %s5, 4
          %s354 = int_to_ptr.hbm [resolvable:$true] %s353
          %s355 = sshll.u32 [#allocation7], 4
          %s356 = int_to_ptr.vmem [resolvable:$true] %s355
          %361 = dma.hbm_to_vmem [thread:$0]  %s354, 384, %s356, [#allocation8], 128, 128, 8
        $region32: #{stack_att_core_steps.1} parent=11 // pred_fallthru
          _
        // Predicated region
        $region33: #{stack_att_core_steps.1} parent=11 // pred_check
          %p362 = pneg %p179
        $region34: #{stack_att_core_steps.1} parent=11 // pred_check_branch
          %364 = sbr.rel (%p362) target = $region36
        $region35: #{stack_att_core_steps.1} parent=11 // pred_region
          %366 = vsyncadd [#allocation8], 0
          %s367 = sshll.u32 %s6, 4
          %s368 = int_to_ptr.hbm [resolvable:$true] %s367
          %s369 = sshll.u32 [#allocation9], 4
          %s370 = int_to_ptr.vmem [resolvable:$true] %s369
          %375 = dma.hbm_to_vmem [thread:$0]  %s368, 46080, %s370, [#allocation8], 320, 320, 20
        $region36: #{stack_att_core_steps.1} parent=11 // pred_fallthru
          _
        // Predicated region
        $region37: #{stack_att_core_steps.1} parent=11 // pred_check
          %p376 = pneg %p200
        $region38: #{stack_att_core_steps.1} parent=11 // pred_check_branch
          %378 = sbr.rel (%p376) target = $region40
        $region39: #{stack_att_core_steps.1} parent=11 // pred_region
          %380 = vsyncadd [#allocation11], 0
          %s381 = sshll.u32 %s7, 4
          %s382 = int_to_ptr.hbm [resolvable:$true] %s381
          %s383 = sshll.u32 [#allocation10], 4
          %s384 = int_to_ptr.vmem [resolvable:$true] %s383
          %389 = dma.hbm_to_vmem [thread:$0]  %s382, 3072, %s384, [#allocation11], 64, 64, 4
        $region40: #{stack_att_core_steps.1} parent=11 // pred_fallthru
          _
        // Predicated region
        $region41: #{stack_att_core_steps.1} parent=11 // pred_check
          %p390 = pneg %p221
        $region42: #{stack_att_core_steps.1} parent=11 // pred_check_branch
          %392 = sbr.rel (%p390) target = $region44
        $region43: #{stack_att_core_steps.1} parent=11 // pred_region
          %394 = vsyncadd [#allocation11], 0
          %s396 = sshll.u32 %s8, 4
          %s397 = int_to_ptr.hbm [resolvable:$true] %s396
          %s398 = sshll.u32 [#allocation12], 4
          %s399 = int_to_ptr.vmem [resolvable:$true] %s398
          %401 = dma.hbm_to_vmem [thread:$0]  %s397, 320, %s399, [#allocation11]
        $region44: #{stack_att_core_steps.1} parent=11 // pred_fallthru
          _
        // Predicated region
        $region45: #{stack_att_core_steps.1} parent=11 // pred_check
          %p402 = pneg %p242
        $region46: #{stack_att_core_steps.1} parent=11 // pred_check_branch
          %404 = sbr.rel (%p402) target = $region48
        $region47: #{stack_att_core_steps.1} parent=11 // pred_region
          %406 = vsyncadd [#allocation14], 0
          %s408 = sshll.u32 %s9, 4
          %s409 = int_to_ptr.hbm [resolvable:$true] %s408
          %s410 = sshll.u32 [#allocation13], 4
          %s411 = int_to_ptr.vmem [resolvable:$true] %s410
          %413 = dma.hbm_to_vmem [thread:$0]  %s409, 128, %s411, [#allocation14]
        $region48: #{stack_att_core_steps.1} parent=11 // pred_fallthru
          _
      $region12: #{stack_att_core_steps.1} parent=5 // pred_fallthru
        _
      %p414 = scmp.lt.s32.totalorder %s27, 4
      // Predicated region
      $region49: #{stack_att_core_steps.1} parent=5 // pred_check
        %p415 = pneg %p414
      $region50: #{stack_att_core_steps.1} parent=5 // pred_check_branch
        %417 = sbr.rel (%p415) target = $region52
      $region51: #{stack_att_core_steps.1} parent=5 // pred_region
        // Predicated region
        $region53: #{stack_att_core_steps.1} parent=51 // pred_check
          %p418 = pneg %p47
        $region54: #{stack_att_core_steps.1} parent=51 // pred_check_branch
          %420 = sbr.rel (%p418) target = $region56
        $region55: #{stack_att_core_steps.1} parent=51 // pred_region
          %p421 = scmp.lt.s32.totalorder %s27, 3
          %s422 = scalar_select %p421, %s27, 3
          %s423 = smul.addr %s422, 4
          %s424 = scalar_lea.vmem %s0, %s423
        $region56: #{stack_att_core_steps.1} parent=51 // pred_fallthru
          _
      $region52: #{stack_att_core_steps.1} parent=5 // pred_fallthru
        _
      %p425 = scmp.le.s32.totalorder 1, %s27
      %p426 = scmp.lt.s32.totalorder %s27, 5
      %p427 = pnand %p425, %p426
      %p428 = pneg %p427
      // Predicated region
      $region57: #{stack_att_core_steps.1} parent=5 // pred_check
        _
      $region58: #{stack_att_core_steps.1} parent=5 // pred_check_branch
        %430 = sbr.rel (%p427) target = $region60
      $region59: #{stack_att_core_steps.1} parent=5 // pred_region
        %s431 = ssub.s32 %s27, 1
        // Predicated region
        $region61: #{stack_att_core_steps.1} parent=59 // pred_check
          %p432 = pneg %p137
        $region62: #{stack_att_core_steps.1} parent=59 // pred_check_branch
          %434 = sbr.rel (%p432) target = $region64
        $region63: #{stack_att_core_steps.1} parent=59 // pred_region
          %436 = dma.done [#allocation5], 384
        $region64: #{stack_att_core_steps.1} parent=59 // pred_fallthru
          _
        // Predicated region
        $region65: #{stack_att_core_steps.1} parent=59 // pred_check
          %p437 = pneg %p158
        $region66: #{stack_att_core_steps.1} parent=59 // pred_check_branch
          %439 = sbr.rel (%p437) target = $region68
        $region67: #{stack_att_core_steps.1} parent=59 // pred_region
          %441 = dma.done [#allocation8], 384
        $region68: #{stack_att_core_steps.1} parent=59 // pred_fallthru
          _
        // Predicated region
        $region69: #{stack_att_core_steps.1} parent=59 // pred_check
          %p442 = pneg %p179
        $region70: #{stack_att_core_steps.1} parent=59 // pred_check_branch
          %444 = sbr.rel (%p442) target = $region72
        $region71: #{stack_att_core_steps.1} parent=59 // pred_region
          %446 = dma.done [#allocation8], 46080
        $region72: #{stack_att_core_steps.1} parent=59 // pred_fallthru
          _
        // Predicated region
        $region73: #{stack_att_core_steps.1} parent=59 // pred_check
          %p447 = pneg %p200
        $region74: #{stack_att_core_steps.1} parent=59 // pred_check_branch
          %449 = sbr.rel (%p447) target = $region76
        $region75: #{stack_att_core_steps.1} parent=59 // pred_region
          %451 = dma.done [#allocation11], 3072
        $region76: #{stack_att_core_steps.1} parent=59 // pred_fallthru
          _
        // Predicated region
        $region77: #{stack_att_core_steps.1} parent=59 // pred_check
          %p452 = pneg %p221
        $region78: #{stack_att_core_steps.1} parent=59 // pred_check_branch
          %454 = sbr.rel (%p452) target = $region80
        $region79: #{stack_att_core_steps.1} parent=59 // pred_region
          %456 = dma.done [#allocation11], 320
        $region80: #{stack_att_core_steps.1} parent=59 // pred_fallthru
          _
        // Predicated region
        $region81: #{stack_att_core_steps.1} parent=59 // pred_check
          %p457 = pneg %p242
        $region82: #{stack_att_core_steps.1} parent=59 // pred_check_branch
          %459 = sbr.rel (%p457) target = $region84
        $region83: #{stack_att_core_steps.1} parent=59 // pred_region
          %461 = dma.done [#allocation14], 128
        $region84: #{stack_att_core_steps.1} parent=59 // pred_fallthru
          _
        %p462 = scmp.lt.s32.totalorder %s32, 3
        %s463 = scalar_select %p462, %s32, 3
        %s464 = smul.addr %s463, 4
        %s465 = scalar_lea.vmem %s0, %s464
        %p466 = pneg %p53
        %p467 = pneg %p50
        %p468 = pneg %p74
        %p469 = pneg %p71
        %p470 = pneg %p95
        %p471 = pneg %p92
        %p472 = pneg %p116
        %p473 = pneg %p113
        %p474 = pneg %p137
        %p475 = pneg %p134
        %p476 = pneg %p158
        %p477 = pneg %p155
        %p478 = pneg %p179
        %p479 = pneg %p176
        %p480 = pneg %p200
        %p481 = pneg %p197
        %p482 = pneg %p221
        %p483 = pneg %p218
        %p484 = pneg %p242
        %p485 = pneg %p239
        %p486 = pneg %p268
        %p487 = pneg %p265
        %s488 = sand.u32 %s255, 1
        %s489 = scalar_lea.sflag [#allocation6], %s488
        %s490 = sand.u32 %s255, 1
        %s491 = smul.addr %s490, 8
        %s492 = scalar_lea.vmem [#allocation15], %s491
        %p493 = pneg %p289
        %p494 = pneg %p286
        %p495 = pneg %p310
        %p496 = pneg %p307
        %p497 = scmp.lt.s32.totalorder %s32, 3
        %s498 = scalar_select %p497, %s32, 3
        %s499 = smul.addr %s498, 4
        %s500 = scalar_lea.vmem %s0, %s499
        %p501 = scmp.eq.s32.totalorder %s32, 0
        // Predicated region
        $region85: #{stack_att_core_steps.1} parent=59 // pred_check
          %p502 = pneg %p501
        $region86: #{stack_att_core_steps.1} parent=59 // pred_check_branch
          %504 = sbr.rel (%p502) target = $region88
        $region87: #{stack_att_core_steps.1} parent=59 // pred_region
          %v505 = vld [vmem:[#allocation4] sm:$0xff]
          %v506 = vld [vmem:[#allocation4 + $0x8] sm:$0xff]
          %v507 = vld [vmem:[#allocation4 + $0x10] sm:$0xff]
          %508 = vst [vmem:[#allocation2] sm:$0xff] %v505
          %509 = vst [vmem:[#allocation2 + $0x8] sm:$0xff] %v506
          %510 = vst [vmem:[#allocation2 + $0x10] sm:$0xff] %v507
          %v511 = vld [vmem:[#allocation7] sm:$0xff]
          %v512 = vld [vmem:[#allocation7 + $0x8] sm:$0xff]
          %v513 = vld [vmem:[#allocation7 + $0x10] sm:$0xff]
          %514 = vst [vmem:[#allocation3] sm:$0xff] %v511
          %515 = vst [vmem:[#allocation3 + $0x8] sm:$0xff] %v512
          %516 = vst [vmem:[#allocation3 + $0x10] sm:$0xff] %v513
        $region88: #{stack_att_core_steps.1} parent=59 // pred_fallthru
          _
        %v517 = vld [vmem:[%s500] sm:$0xf]
        %v518 = vld [vmem:[%s1] sm:$0xf]
        %v519 = vld [vmem:[%s2] sm:$0xf]
        %v520 = vld [vmem:[%s2 + $0x4] sm:$0xf]
        %v521 = vld [vmem:[%s2 + $0x8] sm:$0xf]
        %v522 = vld [vmem:[%s2 + $0xc] sm:$0xf]
        %v523 = vld [vmem:[%s2 + $0x10] sm:$0xf]
        %v524 = vld [vmem:[%s2 + $0x14] sm:$0xf]
        %v525 = vld [vmem:[%s2 + $0x18] sm:$0xf]
        %v526 = vld [vmem:[%s2 + $0x1c] sm:$0xf]
        %v527 = vld [vmem:[%s2 + $0x20] sm:$0xf]
        %v528 = vld [vmem:[%s2 + $0x24] sm:$0xf]
        %v529 = vld [vmem:[%s2 + $0x28] sm:$0xf]
        %v530 = vld [vmem:[%s2 + $0x2c] sm:$0xf]
        %v531 = vld [vmem:[%s2 + $0x30] sm:$0xf]
        %v532 = vld [vmem:[%s2 + $0x34] sm:$0xf]
        %v533 = vld [vmem:[%s2 + $0x38] sm:$0xf]
        %v534 = vld [vmem:[%s2 + $0x3c] sm:$0xf]
        %v535 = vld [vmem:[%s3] sm:$0xf]
        %v536 = vld [vmem:[%s3 + $0x4] sm:$0xf]
        %v537 = vld [vmem:[%s3 + $0x8] sm:$0xf]
        %v538 = vld [vmem:[%s3 + $0xc] sm:$0xf]
        %v539 = vld [vmem:[%s3 + $0x10] sm:$0xf]
        %v540 = vld [vmem:[%s3 + $0x14] sm:$0xf]
        %v541 = vld [vmem:[%s3 + $0x18] sm:$0xf]
        %v542 = vld [vmem:[%s3 + $0x1c] sm:$0xf]
        %v543 = vld [vmem:[%s3 + $0x20] sm:$0xf]
        %v544 = vld [vmem:[%s3 + $0x24] sm:$0xf]
        %v545 = vld [vmem:[%s3 + $0x28] sm:$0xf]
        %v546 = vld [vmem:[%s3 + $0x2c] sm:$0xf]
        %v547 = vld [vmem:[%s3 + $0x30] sm:$0xf]
        %v548 = vld [vmem:[%s3 + $0x34] sm:$0xf]
        %v549 = vld [vmem:[%s3 + $0x38] sm:$0xf]
        %v550 = vld [vmem:[%s3 + $0x3c] sm:$0xf]
        %v551 = vunpack.c.l.bf16 %v535
        %v552 = vunpack.c.l.bf16 %v536
        %v553 = vunpack.c.l.bf16 %v537
        %v554 = vunpack.c.l.bf16 %v538
        %v555 = vunpack.c.l.bf16 %v539
        %v556 = vunpack.c.l.bf16 %v540
        %v557 = vunpack.c.l.bf16 %v541
        %v558 = vunpack.c.l.bf16 %v542
        %v559 = vunpack.c.l.bf16 %v543
        %v560 = vunpack.c.l.bf16 %v544
        %v561 = vunpack.c.l.bf16 %v545
        %v562 = vunpack.c.l.bf16 %v546
        %v563 = vunpack.c.l.bf16 %v547
        %v564 = vunpack.c.l.bf16 %v548
        %v565 = vunpack.c.l.bf16 %v549
        %v566 = vunpack.c.l.bf16 %v550
        %v567 = vld [vmem:[#allocation2] sm:$0xff]
        %v568 = vld [vmem:[#allocation2 + $0x8] sm:$0xff]
        %v569 = vld [vmem:[#allocation2 + $0x10] sm:$0xff]
        %v570 = vld [vmem:[#allocation3] sm:$0xff]
        %v571 = vld [vmem:[#allocation3 + $0x8] sm:$0xff]
        %v572 = vld [vmem:[#allocation3 + $0x10] sm:$0xff]
        %v573 = vld [vmem:[#allocation9] sm:$0xff]
        %v574 = vld [vmem:[#allocation9 + $0x8] sm:$0xff]
        %v575 = vld [vmem:[#allocation9 + $0x10] sm:$0xf]
        %v576 = vld [vmem:[#allocation9 + $0x14] sm:$0xff]
        %v577 = vld [vmem:[#allocation9 + $0x1c] sm:$0xff]
        %v578 = vld [vmem:[#allocation9 + $0x24] sm:$0xf]
        %v579 = vld [vmem:[#allocation9 + $0x28] sm:$0xff]
        %v580 = vld [vmem:[#allocation9 + $0x30] sm:$0xff]
        %v581 = vld [vmem:[#allocation9 + $0x38] sm:$0xf]
        %v582 = vld [vmem:[#allocation9 + $0x3c] sm:$0xff]
        %v583 = vld [vmem:[#allocation9 + $0x44] sm:$0xff]
        %v584 = vld [vmem:[#allocation9 + $0x4c] sm:$0xf]
        %v585 = vld [vmem:[#allocation9 + $0x50] sm:$0xff]
        %v586 = vld [vmem:[#allocation9 + $0x58] sm:$0xff]
        %v587 = vld [vmem:[#allocation9 + $0x60] sm:$0xf]
        %v588 = vld [vmem:[#allocation9 + $0x64] sm:$0xff]
        %v589 = vld [vmem:[#allocation9 + $0x6c] sm:$0xff]
        %v590 = vld [vmem:[#allocation9 + $0x74] sm:$0xf]
        %v591 = vld [vmem:[#allocation9 + $0x78] sm:$0xff]
        %v592 = vld [vmem:[#allocation9 + $0x80] sm:$0xff]
        %v593 = vld [vmem:[#allocation9 + $0x88] sm:$0xf]
        %v594 = vld [vmem:[#allocation9 + $0x8c] sm:$0xff]
        %v595 = vld [vmem:[#allocation9 + $0x94] sm:$0xff]
        %v596 = vld [vmem:[#allocation9 + $0x9c] sm:$0xf]
        %v597 = vld [vmem:[#allocation9 + $0xa0] sm:$0xff]
        %v598 = vld [vmem:[#allocation9 + $0xa8] sm:$0xff]
        %v599 = vld [vmem:[#allocation9 + $0xb0] sm:$0xf]
        %v600 = vld [vmem:[#allocation9 + $0xb4] sm:$0xff]
        %v601 = vld [vmem:[#allocation9 + $0xbc] sm:$0xff]
        %v602 = vld [vmem:[#allocation9 + $0xc4] sm:$0xf]
        %v603 = vld [vmem:[#allocation9 + $0xc8] sm:$0xff]
        %v604 = vld [vmem:[#allocation9 + $0xd0] sm:$0xff]
        %v605 = vld [vmem:[#allocation9 + $0xd8] sm:$0xf]
        %v606 = vld [vmem:[#allocation9 + $0xdc] sm:$0xff]
        %v607 = vld [vmem:[#allocation9 + $0xe4] sm:$0xff]
        %v608 = vld [vmem:[#allocation9 + $0xec] sm:$0xf]
        %v609 = vld [vmem:[#allocation9 + $0xf0] sm:$0xff]
        %v610 = vld [vmem:[#allocation9 + $0xf8] sm:$0xff]
        %v611 = vld [vmem:[#allocation9 + $0x100] sm:$0xf]
        %v612 = vld [vmem:[#allocation9 + $0x104] sm:$0xff]
        %v613 = vld [vmem:[#allocation9 + $0x10c] sm:$0xff]
        %v614 = vld [vmem:[#allocation9 + $0x114] sm:$0xf]
        %v615 = vld [vmem:[#allocation9 + $0x118] sm:$0xff]
        %v616 = vld [vmem:[#allocation9 + $0x120] sm:$0xff]
        %v617 = vld [vmem:[#allocation9 + $0x128] sm:$0xf]
        %v618 = vld [vmem:[#allocation9 + $0x12c] sm:$0xff]
        %v619 = vld [vmem:[#allocation9 + $0x134] sm:$0xff]
        %v620 = vld [vmem:[#allocation9 + $0x13c] sm:$0xf]
        %v621 = vld [vmem:[#allocation9 + $0x140] sm:$0xff]
        %v622 = vld [vmem:[#allocation9 + $0x148] sm:$0xff]
        %v623 = vld [vmem:[#allocation9 + $0x150] sm:$0xf]
        %v624 = vld [vmem:[#allocation9 + $0x154] sm:$0xff]
        %v625 = vld [vmem:[#allocation9 + $0x15c] sm:$0xff]
        %v626 = vld [vmem:[#allocation9 + $0x164] sm:$0xf]
        %v627 = vld [vmem:[#allocation9 + $0x168] sm:$0xff]
        %v628 = vld [vmem:[#allocation9 + $0x170] sm:$0xff]
        %v629 = vld [vmem:[#allocation9 + $0x178] sm:$0xf]
        %v630 = vld [vmem:[#allocation9 + $0x17c] sm:$0xff]
        %v631 = vld [vmem:[#allocation9 + $0x184] sm:$0xff]
        %v632 = vld [vmem:[#allocation9 + $0x18c] sm:$0xf]
        %v633 = vld [vmem:[#allocation9 + $0x190] sm:$0xff]
        %v634 = vld [vmem:[#allocation9 + $0x198] sm:$0xff]
        %v635 = vld [vmem:[#allocation9 + $0x1a0] sm:$0xf]
        %v636 = vld [vmem:[#allocation9 + $0x1a4] sm:$0xff]
        %v637 = vld [vmem:[#allocation9 + $0x1ac] sm:$0xff]
        %v638 = vld [vmem:[#allocation9 + $0x1b4] sm:$0xf]
        %v639 = vld [vmem:[#allocation9 + $0x1b8] sm:$0xff]
        %v640 = vld [vmem:[#allocation9 + $0x1c0] sm:$0xff]
        %v641 = vld [vmem:[#allocation9 + $0x1c8] sm:$0xf]
        %v642 = vld [vmem:[#allocation9 + $0x1cc] sm:$0xff]
        %v643 = vld [vmem:[#allocation9 + $0x1d4] sm:$0xff]
        %v644 = vld [vmem:[#allocation9 + $0x1dc] sm:$0xf]
        %v645 = vld [vmem:[#allocation9 + $0x1e0] sm:$0xff]
        %v646 = vld [vmem:[#allocation9 + $0x1e8] sm:$0xff]
        %v647 = vld [vmem:[#allocation9 + $0x1f0] sm:$0xf]
        %v648 = vld [vmem:[#allocation9 + $0x1f4] sm:$0xff]
        %v649 = vld [vmem:[#allocation9 + $0x1fc] sm:$0xff]
        %v650 = vld [vmem:[#allocation9 + $0x204] sm:$0xf]
        %v651 = vld [vmem:[#allocation9 + $0x208] sm:$0xff]
        %v652 = vld [vmem:[#allocation9 + $0x210] sm:$0xff]
        %v653 = vld [vmem:[#allocation9 + $0x218] sm:$0xf]
        %v654 = vld [vmem:[#allocation9 + $0x21c] sm:$0xff]
        %v655 = vld [vmem:[#allocation9 + $0x224] sm:$0xff]
        %v656 = vld [vmem:[#allocation9 + $0x22c] sm:$0xf]
        %v657 = vld [vmem:[#allocation9 + $0x230] sm:$0xff]
        %v658 = vld [vmem:[#allocation9 + $0x238] sm:$0xff]
        %v659 = vld [vmem:[#allocation9 + $0x240] sm:$0xf]
        %v660 = vld [vmem:[#allocation9 + $0x244] sm:$0xff]
        %v661 = vld [vmem:[#allocation9 + $0x24c] sm:$0xff]
        %v662 = vld [vmem:[#allocation9 + $0x254] sm:$0xf]
        %v663 = vld [vmem:[#allocation9 + $0x258] sm:$0xff]
        %v664 = vld [vmem:[#allocation9 + $0x260] sm:$0xff]
        %v665 = vld [vmem:[#allocation9 + $0x268] sm:$0xf]
        %v666 = vld [vmem:[#allocation9 + $0x26c] sm:$0xff]
        %v667 = vld [vmem:[#allocation9 + $0x274] sm:$0xff]
        %v668 = vld [vmem:[#allocation9 + $0x27c] sm:$0xf]
        %v669 = vld [vmem:[#allocation9 + $0x280] sm:$0xff]
        %v670 = vld [vmem:[#allocation9 + $0x288] sm:$0xff]
        %v671 = vld [vmem:[#allocation9 + $0x290] sm:$0xf]
        %v672 = vld [vmem:[#allocation9 + $0x294] sm:$0xff]
        %v673 = vld [vmem:[#allocation9 + $0x29c] sm:$0xff]
        %v674 = vld [vmem:[#allocation9 + $0x2a4] sm:$0xf]
        %v675 = vld [vmem:[#allocation9 + $0x2a8] sm:$0xff]
        %v676 = vld [vmem:[#allocation9 + $0x2b0] sm:$0xff]
        %v677 = vld [vmem:[#allocation9 + $0x2b8] sm:$0xf]
        %v678 = vld [vmem:[#allocation9 + $0x2bc] sm:$0xff]
        %v679 = vld [vmem:[#allocation9 + $0x2c4] sm:$0xff]
        %v680 = vld [vmem:[#allocation9 + $0x2cc] sm:$0xf]
        %v681 = vld [vmem:[#allocation9 + $0x2d0] sm:$0xff]
        %v682 = vld [vmem:[#allocation9 + $0x2d8] sm:$0xff]
        %v683 = vld [vmem:[#allocation9 + $0x2e0] sm:$0xf]
        %v684 = vld [vmem:[#allocation9 + $0x2e4] sm:$0xff]
        %v685 = vld [vmem:[#allocation9 + $0x2ec] sm:$0xff]
        %v686 = vld [vmem:[#allocation9 + $0x2f4] sm:$0xf]
        %v687 = vld [vmem:[#allocation9 + $0x2f8] sm:$0xff]
        %v688 = vld [vmem:[#allocation9 + $0x300] sm:$0xff]
        %v689 = vld [vmem:[#allocation9 + $0x308] sm:$0xf]
        %v690 = vld [vmem:[#allocation9 + $0x30c] sm:$0xff]
        %v691 = vld [vmem:[#allocation9 + $0x314] sm:$0xff]
        %v692 = vld [vmem:[#allocation9 + $0x31c] sm:$0xf]
        %v693 = vld [vmem:[#allocation9 + $0x320] sm:$0xff]
        %v694 = vld [vmem:[#allocation9 + $0x328] sm:$0xff]
        %v695 = vld [vmem:[#allocation9 + $0x330] sm:$0xf]
        %v696 = vld [vmem:[#allocation9 + $0x334] sm:$0xff]
        %v697 = vld [vmem:[#allocation9 + $0x33c] sm:$0xff]
        %v698 = vld [vmem:[#allocation9 + $0x344] sm:$0xf]
        %v699 = vld [vmem:[#allocation9 + $0x348] sm:$0xff]
        %v700 = vld [vmem:[#allocation9 + $0x350] sm:$0xff]
        %v701 = vld [vmem:[#allocation9 + $0x358] sm:$0xf]
        %v702 = vld [vmem:[#allocation9 + $0x35c] sm:$0xff]
        %v703 = vld [vmem:[#allocation9 + $0x364] sm:$0xff]
        %v704 = vld [vmem:[#allocation9 + $0x36c] sm:$0xf]
        %v705 = vld [vmem:[#allocation9 + $0x370] sm:$0xff]
        %v706 = vld [vmem:[#allocation9 + $0x378] sm:$0xff]
        %v707 = vld [vmem:[#allocation9 + $0x380] sm:$0xf]
        %v708 = vld [vmem:[#allocation9 + $0x384] sm:$0xff]
        %v709 = vld [vmem:[#allocation9 + $0x38c] sm:$0xff]
        %v710 = vld [vmem:[#allocation9 + $0x394] sm:$0xf]
        %v711 = vld [vmem:[#allocation9 + $0x398] sm:$0xff]
        %v712 = vld [vmem:[#allocation9 + $0x3a0] sm:$0xff]
        %v713 = vld [vmem:[#allocation9 + $0x3a8] sm:$0xf]
        %v714 = vld [vmem:[#allocation9 + $0x3ac] sm:$0xff]
        %v715 = vld [vmem:[#allocation9 + $0x3b4] sm:$0xff]
        %v716 = vld [vmem:[#allocation9 + $0x3bc] sm:$0xf]
        %v717 = vld [vmem:[#allocation12] ss:$4 sm:$0x1f]
        %v718 = vpack.c.bf16 %v567, %v567
        %v767 = vunpack.c.l.b16 %v669
        %v768 = vunpack.c.h.b16 %v669
        %v769 = vunpack.c.l.b16 %v670
        %v770 = vunpack.c.h.b16 %v670
        %v771 = vunpack.c.l.b16 %v671
        %v772 = vunpack.c.l.b16 %v672
        %v773 = vunpack.c.h.b16 %v672
        %v774 = vunpack.c.l.b16 %v673
        %v775 = vunpack.c.h.b16 %v673
        %v776 = vunpack.c.l.b16 %v674
        %v777 = vunpack.c.l.b16 %v675
        %v778 = vunpack.c.h.b16 %v675
        %v779 = vunpack.c.l.b16 %v676
        %v780 = vunpack.c.h.b16 %v676
        %v781 = vunpack.c.l.b16 %v677
        %v782 = vunpack.c.l.b16 %v678
        %v783 = vunpack.c.h.b16 %v678
        %v784 = vunpack.c.l.b16 %v679
        %v785 = vunpack.c.h.b16 %v679
        %v786 = vunpack.c.l.b16 %v680
        %v787 = vunpack.c.l.b16 %v681
        %v788 = vunpack.c.h.b16 %v681
        %v789 = vunpack.c.l.b16 %v682
        %v790 = vunpack.c.h.b16 %v682
        %v791 = vunpack.c.l.b16 %v683
        %v792 = vunpack.c.l.b16 %v684
        %v793 = vunpack.c.h.b16 %v684
        %v794 = vunpack.c.l.b16 %v685
        %v795 = vunpack.c.h.b16 %v685
        %v796 = vunpack.c.l.b16 %v686
        %v797 = vunpack.c.l.b16 %v687
        %v798 = vunpack.c.h.b16 %v687
        %v799 = vunpack.c.l.b16 %v688
        %v800 = vunpack.c.h.b16 %v688
        %v801 = vunpack.c.l.b16 %v689
        %v802 = vunpack.c.l.b16 %v690
        %v803 = vunpack.c.h.b16 %v690
        %v804 = vunpack.c.l.b16 %v691
        %v805 = vunpack.c.h.b16 %v691
        %v806 = vunpack.c.l.b16 %v692
        %v807 = vunpack.c.l.b16 %v693
        %v808 = vunpack.c.h.b16 %v693
        %v809 = vunpack.c.l.b16 %v694
        %v810 = vunpack.c.h.b16 %v694
        %v811 = vunpack.c.l.b16 %v695
        %v812 = vunpack.c.l.b16 %v696
        %v813 = vunpack.c.h.b16 %v696
        %v814 = vunpack.c.l.b16 %v697
        %v815 = vunpack.c.h.b16 %v697
        %v816 = vunpack.c.l.b16 %v698
        %v817 = vunpack.c.l.b16 %v699
        %v818 = vunpack.c.h.b16 %v699
        %v819 = vunpack.c.l.b16 %v700
        %v820 = vunpack.c.h.b16 %v700
        %v821 = vunpack.c.l.b16 %v701
        %v822 = vunpack.c.l.b16 %v702
        %v823 = vunpack.c.h.b16 %v702
        %v824 = vunpack.c.l.b16 %v703
        %v825 = vunpack.c.h.b16 %v703
        %v826 = vunpack.c.l.b16 %v704
        %v827 = vunpack.c.l.b16 %v705
        %v828 = vunpack.c.h.b16 %v705
        %v829 = vunpack.c.l.b16 %v706
        %v830 = vunpack.c.h.b16 %v706
        %v831 = vunpack.c.l.b16 %v707
        %v832 = vunpack.c.l.b16 %v708
        %v833 = vunpack.c.h.b16 %v708
        %v834 = vunpack.c.l.b16 %v709
        %v835 = vunpack.c.h.b16 %v709
        %v836 = vunpack.c.l.b16 %v710
        %v837 = vunpack.c.l.b16 %v711
        %v838 = vunpack.c.h.b16 %v711
        %v839 = vunpack.c.l.b16 %v712
        %v840 = vunpack.c.h.b16 %v712
        %v841 = vunpack.c.l.b16 %v713
        %v842 = vunpack.c.l.b16 %v714
        %v843 = vunpack.c.h.b16 %v714
        %v844 = vunpack.c.l.b16 %v715
        %v845 = vunpack.c.h.b16 %v715
        %v846 = vunpack.c.l.b16 %v716
        %v847 = vpack.c.b16 %v772, %v767
        %v848 = vpack.c.b16 %v773, %v768
        %v849 = vpack.c.b16 %v774, %v769
        %v850 = vpack.c.b16 %v775, %v770
        %v851 = vpack.c.b16 %v776, %v771
        %v852 = vpack.c.b16 %v782, %v777
        %v853 = vpack.c.b16 %v783, %v778
        %v854 = vpack.c.b16 %v784, %v779
        %v855 = vpack.c.b16 %v785, %v780
        %v856 = vpack.c.b16 %v786, %v781
        %v857 = vpack.c.b16 %v792, %v787
        %v858 = vpack.c.b16 %v793, %v788
        %v859 = vpack.c.b16 %v794, %v789
        %v860 = vpack.c.b16 %v795, %v790
        %v861 = vpack.c.b16 %v796, %v791
        %v862 = vpack.c.b16 %v802, %v797
        %v863 = vpack.c.b16 %v803, %v798
        %v864 = vpack.c.b16 %v804, %v799
        %v865 = vpack.c.b16 %v805, %v800
        %v866 = vpack.c.b16 %v806, %v801
        %v867 = vpack.c.b16 %v812, %v807
        %v868 = vpack.c.b16 %v813, %v808
        %v869 = vpack.c.b16 %v814, %v809
        %v870 = vpack.c.b16 %v815, %v810
        %v871 = vpack.c.b16 %v816, %v811
        %v872 = vpack.c.b16 %v822, %v817
        %v873 = vpack.c.b16 %v823, %v818
        %v874 = vpack.c.b16 %v824, %v819
        %v875 = vpack.c.b16 %v825, %v820
        %v876 = vpack.c.b16 %v826, %v821
        %v877 = vpack.c.b16 %v832, %v827
        %v878 = vpack.c.b16 %v833, %v828
        %v879 = vpack.c.b16 %v834, %v829
        %v880 = vpack.c.b16 %v835, %v830
        %v881 = vpack.c.b16 %v836, %v831
        %v882 = vpack.c.b16 %v842, %v837
        %v883 = vpack.c.b16 %v843, %v838
        %v884 = vpack.c.b16 %v844, %v839
        %v885 = vpack.c.b16 %v845, %v840
        %v886 = vpack.c.b16 %v846, %v841
        %927 = vmatpush.bf16.msra.mxu0 %v882
        %928 = vmatpush.bf16.msra.mxu0 %v877
        %929 = vmatpush.bf16.msra.mxu0 %v872
        %930 = vmatpush.bf16.msra.mxu0 %v867
        %931 = vmatpush.bf16.msra.mxu0 %v862
        %932 = vmatpush.bf16.msra.mxu0 %v857
        %933 = vmatpush.bf16.msra.mxu0 %v852
        %934 = vmatpush.bf16.msra.mxu0 %v847
        %935 = vmatmul.bf16.gmra.mxu0 %v718
        %v936 = vpop.f32.mrf.mxu0
        %v937 = vadd.f32 0.0, %v936
        %v938 = vpop.f32.mrf.mxu0
        %939 = vdwg.mxu0
        %940 = vmatpush.bf16.msra.mxu0 %v883
        %941 = vmatpush.bf16.msra.mxu0 %v878
        %942 = vmatpush.bf16.msra.mxu0 %v873
        %943 = vmatpush.bf16.msra.mxu0 %v868
        %944 = vmatpush.bf16.msra.mxu0 %v863
        %945 = vmatpush.bf16.msra.mxu0 %v858
        %946 = vmatpush.bf16.msra.mxu0 %v853
        %947 = vmatpush.bf16.msra.mxu0 %v848
        %948 = vmatmul.bf16.gmra.mxu0 %v718
        %v949 = vpop.f32.mrf.mxu0
        %v950 = vadd.f32 0.0, %v949
        %v951 = vpop.f32.mrf.mxu0
        %952 = vdwg.mxu0
        %953 = vmatpush.bf16.msra.mxu0 %v884
        %954 = vmatpush.bf16.msra.mxu0 %v879
        %955 = vmatpush.bf16.msra.mxu0 %v874
        %956 = vmatpush.bf16.msra.mxu0 %v869
        %957 = vmatpush.bf16.msra.mxu0 %v864
        %958 = vmatpush.bf16.msra.mxu0 %v859
        %959 = vmatpush.bf16.msra.mxu0 %v854
        %960 = vmatpush.bf16.msra.mxu0 %v849
        %961 = vmatmul.bf16.gmra.mxu0 %v718
        %v962 = vpop.f32.mrf.mxu0
        %v963 = vadd.f32 0.0, %v962
        %v964 = vpop.f32.mrf.mxu0
        %965 = vdwg.mxu0
        %966 = vmatpush.bf16.msra.mxu0 %v885
        %967 = vmatpush.bf16.msra.mxu0 %v880
        %968 = vmatpush.bf16.msra.mxu0 %v875
        %969 = vmatpush.bf16.msra.mxu0 %v870
        %970 = vmatpush.bf16.msra.mxu0 %v865
        %971 = vmatpush.bf16.msra.mxu0 %v860
        %972 = vmatpush.bf16.msra.mxu0 %v855
        %973 = vmatpush.bf16.msra.mxu0 %v850
        %974 = vmatmul.bf16.gmra.mxu0 %v718
        %v975 = vpop.f32.mrf.mxu0
        %v976 = vadd.f32 0.0, %v975
        %v977 = vpop.f32.mrf.mxu0
        %978 = vdwg.mxu0
        %979 = vmatpush.bf16.msra.mxu0 %v886
        %980 = vmatpush.bf16.msra.mxu0 %v881
        %981 = vmatpush.bf16.msra.mxu0 %v876
        %982 = vmatpush.bf16.msra.mxu0 %v871
        %983 = vmatpush.bf16.msra.mxu0 %v866
        %984 = vmatpush.bf16.msra.mxu0 %v861
        %985 = vmatpush.bf16.msra.mxu0 %v856
        %986 = vmatpush.bf16.msra.mxu0 %v851
        %987 = vmatmul.bf16.gmra.mxu0 %v718
        %v988 = vpop.f32.mrf.mxu0
        %v989 = vadd.f32 0.0, %v988
        %v990 = vpop.f32.mrf.mxu0
        %991 = vdwg.mxu0
        %v993 = vperm.slane %v717, 0
        %v994 = vperm.slane %v717, 1
        %v995 = vperm.slane %v717, 2
        %v996 = vperm.slane %v717, 3
        %v997 = vperm.slane %v717, 4
        %v1003 = vadd.f32 %v993, %v937
        %v1004 = vadd.f32 %v994, %v950
        %v1005 = vadd.f32 %v995, %v963
        %v1006 = vadd.f32 %v996, %v976
        %v1007 = vadd.f32 %v997, %v989
        %v1056 = vunpack.c.l.b16 %v573
        %v1057 = vunpack.c.h.b16 %v573
        %v1058 = vunpack.c.l.b16 %v574
        %v1059 = vunpack.c.h.b16 %v574
        %v1060 = vunpack.c.l.b16 %v575
        %v1061 = vunpack.c.l.b16 %v576
        %v1062 = vunpack.c.h.b16 %v576
        %v1063 = vunpack.c.l.b16 %v577
        %v1064 = vunpack.c.h.b16 %v577
        %v1065 = vunpack.c.l.b16 %v578
        %v1066 = vunpack.c.l.b16 %v579
        %v1067 = vunpack.c.h.b16 %v579
        %v1068 = vunpack.c.l.b16 %v580
        %v1069 = vunpack.c.h.b16 %v580
        %v1070 = vunpack.c.l.b16 %v581
        %v1071 = vunpack.c.l.b16 %v582
        %v1072 = vunpack.c.h.b16 %v582
        %v1073 = vunpack.c.l.b16 %v583
        %v1074 = vunpack.c.h.b16 %v583
        %v1075 = vunpack.c.l.b16 %v584
        %v1076 = vunpack.c.l.b16 %v585
        %v1077 = vunpack.c.h.b16 %v585
        %v1078 = vunpack.c.l.b16 %v586
        %v1079 = vunpack.c.h.b16 %v586
        %v1080 = vunpack.c.l.b16 %v587
        %v1081 = vunpack.c.l.b16 %v588
        %v1082 = vunpack.c.h.b16 %v588
        %v1083 = vunpack.c.l.b16 %v589
        %v1084 = vunpack.c.h.b16 %v589
        %v1085 = vunpack.c.l.b16 %v590
        %v1086 = vunpack.c.l.b16 %v591
        %v1087 = vunpack.c.h.b16 %v591
        %v1088 = vunpack.c.l.b16 %v592
        %v1089 = vunpack.c.h.b16 %v592
        %v1090 = vunpack.c.l.b16 %v593
        %v1091 = vunpack.c.l.b16 %v594
        %v1092 = vunpack.c.h.b16 %v594
        %v1093 = vunpack.c.l.b16 %v595
        %v1094 = vunpack.c.h.b16 %v595
        %v1095 = vunpack.c.l.b16 %v596
        %v1096 = vunpack.c.l.b16 %v597
        %v1097 = vunpack.c.h.b16 %v597
        %v1098 = vunpack.c.l.b16 %v598
        %v1099 = vunpack.c.h.b16 %v598
        %v1100 = vunpack.c.l.b16 %v599
        %v1101 = vunpack.c.l.b16 %v600
        %v1102 = vunpack.c.h.b16 %v600
        %v1103 = vunpack.c.l.b16 %v601
        %v1104 = vunpack.c.h.b16 %v601
        %v1105 = vunpack.c.l.b16 %v602
        %v1106 = vunpack.c.l.b16 %v603
        %v1107 = vunpack.c.h.b16 %v603
        %v1108 = vunpack.c.l.b16 %v604
        %v1109 = vunpack.c.h.b16 %v604
        %v1110 = vunpack.c.l.b16 %v605
        %v1111 = vunpack.c.l.b16 %v606
        %v1112 = vunpack.c.h.b16 %v606
        %v1113 = vunpack.c.l.b16 %v607
        %v1114 = vunpack.c.h.b16 %v607
        %v1115 = vunpack.c.l.b16 %v608
        %v1116 = vunpack.c.l.b16 %v609
        %v1117 = vunpack.c.h.b16 %v609
        %v1118 = vunpack.c.l.b16 %v610
        %v1119 = vunpack.c.h.b16 %v610
        %v1120 = vunpack.c.l.b16 %v611
        %v1121 = vunpack.c.l.b16 %v612
        %v1122 = vunpack.c.h.b16 %v612
        %v1123 = vunpack.c.l.b16 %v613
        %v1124 = vunpack.c.h.b16 %v613
        %v1125 = vunpack.c.l.b16 %v614
        %v1126 = vunpack.c.l.b16 %v615
        %v1127 = vunpack.c.h.b16 %v615
        %v1128 = vunpack.c.l.b16 %v616
        %v1129 = vunpack.c.h.b16 %v616
        %v1130 = vunpack.c.l.b16 %v617
        %v1131 = vunpack.c.l.b16 %v618
        %v1132 = vunpack.c.h.b16 %v618
        %v1133 = vunpack.c.l.b16 %v619
        %v1134 = vunpack.c.h.b16 %v619
        %v1135 = vunpack.c.l.b16 %v620
        %v1136 = vpack.c.b16 %v1061, %v1056
        %v1137 = vpack.c.b16 %v1062, %v1057
        %v1138 = vpack.c.b16 %v1063, %v1058
        %v1139 = vpack.c.b16 %v1064, %v1059
        %v1140 = vpack.c.b16 %v1065, %v1060
        %v1141 = vpack.c.b16 %v1071, %v1066
        %v1142 = vpack.c.b16 %v1072, %v1067
        %v1143 = vpack.c.b16 %v1073, %v1068
        %v1144 = vpack.c.b16 %v1074, %v1069
        %v1145 = vpack.c.b16 %v1075, %v1070
        %v1146 = vpack.c.b16 %v1081, %v1076
        %v1147 = vpack.c.b16 %v1082, %v1077
        %v1148 = vpack.c.b16 %v1083, %v1078
        %v1149 = vpack.c.b16 %v1084, %v1079
        %v1150 = vpack.c.b16 %v1085, %v1080
        %v1151 = vpack.c.b16 %v1091, %v1086
        %v1152 = vpack.c.b16 %v1092, %v1087
        %v1153 = vpack.c.b16 %v1093, %v1088
        %v1154 = vpack.c.b16 %v1094, %v1089
        %v1155 = vpack.c.b16 %v1095, %v1090
        %v1156 = vpack.c.b16 %v1101, %v1096
        %v1157 = vpack.c.b16 %v1102, %v1097
        %v1158 = vpack.c.b16 %v1103, %v1098
        %v1159 = vpack.c.b16 %v1104, %v1099
        %v1160 = vpack.c.b16 %v1105, %v1100
        %v1161 = vpack.c.b16 %v1111, %v1106
        %v1162 = vpack.c.b16 %v1112, %v1107
        %v1163 = vpack.c.b16 %v1113, %v1108
        %v1164 = vpack.c.b16 %v1114, %v1109
        %v1165 = vpack.c.b16 %v1115, %v1110
        %v1166 = vpack.c.b16 %v1121, %v1116
        %v1167 = vpack.c.b16 %v1122, %v1117
        %v1168 = vpack.c.b16 %v1123, %v1118
        %v1169 = vpack.c.b16 %v1124, %v1119
        %v1170 = vpack.c.b16 %v1125, %v1120
        %v1171 = vpack.c.b16 %v1131, %v1126
        %v1172 = vpack.c.b16 %v1132, %v1127
        %v1173 = vpack.c.b16 %v1133, %v1128
        %v1174 = vpack.c.b16 %v1134, %v1129
        %v1175 = vpack.c.b16 %v1135, %v1130
        %1216 = vmatpush.bf16.msra.mxu0 %v1171
        %1217 = vmatpush.bf16.msra.mxu0 %v1166
        %1218 = vmatpush.bf16.msra.mxu0 %v1161
        %1219 = vmatpush.bf16.msra.mxu0 %v1156
        %1220 = vmatpush.bf16.msra.mxu0 %v1151
        %1221 = vmatpush.bf16.msra.mxu0 %v1146
        %1222 = vmatpush.bf16.msra.mxu0 %v1141
        %1223 = vmatpush.bf16.msra.mxu0 %v1136
        %1224 = vmatmul.bf16.gmra.mxu0 %v517
        %v1225 = vpop.f32.mrf.mxu0
        %v1226 = vadd.f32 0.0, %v1225
        %v1227 = vpop.f32.mrf.mxu0
        %1228 = vdwg.mxu0
        %1229 = vmatpush.bf16.msra.mxu0 %v1172
        %1230 = vmatpush.bf16.msra.mxu0 %v1167
        %1231 = vmatpush.bf16.msra.mxu0 %v1162
        %1232 = vmatpush.bf16.msra.mxu0 %v1157
        %1233 = vmatpush.bf16.msra.mxu0 %v1152
        %1234 = vmatpush.bf16.msra.mxu0 %v1147
        %1235 = vmatpush.bf16.msra.mxu0 %v1142
        %1236 = vmatpush.bf16.msra.mxu0 %v1137
        %1237 = vmatmul.bf16.gmra.mxu0 %v517
        %v1238 = vpop.f32.mrf.mxu0
        %v1239 = vadd.f32 0.0, %v1238
        %v1240 = vpop.f32.mrf.mxu0
        %1241 = vdwg.mxu0
        %1242 = vmatpush.bf16.msra.mxu0 %v1173
        %1243 = vmatpush.bf16.msra.mxu0 %v1168
        %1244 = vmatpush.bf16.msra.mxu0 %v1163
        %1245 = vmatpush.bf16.msra.mxu0 %v1158
        %1246 = vmatpush.bf16.msra.mxu0 %v1153
        %1247 = vmatpush.bf16.msra.mxu0 %v1148
        %1248 = vmatpush.bf16.msra.mxu0 %v1143
        %1249 = vmatpush.bf16.msra.mxu0 %v1138
        %1250 = vmatmul.bf16.gmra.mxu0 %v517
        %v1251 = vpop.f32.mrf.mxu0
        %v1252 = vadd.f32 0.0, %v1251
        %v1253 = vpop.f32.mrf.mxu0
        %1254 = vdwg.mxu0
        %1255 = vmatpush.bf16.msra.mxu0 %v1174
        %1256 = vmatpush.bf16.msra.mxu0 %v1169
        %1257 = vmatpush.bf16.msra.mxu0 %v1164
        %1258 = vmatpush.bf16.msra.mxu0 %v1159
        %1259 = vmatpush.bf16.msra.mxu0 %v1154
        %1260 = vmatpush.bf16.msra.mxu0 %v1149
        %1261 = vmatpush.bf16.msra.mxu0 %v1144
        %1262 = vmatpush.bf16.msra.mxu0 %v1139
        %1263 = vmatmul.bf16.gmra.mxu0 %v517
        %v1264 = vpop.f32.mrf.mxu0
        %v1265 = vadd.f32 0.0, %v1264
        %v1266 = vpop.f32.mrf.mxu0
        %1267 = vdwg.mxu0
        %1268 = vmatpush.bf16.msra.mxu0 %v1175
        %1269 = vmatpush.bf16.msra.mxu0 %v1170
        %1270 = vmatpush.bf16.msra.mxu0 %v1165
        %1271 = vmatpush.bf16.msra.mxu0 %v1160
        %1272 = vmatpush.bf16.msra.mxu0 %v1155
        %1273 = vmatpush.bf16.msra.mxu0 %v1150
        %1274 = vmatpush.bf16.msra.mxu0 %v1145
        %1275 = vmatpush.bf16.msra.mxu0 %v1140
        %1276 = vmatmul.bf16.gmra.mxu0 %v517
        %v1277 = vpop.f32.mrf.mxu0
        %v1278 = vadd.f32 0.0, %v1277
        %v1279 = vpop.f32.mrf.mxu0
        %1280 = vdwg.mxu0
        %v1281 = vadd.f32 %v1003, %v1226
        %v1282 = vadd.f32 %v1004, %v1239
        %v1283 = vadd.f32 %v1005, %v1252
        %v1284 = vadd.f32 %v1006, %v1265
        %v1285 = vadd.f32 %v1007, %v1278
        %v1334 = vunpack.c.l.b16 %v621
        %v1335 = vunpack.c.h.b16 %v621
        %v1336 = vunpack.c.l.b16 %v622
        %v1337 = vunpack.c.h.b16 %v622
        %v1338 = vunpack.c.l.b16 %v623
        %v1339 = vunpack.c.l.b16 %v624
        %v1340 = vunpack.c.h.b16 %v624
        %v1341 = vunpack.c.l.b16 %v625
        %v1342 = vunpack.c.h.b16 %v625
        %v1343 = vunpack.c.l.b16 %v626
        %v1344 = vunpack.c.l.b16 %v627
        %v1345 = vunpack.c.h.b16 %v627
        %v1346 = vunpack.c.l.b16 %v628
        %v1347 = vunpack.c.h.b16 %v628
        %v1348 = vunpack.c.l.b16 %v629
        %v1349 = vunpack.c.l.b16 %v630
        %v1350 = vunpack.c.h.b16 %v630
        %v1351 = vunpack.c.l.b16 %v631
        %v1352 = vunpack.c.h.b16 %v631
        %v1353 = vunpack.c.l.b16 %v632
        %v1354 = vunpack.c.l.b16 %v633
        %v1355 = vunpack.c.h.b16 %v633
        %v1356 = vunpack.c.l.b16 %v634
        %v1357 = vunpack.c.h.b16 %v634
        %v1358 = vunpack.c.l.b16 %v635
        %v1359 = vunpack.c.l.b16 %v636
        %v1360 = vunpack.c.h.b16 %v636
        %v1361 = vunpack.c.l.b16 %v637
        %v1362 = vunpack.c.h.b16 %v637
        %v1363 = vunpack.c.l.b16 %v638
        %v1364 = vunpack.c.l.b16 %v639
        %v1365 = vunpack.c.h.b16 %v639
        %v1366 = vunpack.c.l.b16 %v640
        %v1367 = vunpack.c.h.b16 %v640
        %v1368 = vunpack.c.l.b16 %v641
        %v1369 = vunpack.c.l.b16 %v642
        %v1370 = vunpack.c.h.b16 %v642
        %v1371 = vunpack.c.l.b16 %v643
        %v1372 = vunpack.c.h.b16 %v643
        %v1373 = vunpack.c.l.b16 %v644
        %v1374 = vunpack.c.l.b16 %v645
        %v1375 = vunpack.c.h.b16 %v645
        %v1376 = vunpack.c.l.b16 %v646
        %v1377 = vunpack.c.h.b16 %v646
        %v1378 = vunpack.c.l.b16 %v647
        %v1379 = vunpack.c.l.b16 %v648
        %v1380 = vunpack.c.h.b16 %v648
        %v1381 = vunpack.c.l.b16 %v649
        %v1382 = vunpack.c.h.b16 %v649
        %v1383 = vunpack.c.l.b16 %v650
        %v1384 = vunpack.c.l.b16 %v651
        %v1385 = vunpack.c.h.b16 %v651
        %v1386 = vunpack.c.l.b16 %v652
        %v1387 = vunpack.c.h.b16 %v652
        %v1388 = vunpack.c.l.b16 %v653
        %v1389 = vunpack.c.l.b16 %v654
        %v1390 = vunpack.c.h.b16 %v654
        %v1391 = vunpack.c.l.b16 %v655
        %v1392 = vunpack.c.h.b16 %v655
        %v1393 = vunpack.c.l.b16 %v656
        %v1394 = vunpack.c.l.b16 %v657
        %v1395 = vunpack.c.h.b16 %v657
        %v1396 = vunpack.c.l.b16 %v658
        %v1397 = vunpack.c.h.b16 %v658
        %v1398 = vunpack.c.l.b16 %v659
        %v1399 = vunpack.c.l.b16 %v660
        %v1400 = vunpack.c.h.b16 %v660
        %v1401 = vunpack.c.l.b16 %v661
        %v1402 = vunpack.c.h.b16 %v661
        %v1403 = vunpack.c.l.b16 %v662
        %v1404 = vunpack.c.l.b16 %v663
        %v1405 = vunpack.c.h.b16 %v663
        %v1406 = vunpack.c.l.b16 %v664
        %v1407 = vunpack.c.h.b16 %v664
        %v1408 = vunpack.c.l.b16 %v665
        %v1409 = vunpack.c.l.b16 %v666
        %v1410 = vunpack.c.h.b16 %v666
        %v1411 = vunpack.c.l.b16 %v667
        %v1412 = vunpack.c.h.b16 %v667
        %v1413 = vunpack.c.l.b16 %v668
        %v1414 = vpack.c.b16 %v1339, %v1334
        %v1415 = vpack.c.b16 %v1340, %v1335
        %v1416 = vpack.c.b16 %v1341, %v1336
        %v1417 = vpack.c.b16 %v1342, %v1337
        %v1418 = vpack.c.b16 %v1343, %v1338
        %v1419 = vpack.c.b16 %v1349, %v1344
        %v1420 = vpack.c.b16 %v1350, %v1345
        %v1421 = vpack.c.b16 %v1351, %v1346
        %v1422 = vpack.c.b16 %v1352, %v1347
        %v1423 = vpack.c.b16 %v1353, %v1348
        %v1424 = vpack.c.b16 %v1359, %v1354
        %v1425 = vpack.c.b16 %v1360, %v1355
        %v1426 = vpack.c.b16 %v1361, %v1356
        %v1427 = vpack.c.b16 %v1362, %v1357
        %v1428 = vpack.c.b16 %v1363, %v1358
        %v1429 = vpack.c.b16 %v1369, %v1364
        %v1430 = vpack.c.b16 %v1370, %v1365
        %v1431 = vpack.c.b16 %v1371, %v1366
        %v1432 = vpack.c.b16 %v1372, %v1367
        %v1433 = vpack.c.b16 %v1373, %v1368
        %v1434 = vpack.c.b16 %v1379, %v1374
        %v1435 = vpack.c.b16 %v1380, %v1375
        %v1436 = vpack.c.b16 %v1381, %v1376
        %v1437 = vpack.c.b16 %v1382, %v1377
        %v1438 = vpack.c.b16 %v1383, %v1378
        %v1439 = vpack.c.b16 %v1389, %v1384
        %v1440 = vpack.c.b16 %v1390, %v1385
        %v1441 = vpack.c.b16 %v1391, %v1386
        %v1442 = vpack.c.b16 %v1392, %v1387
        %v1443 = vpack.c.b16 %v1393, %v1388
        %v1444 = vpack.c.b16 %v1399, %v1394
        %v1445 = vpack.c.b16 %v1400, %v1395
        %v1446 = vpack.c.b16 %v1401, %v1396
        %v1447 = vpack.c.b16 %v1402, %v1397
        %v1448 = vpack.c.b16 %v1403, %v1398
        %v1449 = vpack.c.b16 %v1409, %v1404
        %v1450 = vpack.c.b16 %v1410, %v1405
        %v1451 = vpack.c.b16 %v1411, %v1406
        %v1452 = vpack.c.b16 %v1412, %v1407
        %v1453 = vpack.c.b16 %v1413, %v1408
        %1494 = vmatpush.bf16.msra.mxu0 %v1449
        %1495 = vmatpush.bf16.msra.mxu0 %v1444
        %1496 = vmatpush.bf16.msra.mxu0 %v1439
        %1497 = vmatpush.bf16.msra.mxu0 %v1434
        %1498 = vmatpush.bf16.msra.mxu0 %v1429
        %1499 = vmatpush.bf16.msra.mxu0 %v1424
        %1500 = vmatpush.bf16.msra.mxu0 %v1419
        %1501 = vmatpush.bf16.msra.mxu0 %v1414
        %1502 = vmatmul.bf16.gmra.mxu0 %v518
        %v1503 = vpop.f32.mrf.mxu0
        %v1504 = vadd.f32 0.0, %v1503
        %v1505 = vpop.f32.mrf.mxu0
        %1506 = vdwg.mxu0
        %1507 = vmatpush.bf16.msra.mxu0 %v1450
        %1508 = vmatpush.bf16.msra.mxu0 %v1445
        %1509 = vmatpush.bf16.msra.mxu0 %v1440
        %1510 = vmatpush.bf16.msra.mxu0 %v1435
        %1511 = vmatpush.bf16.msra.mxu0 %v1430
        %1512 = vmatpush.bf16.msra.mxu0 %v1425
        %1513 = vmatpush.bf16.msra.mxu0 %v1420
        %1514 = vmatpush.bf16.msra.mxu0 %v1415
        %1515 = vmatmul.bf16.gmra.mxu0 %v518
        %v1516 = vpop.f32.mrf.mxu0
        %v1517 = vadd.f32 0.0, %v1516
        %v1518 = vpop.f32.mrf.mxu0
        %1519 = vdwg.mxu0
        %1520 = vmatpush.bf16.msra.mxu0 %v1451
        %1521 = vmatpush.bf16.msra.mxu0 %v1446
        %1522 = vmatpush.bf16.msra.mxu0 %v1441
        %1523 = vmatpush.bf16.msra.mxu0 %v1436
        %1524 = vmatpush.bf16.msra.mxu0 %v1431
        %1525 = vmatpush.bf16.msra.mxu0 %v1426
        %1526 = vmatpush.bf16.msra.mxu0 %v1421
        %1527 = vmatpush.bf16.msra.mxu0 %v1416
        %1528 = vmatmul.bf16.gmra.mxu0 %v518
        %v1529 = vpop.f32.mrf.mxu0
        %v1530 = vadd.f32 0.0, %v1529
        %v1531 = vpop.f32.mrf.mxu0
        %1532 = vdwg.mxu0
        %1533 = vmatpush.bf16.msra.mxu0 %v1452
        %1534 = vmatpush.bf16.msra.mxu0 %v1447
        %1535 = vmatpush.bf16.msra.mxu0 %v1442
        %1536 = vmatpush.bf16.msra.mxu0 %v1437
        %1537 = vmatpush.bf16.msra.mxu0 %v1432
        %1538 = vmatpush.bf16.msra.mxu0 %v1427
        %1539 = vmatpush.bf16.msra.mxu0 %v1422
        %1540 = vmatpush.bf16.msra.mxu0 %v1417
        %1541 = vmatmul.bf16.gmra.mxu0 %v518
        %v1542 = vpop.f32.mrf.mxu0
        %v1543 = vadd.f32 0.0, %v1542
        %v1544 = vpop.f32.mrf.mxu0
        %1545 = vdwg.mxu0
        %1546 = vmatpush.bf16.msra.mxu0 %v1453
        %1547 = vmatpush.bf16.msra.mxu0 %v1448
        %1548 = vmatpush.bf16.msra.mxu0 %v1443
        %1549 = vmatpush.bf16.msra.mxu0 %v1438
        %1550 = vmatpush.bf16.msra.mxu0 %v1433
        %1551 = vmatpush.bf16.msra.mxu0 %v1428
        %1552 = vmatpush.bf16.msra.mxu0 %v1423
        %1553 = vmatpush.bf16.msra.mxu0 %v1418
        %1554 = vmatmul.bf16.gmra.mxu0 %v518
        %v1555 = vpop.f32.mrf.mxu0
        %v1556 = vadd.f32 0.0, %v1555
        %v1557 = vpop.f32.mrf.mxu0
        %1558 = vdwg.mxu0
        %v1559 = vadd.f32 %v1281, %v1504
        %v1560 = vadd.f32 %v1282, %v1517
        %v1561 = vadd.f32 %v1283, %v1530
        %v1562 = vadd.f32 %v1284, %v1543
        %v1563 = vadd.f32 %v1285, %v1556
        %v1564 = vxor.u32 %v1559, 2147483648
        %v1565 = vxor.u32 %v1560, 2147483648
        %v1566 = vxor.u32 %v1561, 2147483648
        %v1567 = vmul.f32 %v1564, 1.442695
        %v1568 = vpow.pop %v1567
        %v1569 = vmul.f32 %v1565, 1.442695
        %v1570 = vpow.pop %v1569
        %v1571 = vmul.f32 %v1566, 1.442695
        %v1572 = vpow.pop %v1571
        %v1573 = vadd.f32 %v1568, 1.0
        %v1574 = vadd.f32 %v1570, 1.0
        %v1575 = vadd.f32 %v1572, 1.0
        %v1576 = vrcp.pop %v1573
        %v1577 = vmul.f32 %v1573, %v1576
        %v1578 = vsub.f32 1.0, %v1577
        %v1579 = vmul.f32 %v1576, %v1578
        %v1580 = vadd.f32 %v1576, %v1579
        %vm1581 = vweird.f32 %v1573
        %vm1582 = vweird.f32 %v1576
        %vm1583 = vmor %vm1581, %vm1582
        %v1584 = vsel %vm1583, %v1576, %v1580
        %v1585 = vand.u32 2147483647, %v1573
        %vm1586 = vcmp.eq.f32.partialorder %v1585, 8.507059e+37
        %v1587 = vand.u32 %v1573, 2147483648
        %v1588 = vor.u32 1.1754944e-38, %v1587
        %v1589 = vsel %vm1586, %v1588, %v1584
        %v1590 = vmul.f32 1.0, %v1589
        %v1591 = vrcp.pop %v1574
        %v1592 = vmul.f32 %v1574, %v1591
        %v1593 = vsub.f32 1.0, %v1592
        %v1594 = vmul.f32 %v1591, %v1593
        %v1595 = vadd.f32 %v1591, %v1594
        %vm1596 = vweird.f32 %v1574
        %vm1597 = vweird.f32 %v1591
        %vm1598 = vmor %vm1596, %vm1597
        %v1599 = vsel %vm1598, %v1591, %v1595
        %v1600 = vand.u32 2147483647, %v1574
        %vm1601 = vcmp.eq.f32.partialorder %v1600, 8.507059e+37
        %v1602 = vand.u32 %v1574, 2147483648
        %v1603 = vor.u32 1.1754944e-38, %v1602
        %v1604 = vsel %vm1601, %v1603, %v1599
        %v1605 = vmul.f32 1.0, %v1604
        %v1606 = vrcp.pop %v1575
        %v1607 = vmul.f32 %v1575, %v1606
        %v1608 = vsub.f32 1.0, %v1607
        %v1609 = vmul.f32 %v1606, %v1608
        %v1610 = vadd.f32 %v1606, %v1609
        %vm1611 = vweird.f32 %v1575
        %vm1612 = vweird.f32 %v1606
        %vm1613 = vmor %vm1611, %vm1612
        %v1614 = vsel %vm1613, %v1606, %v1610
        %v1615 = vand.u32 2147483647, %v1575
        %vm1616 = vcmp.eq.f32.partialorder %v1615, 8.507059e+37
        %v1617 = vand.u32 %v1575, 2147483648
        %v1618 = vor.u32 1.1754944e-38, %v1617
        %v1619 = vsel %vm1616, %v1618, %v1614
        %v1620 = vmul.f32 1.0, %v1619
        %v1621 = vmax.f32 %v1562, %v1563
        %v1622 = vmul.f32 %v1605, %v570
        %v1623 = vmul.f32 %v1590, %v1621
        %v1624 = vadd.f32 %v1622, %v1623
        %v1625 = vtanh.pop %v1624
        %v1626 = vmul.f32 %v1620, %v1625
        %v1627 = vld [vmem:[#allocation10] sm:$0xf]
        %v1628 = vld [vmem:[#allocation10 + $0x4] sm:$0xf]
        %v1629 = vld [vmem:[#allocation10 + $0x8] sm:$0xf]
        %v1630 = vld [vmem:[#allocation10 + $0xc] sm:$0xf]
        %v1631 = vld [vmem:[#allocation10 + $0x10] sm:$0xf]
        %v1632 = vld [vmem:[#allocation10 + $0x14] sm:$0xf]
        %v1633 = vld [vmem:[#allocation10 + $0x18] sm:$0xf]
        %v1634 = vld [vmem:[#allocation10 + $0x1c] sm:$0xf]
        %v1635 = vld [vmem:[#allocation10 + $0x20] sm:$0xf]
        %v1636 = vld [vmem:[#allocation10 + $0x24] sm:$0xf]
        %v1637 = vld [vmem:[#allocation10 + $0x28] sm:$0xf]
        %v1638 = vld [vmem:[#allocation10 + $0x2c] sm:$0xf]
        %v1639 = vld [vmem:[#allocation10 + $0x30] sm:$0xf]
        %v1640 = vld [vmem:[#allocation10 + $0x34] sm:$0xf]
        %v1641 = vld [vmem:[#allocation10 + $0x38] sm:$0xf]
        %v1642 = vld [vmem:[#allocation10 + $0x3c] sm:$0xf]
        %v1643 = vld [vmem:[#allocation13] sm:$0x1]
        %v1644 = vld [vmem:[#allocation13 + $0x3] sm:$0x1]
        %v1645 = vpack.c.bf16 %v1626, %v1626
        %v1646 = vperm.slane %v1643, 0
        %v1663 = vunpack.c.l.b16 %v1627
        %v1664 = vunpack.c.l.b16 %v1628
        %v1665 = vunpack.c.l.b16 %v1629
        %v1666 = vunpack.c.l.b16 %v1630
        %v1667 = vunpack.c.l.b16 %v1631
        %v1668 = vunpack.c.l.b16 %v1632
        %v1669 = vunpack.c.l.b16 %v1633
        %v1670 = vunpack.c.l.b16 %v1634
        %v1671 = vunpack.c.l.b16 %v1635
        %v1672 = vunpack.c.l.b16 %v1636
        %v1673 = vunpack.c.l.b16 %v1637
        %v1674 = vunpack.c.l.b16 %v1638
        %v1675 = vunpack.c.l.b16 %v1639
        %v1676 = vunpack.c.l.b16 %v1640
        %v1677 = vunpack.c.l.b16 %v1641
        %v1678 = vunpack.c.l.b16 %v1642
        %v1679 = vpack.c.b16 %v1664, %v1663
        %v1680 = vpack.c.b16 %v1666, %v1665
        %v1681 = vpack.c.b16 %v1668, %v1667
        %v1682 = vpack.c.b16 %v1670, %v1669
        %v1683 = vpack.c.b16 %v1672, %v1671
        %v1684 = vpack.c.b16 %v1674, %v1673
        %v1685 = vpack.c.b16 %v1676, %v1675
        %v1686 = vpack.c.b16 %v1678, %v1677
        %1695 = vmatpush.bf16.msra.mxu0 %v1686
        %1696 = vmatpush.bf16.msra.mxu0 %v1685
        %1697 = vmatpush.bf16.msra.mxu0 %v1684
        %1698 = vmatpush.bf16.msra.mxu0 %v1683
        %1699 = vmatpush.bf16.msra.mxu0 %v1682
        %1700 = vmatpush.bf16.msra.mxu0 %v1681
        %1701 = vmatpush.bf16.msra.mxu0 %v1680
        %1702 = vmatpush.bf16.msra.mxu0 %v1679
        %1703 = vmatmul.bf16.gmra.mxu0 %v1645
        %v1704 = vpop.f32.mrf.mxu0
        %v1705 = vadd.f32 %v1646, %v1704
        %v1706 = vpop.f32.mrf.mxu0
        %1707 = vdwg.mxu0
        %v1709 = vrot.slane %v1705, 1
        %v1710 = vrot.slane %v1705, 2
        %v1711 = vrot.slane %v1705, 3
        %v1712 = vrot.slane %v1705, 4
        %v1713 = vrot.slane %v1705, 5
        %v1714 = vrot.slane %v1705, 6
        %v1715 = vrot.slane %v1705, 7
        %v1716 = vperm.slane %v1705, 0
        %v1717 = vperm.slane %v1709, 0
        %v1718 = vperm.slane %v1710, 0
        %v1719 = vperm.slane %v1711, 0
        %v1720 = vperm.slane %v1712, 0
        %v1721 = vperm.slane %v1713, 0
        %v1722 = vperm.slane %v1714, 0
        %v1723 = vperm.slane %v1715, 0
        %v1732 = vadd.f32 %v551, %v1716
        %v1733 = vadd.f32 %v552, %v1716
        %v1734 = vadd.f32 %v553, %v1717
        %v1735 = vadd.f32 %v554, %v1717
        %v1736 = vadd.f32 %v555, %v1718
        %v1737 = vadd.f32 %v556, %v1718
        %v1738 = vadd.f32 %v557, %v1719
        %v1739 = vadd.f32 %v558, %v1719
        %v1740 = vadd.f32 %v559, %v1720
        %v1741 = vadd.f32 %v560, %v1720
        %v1742 = vadd.f32 %v561, %v1721
        %v1743 = vadd.f32 %v562, %v1721
        %v1744 = vadd.f32 %v563, %v1722
        %v1745 = vadd.f32 %v564, %v1722
        %v1746 = vadd.f32 %v565, %v1723
        %v1747 = vadd.f32 %v566, %v1723
        %v1748 = vtanh.pop %v1732
        %v1749 = vtanh.pop %v1733
        %v1750 = vtanh.pop %v1734
        %v1751 = vtanh.pop %v1735
        %v1752 = vtanh.pop %v1736
        %v1753 = vtanh.pop %v1737
        %v1754 = vtanh.pop %v1738
        %v1755 = vtanh.pop %v1739
        %v1756 = vtanh.pop %v1740
        %v1757 = vtanh.pop %v1741
        %v1758 = vtanh.pop %v1742
        %v1759 = vtanh.pop %v1743
        %v1760 = vtanh.pop %v1744
        %v1761 = vtanh.pop %v1745
        %v1762 = vtanh.pop %v1746
        %v1763 = vtanh.pop %v1747
        %v1764 = vperm.slane %v1644, 0
        %v1765 = vmul.f32 %v1748, %v1764
        %v1766 = vmul.f32 %v1749, %v1764
        %v1767 = vmul.f32 %v1750, %v1764
        %v1768 = vmul.f32 %v1751, %v1764
        %v1769 = vmul.f32 %v1752, %v1764
        %v1770 = vmul.f32 %v1753, %v1764
        %v1771 = vmul.f32 %v1754, %v1764
        %v1772 = vmul.f32 %v1755, %v1764
        %v1773 = vmul.f32 %v1756, %v1764
        %v1774 = vmul.f32 %v1757, %v1764
        %v1775 = vmul.f32 %v1758, %v1764
        %v1776 = vmul.f32 %v1759, %v1764
        %v1777 = vmul.f32 %v1760, %v1764
        %v1778 = vmul.f32 %v1761, %v1764
        %v1779 = vmul.f32 %v1762, %v1764
        %v1780 = vmul.f32 %v1763, %v1764
        %1781 = vadd.xlane.f32.xlu0 %v1765
        %v1782 = vpop.xlane.xlu0 %1781
        %1783 = vadd.xlane.f32.xlu0 %v1766
        %v1784 = vpop.xlane.xlu0 %1783
        %1785 = vadd.xlane.f32.xlu0 %v1767
        %v1786 = vpop.xlane.xlu0 %1785
        %1787 = vadd.xlane.f32.xlu0 %v1768
        %v1788 = vpop.xlane.xlu0 %1787
        %1789 = vadd.xlane.f32.xlu0 %v1769
        %v1790 = vpop.xlane.xlu0 %1789
        %1791 = vadd.xlane.f32.xlu0 %v1770
        %v1792 = vpop.xlane.xlu0 %1791
        %1793 = vadd.xlane.f32.xlu0 %v1771
        %v1794 = vpop.xlane.xlu0 %1793
        %1795 = vadd.xlane.f32.xlu0 %v1772
        %v1796 = vpop.xlane.xlu0 %1795
        %1797 = vadd.xlane.f32.xlu0 %v1773
        %v1798 = vpop.xlane.xlu0 %1797
        %1799 = vadd.xlane.f32.xlu0 %v1774
        %v1800 = vpop.xlane.xlu0 %1799
        %1801 = vadd.xlane.f32.xlu0 %v1775
        %v1802 = vpop.xlane.xlu0 %1801
        %1803 = vadd.xlane.f32.xlu0 %v1776
        %v1804 = vpop.xlane.xlu0 %1803
        %1805 = vadd.xlane.f32.xlu0 %v1777
        %v1806 = vpop.xlane.xlu0 %1805
        %1807 = vadd.xlane.f32.xlu0 %v1778
        %v1808 = vpop.xlane.xlu0 %1807
        %1809 = vadd.xlane.f32.xlu0 %v1779
        %v1810 = vpop.xlane.xlu0 %1809
        %1811 = vadd.xlane.f32.xlu0 %v1780
        %v1812 = vpop.xlane.xlu0 %1811
        %v1829 = vlaneseq
        %v1830 = vand.u32 %v1829, 127
        %v1831 = vperm.slane %v1782, %v1830
        %v1832 = vadd.s32 %v1830, 4294967288
        %v1833 = vperm.slane %v1784, %v1832
        %vm1834 = vcmask 130112
        %v1835 = vsel %vm1834, %v1833, %v1831
        %v1836 = vperm.slane %v1786, %v1830
        %v1837 = vperm.slane %v1788, %v1832
        %v1838 = vsel %vm1834, %v1837, %v1836
        %v1839 = vperm.slane %v1790, %v1830
        %v1840 = vperm.slane %v1792, %v1832
        %v1841 = vsel %vm1834, %v1840, %v1839
        %v1842 = vperm.slane %v1794, %v1830
        %v1843 = vperm.slane %v1796, %v1832
        %v1844 = vsel %vm1834, %v1843, %v1842
        %v1845 = vperm.slane %v1798, %v1830
        %v1846 = vperm.slane %v1800, %v1832
        %v1847 = vsel %vm1834, %v1846, %v1845
        %v1848 = vperm.slane %v1802, %v1830
        %v1849 = vperm.slane %v1804, %v1832
        %v1850 = vsel %vm1834, %v1849, %v1848
        %v1851 = vperm.slane %v1806, %v1830
        %v1852 = vperm.slane %v1808, %v1832
        %v1853 = vsel %vm1834, %v1852, %v1851
        %v1854 = vperm.slane %v1810, %v1830
        %v1855 = vperm.slane %v1812, %v1832
        %v1856 = vsel %vm1834, %v1855, %v1854
        %vm1857 = vcmask 1041409
        %v1858 = vsel %vm1857, %v1838, %v1835
        %vm1859 = vcmask 1042434
        %v1860 = vsel %vm1859, %v1841, %v1858
        %vm1861 = vcmask 1043459
        %v1862 = vsel %vm1861, %v1844, %v1860
        %vm1863 = vcmask 1044484
        %v1864 = vsel %vm1863, %v1847, %v1862
        %vm1865 = vcmask 1045509
        %v1866 = vsel %vm1865, %v1850, %v1864
        %vm1867 = vcmask 1046534
        %v1868 = vsel %vm1867, %v1853, %v1866
        %vm1869 = vcmask 1047559
        %v1870 = vsel %vm1869, %v1856, %v1868
        %vm1872 = vcmask 130048
        %v1873 = vsel %vm1872, %v1870, -inf
        %1874 = vmax.xlane.f32.xlu0 %v1873
        %v1875 = vpop.xlane.xlu0 %1874
        %v1877 = vperm.slane %v1875, 0
        %v1878 = vperm.slane %v1875, 1
        %v1879 = vperm.slane %v1875, 2
        %v1880 = vperm.slane %v1875, 3
        %v1881 = vperm.slane %v1875, 4
        %v1882 = vperm.slane %v1875, 5
        %v1883 = vperm.slane %v1875, 6
        %v1884 = vperm.slane %v1875, 7
        %v1893 = vsub.f32 %v1782, %v1877
        %v1894 = vsub.f32 %v1784, %v1877
        %v1895 = vsub.f32 %v1786, %v1878
        %v1896 = vsub.f32 %v1788, %v1878
        %v1897 = vsub.f32 %v1790, %v1879
        %v1898 = vsub.f32 %v1792, %v1879
        %v1899 = vsub.f32 %v1794, %v1880
        %v1900 = vsub.f32 %v1796, %v1880
        %v1901 = vsub.f32 %v1798, %v1881
        %v1902 = vsub.f32 %v1800, %v1881
        %v1903 = vsub.f32 %v1802, %v1882
        %v1904 = vsub.f32 %v1804, %v1882
        %v1905 = vsub.f32 %v1806, %v1883
        %v1906 = vsub.f32 %v1808, %v1883
        %v1907 = vsub.f32 %v1810, %v1884
        %v1908 = vsub.f32 %v1812, %v1884
        %v1909 = vmul.f32 %v1893, 1.442695
        %v1910 = vpow.pop %v1909
        %v1911 = vmul.f32 %v1894, 1.442695
        %v1912 = vpow.pop %v1911
        %v1913 = vmul.f32 %v1895, 1.442695
        %v1914 = vpow.pop %v1913
        %v1915 = vmul.f32 %v1896, 1.442695
        %v1916 = vpow.pop %v1915
        %v1917 = vmul.f32 %v1897, 1.442695
        %v1918 = vpow.pop %v1917
        %v1919 = vmul.f32 %v1898, 1.442695
        %v1920 = vpow.pop %v1919
        %v1921 = vmul.f32 %v1899, 1.442695
        %v1922 = vpow.pop %v1921
        %v1923 = vmul.f32 %v1900, 1.442695
        %v1924 = vpow.pop %v1923
        %v1925 = vmul.f32 %v1901, 1.442695
        %v1926 = vpow.pop %v1925
        %v1927 = vmul.f32 %v1902, 1.442695
        %v1928 = vpow.pop %v1927
        %v1929 = vmul.f32 %v1903, 1.442695
        %v1930 = vpow.pop %v1929
        %v1931 = vmul.f32 %v1904, 1.442695
        %v1932 = vpow.pop %v1931
        %v1933 = vmul.f32 %v1905, 1.442695
        %v1934 = vpow.pop %v1933
        %v1935 = vmul.f32 %v1906, 1.442695
        %v1936 = vpow.pop %v1935
        %v1937 = vmul.f32 %v1907, 1.442695
        %v1938 = vpow.pop %v1937
        %v1939 = vmul.f32 %v1908, 1.442695
        %v1940 = vpow.pop %v1939
        %1957 = vset.pattern.permute.xlu0 0
        %1958 = vperm.xlu0 %1957, %v1910
        %v1959 = vpop.permute.xlu0 %1958
        %1960 = vset.pattern.permute.xlu0 0
        %1961 = vperm.xlu0 %1960, %v1912
        %v1962 = vpop.permute.xlu0 %1961
        %1963 = vset.pattern.permute.xlu0 0
        %1964 = vperm.xlu0 %1963, %v1914
        %v1965 = vpop.permute.xlu0 %1964
        %1966 = vset.pattern.permute.xlu0 0
        %1967 = vperm.xlu0 %1966, %v1916
        %v1968 = vpop.permute.xlu0 %1967
        %1969 = vset.pattern.permute.xlu0 0
        %1970 = vperm.xlu0 %1969, %v1918
        %v1971 = vpop.permute.xlu0 %1970
        %1972 = vset.pattern.permute.xlu0 0
        %1973 = vperm.xlu0 %1972, %v1920
        %v1974 = vpop.permute.xlu0 %1973
        %1975 = vset.pattern.permute.xlu0 0
        %1976 = vperm.xlu0 %1975, %v1922
        %v1977 = vpop.permute.xlu0 %1976
        %1978 = vset.pattern.permute.xlu0 0
        %1979 = vperm.xlu0 %1978, %v1924
        %v1980 = vpop.permute.xlu0 %1979
        %1981 = vset.pattern.permute.xlu0 0
        %1982 = vperm.xlu0 %1981, %v1926
        %v1983 = vpop.permute.xlu0 %1982
        %1984 = vset.pattern.permute.xlu0 0
        %1985 = vperm.xlu0 %1984, %v1928
        %v1986 = vpop.permute.xlu0 %1985
        %1987 = vset.pattern.permute.xlu0 0
        %1988 = vperm.xlu0 %1987, %v1930
        %v1989 = vpop.permute.xlu0 %1988
        %1990 = vset.pattern.permute.xlu0 0
        %1991 = vperm.xlu0 %1990, %v1932
        %v1992 = vpop.permute.xlu0 %1991
        %1993 = vset.pattern.permute.xlu0 0
        %1994 = vperm.xlu0 %1993, %v1934
        %v1995 = vpop.permute.xlu0 %1994
        %1996 = vset.pattern.permute.xlu0 0
        %1997 = vperm.xlu0 %1996, %v1936
        %v1998 = vpop.permute.xlu0 %1997
        %1999 = vset.pattern.permute.xlu0 0
        %2000 = vperm.xlu0 %1999, %v1938
        %v2001 = vpop.permute.xlu0 %2000
        %2002 = vset.pattern.permute.xlu0 0
        %2003 = vperm.xlu0 %2002, %v1940
        %v2004 = vpop.permute.xlu0 %2003
        %v2005 = vperm.slane %v1959, %v1830
        %v2006 = vperm.slane %v1962, %v1832
        %v2007 = vsel %vm1834, %v2006, %v2005
        %v2008 = vperm.slane %v1965, %v1830
        %v2009 = vperm.slane %v1968, %v1832
        %v2010 = vsel %vm1834, %v2009, %v2008
        %v2011 = vperm.slane %v1971, %v1830
        %v2012 = vperm.slane %v1974, %v1832
        %v2013 = vsel %vm1834, %v2012, %v2011
        %v2014 = vperm.slane %v1977, %v1830
        %v2015 = vperm.slane %v1980, %v1832
        %v2016 = vsel %vm1834, %v2015, %v2014
        %v2017 = vperm.slane %v1983, %v1830
        %v2018 = vperm.slane %v1986, %v1832
        %v2019 = vsel %vm1834, %v2018, %v2017
        %v2020 = vperm.slane %v1989, %v1830
        %v2021 = vperm.slane %v1992, %v1832
        %v2022 = vsel %vm1834, %v2021, %v2020
        %v2023 = vperm.slane %v1995, %v1830
        %v2024 = vperm.slane %v1998, %v1832
        %v2025 = vsel %vm1834, %v2024, %v2023
        %v2026 = vperm.slane %v2001, %v1830
        %v2027 = vperm.slane %v2004, %v1832
        %v2028 = vsel %vm1834, %v2027, %v2026
        %v2029 = vsel %vm1857, %v2010, %v2007
        %v2030 = vsel %vm1859, %v2013, %v2029
        %v2031 = vsel %vm1861, %v2016, %v2030
        %v2032 = vsel %vm1863, %v2019, %v2031
        %v2033 = vsel %vm1865, %v2022, %v2032
        %v2034 = vsel %vm1867, %v2025, %v2033
        %v2035 = vsel %vm1869, %v2028, %v2034
        %v2037 = vsel %vm1872, %v2035, 0.0
        %2038 = vadd.xlane.f32.xlu0 %v2037
        %v2039 = vpop.xlane.xlu0 %2038
        %v2041 = vperm.slane %v2039, 0
        %v2042 = vperm.slane %v2039, 1
        %v2043 = vperm.slane %v2039, 2
        %v2044 = vperm.slane %v2039, 3
        %v2045 = vperm.slane %v2039, 4
        %v2046 = vperm.slane %v2039, 5
        %v2047 = vperm.slane %v2039, 6
        %v2048 = vperm.slane %v2039, 7
        %v2057 = vrcp.pop %v2041
        %v2058 = vmul.f32 %v2041, %v2057
        %v2059 = vsub.f32 1.0, %v2058
        %v2060 = vmul.f32 %v2057, %v2059
        %v2061 = vadd.f32 %v2057, %v2060
        %vm2062 = vweird.f32 %v2041
        %vm2063 = vweird.f32 %v2057
        %vm2064 = vmor %vm2062, %vm2063
        %v2065 = vsel %vm2064, %v2057, %v2061
        %v2066 = vand.u32 2147483647, %v2041
        %vm2067 = vcmp.eq.f32.partialorder %v2066, 8.507059e+37
        %v2068 = vand.u32 %v2041, 2147483648
        %v2069 = vor.u32 1.1754944e-38, %v2068
        %v2070 = vsel %vm2067, %v2069, %v2065
        %v2071 = vmul.f32 %v1910, %v2070
        %v2072 = vmul.f32 %v1912, %v2070
        %v2073 = vrcp.pop %v2042
        %v2074 = vmul.f32 %v2042, %v2073
        %v2075 = vsub.f32 1.0, %v2074
        %v2076 = vmul.f32 %v2073, %v2075
        %v2077 = vadd.f32 %v2073, %v2076
        %vm2078 = vweird.f32 %v2042
        %vm2079 = vweird.f32 %v2073
        %vm2080 = vmor %vm2078, %vm2079
        %v2081 = vsel %vm2080, %v2073, %v2077
        %v2082 = vand.u32 2147483647, %v2042
        %vm2083 = vcmp.eq.f32.partialorder %v2082, 8.507059e+37
        %v2084 = vand.u32 %v2042, 2147483648
        %v2085 = vor.u32 1.1754944e-38, %v2084
        %v2086 = vsel %vm2083, %v2085, %v2081
        %v2087 = vmul.f32 %v1914, %v2086
        %v2088 = vmul.f32 %v1916, %v2086
        %v2089 = vrcp.pop %v2043
        %v2090 = vmul.f32 %v2043, %v2089
        %v2091 = vsub.f32 1.0, %v2090
        %v2092 = vmul.f32 %v2089, %v2091
        %v2093 = vadd.f32 %v2089, %v2092
        %vm2094 = vweird.f32 %v2043
        %vm2095 = vweird.f32 %v2089
        %vm2096 = vmor %vm2094, %vm2095
        %v2097 = vsel %vm2096, %v2089, %v2093
        %v2098 = vand.u32 2147483647, %v2043
        %vm2099 = vcmp.eq.f32.partialorder %v2098, 8.507059e+37
        %v2100 = vand.u32 %v2043, 2147483648
        %v2101 = vor.u32 1.1754944e-38, %v2100
        %v2102 = vsel %vm2099, %v2101, %v2097
        %v2103 = vmul.f32 %v1918, %v2102
        %v2104 = vmul.f32 %v1920, %v2102
        %v2105 = vrcp.pop %v2044
        %v2106 = vmul.f32 %v2044, %v2105
        %v2107 = vsub.f32 1.0, %v2106
        %v2108 = vmul.f32 %v2105, %v2107
        %v2109 = vadd.f32 %v2105, %v2108
        %vm2110 = vweird.f32 %v2044
        %vm2111 = vweird.f32 %v2105
        %vm2112 = vmor %vm2110, %vm2111
        %v2113 = vsel %vm2112, %v2105, %v2109
        %v2114 = vand.u32 2147483647, %v2044
        %vm2115 = vcmp.eq.f32.partialorder %v2114, 8.507059e+37
        %v2116 = vand.u32 %v2044, 2147483648
        %v2117 = vor.u32 1.1754944e-38, %v2116
        %v2118 = vsel %vm2115, %v2117, %v2113
        %v2119 = vmul.f32 %v1922, %v2118
        %v2120 = vmul.f32 %v1924, %v2118
        %v2121 = vrcp.pop %v2045
        %v2122 = vmul.f32 %v2045, %v2121
        %v2123 = vsub.f32 1.0, %v2122
        %v2124 = vmul.f32 %v2121, %v2123
        %v2125 = vadd.f32 %v2121, %v2124
        %vm2126 = vweird.f32 %v2045
        %vm2127 = vweird.f32 %v2121
        %vm2128 = vmor %vm2126, %vm2127
        %v2129 = vsel %vm2128, %v2121, %v2125
        %v2130 = vand.u32 2147483647, %v2045
        %vm2131 = vcmp.eq.f32.partialorder %v2130, 8.507059e+37
        %v2132 = vand.u32 %v2045, 2147483648
        %v2133 = vor.u32 1.1754944e-38, %v2132
        %v2134 = vsel %vm2131, %v2133, %v2129
        %v2135 = vmul.f32 %v1926, %v2134
        %v2136 = vmul.f32 %v1928, %v2134
        %v2137 = vrcp.pop %v2046
        %v2138 = vmul.f32 %v2046, %v2137
        %v2139 = vsub.f32 1.0, %v2138
        %v2140 = vmul.f32 %v2137, %v2139
        %v2141 = vadd.f32 %v2137, %v2140
        %vm2142 = vweird.f32 %v2046
        %vm2143 = vweird.f32 %v2137
        %vm2144 = vmor %vm2142, %vm2143
        %v2145 = vsel %vm2144, %v2137, %v2141
        %v2146 = vand.u32 2147483647, %v2046
        %vm2147 = vcmp.eq.f32.partialorder %v2146, 8.507059e+37
        %v2148 = vand.u32 %v2046, 2147483648
        %v2149 = vor.u32 1.1754944e-38, %v2148
        %v2150 = vsel %vm2147, %v2149, %v2145
        %v2151 = vmul.f32 %v1930, %v2150
        %v2152 = vmul.f32 %v1932, %v2150
        %v2153 = vrcp.pop %v2047
        %v2154 = vmul.f32 %v2047, %v2153
        %v2155 = vsub.f32 1.0, %v2154
        %v2156 = vmul.f32 %v2153, %v2155
        %v2157 = vadd.f32 %v2153, %v2156
        %vm2158 = vweird.f32 %v2047
        %vm2159 = vweird.f32 %v2153
        %vm2160 = vmor %vm2158, %vm2159
        %v2161 = vsel %vm2160, %v2153, %v2157
        %v2162 = vand.u32 2147483647, %v2047
        %vm2163 = vcmp.eq.f32.partialorder %v2162, 8.507059e+37
        %v2164 = vand.u32 %v2047, 2147483648
        %v2165 = vor.u32 1.1754944e-38, %v2164
        %v2166 = vsel %vm2163, %v2165, %v2161
        %v2167 = vmul.f32 %v1934, %v2166
        %v2168 = vmul.f32 %v1936, %v2166
        %v2169 = vrcp.pop %v2048
        %v2170 = vmul.f32 %v2048, %v2169
        %v2171 = vsub.f32 1.0, %v2170
        %v2172 = vmul.f32 %v2169, %v2171
        %v2173 = vadd.f32 %v2169, %v2172
        %vm2174 = vweird.f32 %v2048
        %vm2175 = vweird.f32 %v2169
        %vm2176 = vmor %vm2174, %vm2175
        %v2177 = vsel %vm2176, %v2169, %v2173
        %v2178 = vand.u32 2147483647, %v2048
        %vm2179 = vcmp.eq.f32.partialorder %v2178, 8.507059e+37
        %v2180 = vand.u32 %v2048, 2147483648
        %v2181 = vor.u32 1.1754944e-38, %v2180
        %v2182 = vsel %vm2179, %v2181, %v2177
        %v2183 = vmul.f32 %v1938, %v2182
        %v2184 = vmul.f32 %v1940, %v2182
        %v2185 = vpack.c.bf16 %v2071, %v2071
        %v2186 = vpack.c.bf16 %v2072, %v2072
        %v2187 = vpack.c.bf16 %v2087, %v2087
        %v2188 = vpack.c.bf16 %v2088, %v2088
        %v2189 = vpack.c.bf16 %v2103, %v2103
        %v2190 = vpack.c.bf16 %v2104, %v2104
        %v2191 = vpack.c.bf16 %v2119, %v2119
        %v2192 = vpack.c.bf16 %v2120, %v2120
        %v2193 = vpack.c.bf16 %v2135, %v2135
        %v2194 = vpack.c.bf16 %v2136, %v2136
        %v2195 = vpack.c.bf16 %v2151, %v2151
        %v2196 = vpack.c.bf16 %v2152, %v2152
        %v2197 = vpack.c.bf16 %v2167, %v2167
        %v2198 = vpack.c.bf16 %v2168, %v2168
        %v2199 = vpack.c.bf16 %v2183, %v2183
        %v2200 = vpack.c.bf16 %v2184, %v2184
        %2202 = vset.pattern.permute.xlu0 0
        %2203 = vperm.xlu0 %2202, %v2185
        %v2204 = vpop.permute.xlu0 %2203
        %v2207 = vunpack.c.l.s4 839922192
        %v2208 = vunpack.c.0.s8 %v2207
        %v2209 = vperm.slane %v2204, %v2208
        %2211 = vset.pattern.permute.xlu0 0
        %2212 = vperm.xlu0 %2211, %v2186
        %v2213 = vpop.permute.xlu0 %2212
        %v2216 = vunpack.c.l.s4 839922192
        %v2217 = vunpack.c.0.s8 %v2216
        %v2218 = vperm.slane %v2213, %v2217
        %2220 = vset.pattern.permute.xlu0 0
        %2221 = vperm.xlu0 %2220, %v2187
        %v2222 = vpop.permute.xlu0 %2221
        %v2225 = vunpack.c.l.s4 839922192
        %v2226 = vunpack.c.0.s8 %v2225
        %v2227 = vperm.slane %v2222, %v2226
        %2229 = vset.pattern.permute.xlu0 0
        %2230 = vperm.xlu0 %2229, %v2188
        %v2231 = vpop.permute.xlu0 %2230
        %v2234 = vunpack.c.l.s4 839922192
        %v2235 = vunpack.c.0.s8 %v2234
        %v2236 = vperm.slane %v2231, %v2235
        %2238 = vset.pattern.permute.xlu0 0
        %2239 = vperm.xlu0 %2238, %v2189
        %v2240 = vpop.permute.xlu0 %2239
        %v2243 = vunpack.c.l.s4 839922192
        %v2244 = vunpack.c.0.s8 %v2243
        %v2245 = vperm.slane %v2240, %v2244
        %2247 = vset.pattern.permute.xlu0 0
        %2248 = vperm.xlu0 %2247, %v2190
        %v2249 = vpop.permute.xlu0 %2248
        %v2252 = vunpack.c.l.s4 839922192
        %v2253 = vunpack.c.0.s8 %v2252
        %v2254 = vperm.slane %v2249, %v2253
        %2256 = vset.pattern.permute.xlu0 0
        %2257 = vperm.xlu0 %2256, %v2191
        %v2258 = vpop.permute.xlu0 %2257
        %v2261 = vunpack.c.l.s4 839922192
        %v2262 = vunpack.c.0.s8 %v2261
        %v2263 = vperm.slane %v2258, %v2262
        %2265 = vset.pattern.permute.xlu0 0
        %2266 = vperm.xlu0 %2265, %v2192
        %v2267 = vpop.permute.xlu0 %2266
        %v2270 = vunpack.c.l.s4 839922192
        %v2271 = vunpack.c.0.s8 %v2270
        %v2272 = vperm.slane %v2267, %v2271
        %2274 = vset.pattern.permute.xlu0 0
        %2275 = vperm.xlu0 %2274, %v2193
        %v2276 = vpop.permute.xlu0 %2275
        %v2279 = vunpack.c.l.s4 839922192
        %v2280 = vunpack.c.0.s8 %v2279
        %v2281 = vperm.slane %v2276, %v2280
        %2283 = vset.pattern.permute.xlu0 0
        %2284 = vperm.xlu0 %2283, %v2194
        %v2285 = vpop.permute.xlu0 %2284
        %v2288 = vunpack.c.l.s4 839922192
        %v2289 = vunpack.c.0.s8 %v2288
        %v2290 = vperm.slane %v2285, %v2289
        %2292 = vset.pattern.permute.xlu0 0
        %2293 = vperm.xlu0 %2292, %v2195
        %v2294 = vpop.permute.xlu0 %2293
        %v2297 = vunpack.c.l.s4 839922192
        %v2298 = vunpack.c.0.s8 %v2297
        %v2299 = vperm.slane %v2294, %v2298
        %2301 = vset.pattern.permute.xlu0 0
        %2302 = vperm.xlu0 %2301, %v2196
        %v2303 = vpop.permute.xlu0 %2302
        %v2306 = vunpack.c.l.s4 839922192
        %v2307 = vunpack.c.0.s8 %v2306
        %v2308 = vperm.slane %v2303, %v2307
        %2310 = vset.pattern.permute.xlu0 0
        %2311 = vperm.xlu0 %2310, %v2197
        %v2312 = vpop.permute.xlu0 %2311
        %v2315 = vunpack.c.l.s4 839922192
        %v2316 = vunpack.c.0.s8 %v2315
        %v2317 = vperm.slane %v2312, %v2316
        %2319 = vset.pattern.permute.xlu0 0
        %2320 = vperm.xlu0 %2319, %v2198
        %v2321 = vpop.permute.xlu0 %2320
        %v2324 = vunpack.c.l.s4 839922192
        %v2325 = vunpack.c.0.s8 %v2324
        %v2326 = vperm.slane %v2321, %v2325
        %2328 = vset.pattern.permute.xlu0 0
        %2329 = vperm.xlu0 %2328, %v2199
        %v2330 = vpop.permute.xlu0 %2329
        %v2333 = vunpack.c.l.s4 839922192
        %v2334 = vunpack.c.0.s8 %v2333
        %v2335 = vperm.slane %v2330, %v2334
        %2337 = vset.pattern.permute.xlu0 0
        %2338 = vperm.xlu0 %2337, %v2200
        %v2339 = vpop.permute.xlu0 %2338
        %v2342 = vunpack.c.l.s4 839922192
        %v2343 = vunpack.c.0.s8 %v2342
        %v2344 = vperm.slane %v2339, %v2343
        %v2345 = vunpack.c.l.bf16 %v2209
        %v2346 = vunpack.c.l.bf16 %v2218
        %v2347 = vunpack.c.l.bf16 %v2227
        %v2348 = vunpack.c.l.bf16 %v2236
        %v2349 = vunpack.c.l.bf16 %v2245
        %v2350 = vunpack.c.l.bf16 %v2254
        %v2351 = vunpack.c.l.bf16 %v2263
        %v2352 = vunpack.c.l.bf16 %v2272
        %v2353 = vunpack.c.l.bf16 %v2281
        %v2354 = vunpack.c.l.bf16 %v2290
        %v2355 = vunpack.c.l.bf16 %v2299
        %v2356 = vunpack.c.l.bf16 %v2308
        %v2357 = vunpack.c.l.bf16 %v2317
        %v2358 = vunpack.c.l.bf16 %v2326
        %v2359 = vunpack.c.l.bf16 %v2335
        %v2360 = vunpack.c.l.bf16 %v2344
        %v2361 = vunpack.c.l.bf16 %v519
        %v2362 = vunpack.c.l.bf16 %v520
        %v2363 = vunpack.c.l.bf16 %v521
        %v2364 = vunpack.c.l.bf16 %v522
        %v2365 = vunpack.c.l.bf16 %v523
        %v2366 = vunpack.c.l.bf16 %v524
        %v2367 = vunpack.c.l.bf16 %v525
        %v2368 = vunpack.c.l.bf16 %v526
        %v2369 = vunpack.c.l.bf16 %v527
        %v2370 = vunpack.c.l.bf16 %v528
        %v2371 = vunpack.c.l.bf16 %v529
        %v2372 = vunpack.c.l.bf16 %v530
        %v2373 = vunpack.c.l.bf16 %v531
        %v2374 = vunpack.c.l.bf16 %v532
        %v2375 = vunpack.c.l.bf16 %v533
        %v2376 = vunpack.c.l.bf16 %v534
        %v2377 = vmul.f32 %v2345, %v2361
        %v2378 = vmul.f32 %v2346, %v2362
        %v2379 = vmul.f32 %v2347, %v2363
        %v2380 = vmul.f32 %v2348, %v2364
        %v2381 = vmul.f32 %v2349, %v2365
        %v2382 = vmul.f32 %v2350, %v2366
        %v2383 = vmul.f32 %v2351, %v2367
        %v2384 = vmul.f32 %v2352, %v2368
        %v2385 = vmul.f32 %v2353, %v2369
        %v2386 = vmul.f32 %v2354, %v2370
        %v2387 = vmul.f32 %v2355, %v2371
        %v2388 = vmul.f32 %v2356, %v2372
        %v2389 = vmul.f32 %v2357, %v2373
        %v2390 = vmul.f32 %v2358, %v2374
        %v2391 = vmul.f32 %v2359, %v2375
        %v2392 = vmul.f32 %v2360, %v2376
        %v2393 = vpack.c.bf16 %v2378, %v2377
        %v2394 = vpack.c.bf16 %v2380, %v2379
        %v2395 = vpack.c.bf16 %v2382, %v2381
        %v2396 = vpack.c.bf16 %v2384, %v2383
        %v2397 = vpack.c.bf16 %v2386, %v2385
        %v2398 = vpack.c.bf16 %v2388, %v2387
        %v2399 = vpack.c.bf16 %v2390, %v2389
        %v2400 = vpack.c.bf16 %v2392, %v2391
        %v2401 = vunpack.c.l.bf16 %v2393
        %v2402 = vunpack.c.h.bf16 %v2393
        %v2403 = vunpack.c.l.bf16 %v2394
        %v2404 = vunpack.c.h.bf16 %v2394
        %v2405 = vunpack.c.l.bf16 %v2395
        %v2406 = vunpack.c.h.bf16 %v2395
        %v2407 = vunpack.c.l.bf16 %v2396
        %v2408 = vunpack.c.h.bf16 %v2396
        %v2409 = vunpack.c.l.bf16 %v2397
        %v2410 = vunpack.c.h.bf16 %v2397
        %v2411 = vunpack.c.l.bf16 %v2398
        %v2412 = vunpack.c.h.bf16 %v2398
        %v2413 = vunpack.c.l.bf16 %v2399
        %v2414 = vunpack.c.h.bf16 %v2399
        %v2415 = vunpack.c.l.bf16 %v2400
        %v2416 = vunpack.c.h.bf16 %v2400
        %v2417 = vadd.f32 %v2401, %v2402
        %v2418 = vrot.slane %v2417, 4
        %v2419 = vadd.f32 %v2417, %v2418
        %v2420 = vrot.slane %v2419, 2
        %v2421 = vadd.f32 %v2419, %v2420
        %v2422 = vrot.slane %v2421, 1
        %v2423 = vadd.f32 %v2421, %v2422
        %v2424 = vadd.f32 %v2403, %v2404
        %v2425 = vrot.slane %v2424, 4
        %v2426 = vadd.f32 %v2424, %v2425
        %v2427 = vrot.slane %v2426, 2
        %v2428 = vadd.f32 %v2426, %v2427
        %v2429 = vrot.slane %v2428, 1
        %v2430 = vadd.f32 %v2428, %v2429
        %v2431 = vadd.f32 %v2405, %v2406
        %v2432 = vrot.slane %v2431, 4
        %v2433 = vadd.f32 %v2431, %v2432
        %v2434 = vrot.slane %v2433, 2
        %v2435 = vadd.f32 %v2433, %v2434
        %v2436 = vrot.slane %v2435, 1
        %v2437 = vadd.f32 %v2435, %v2436
        %v2438 = vadd.f32 %v2407, %v2408
        %v2439 = vrot.slane %v2438, 4
        %v2440 = vadd.f32 %v2438, %v2439
        %v2441 = vrot.slane %v2440, 2
        %v2442 = vadd.f32 %v2440, %v2441
        %v2443 = vrot.slane %v2442, 1
        %v2444 = vadd.f32 %v2442, %v2443
        %v2445 = vadd.f32 %v2409, %v2410
        %v2446 = vrot.slane %v2445, 4
        %v2447 = vadd.f32 %v2445, %v2446
        %v2448 = vrot.slane %v2447, 2
        %v2449 = vadd.f32 %v2447, %v2448
        %v2450 = vrot.slane %v2449, 1
        %v2451 = vadd.f32 %v2449, %v2450
        %v2452 = vadd.f32 %v2411, %v2412
        %v2453 = vrot.slane %v2452, 4
        %v2454 = vadd.f32 %v2452, %v2453
        %v2455 = vrot.slane %v2454, 2
        %v2456 = vadd.f32 %v2454, %v2455
        %v2457 = vrot.slane %v2456, 1
        %v2458 = vadd.f32 %v2456, %v2457
        %v2459 = vadd.f32 %v2413, %v2414
        %v2460 = vrot.slane %v2459, 4
        %v2461 = vadd.f32 %v2459, %v2460
        %v2462 = vrot.slane %v2461, 2
        %v2463 = vadd.f32 %v2461, %v2462
        %v2464 = vrot.slane %v2463, 1
        %v2465 = vadd.f32 %v2463, %v2464
        %v2466 = vadd.f32 %v2415, %v2416
        %v2467 = vrot.slane %v2466, 4
        %v2468 = vadd.f32 %v2466, %v2467
        %v2469 = vrot.slane %v2468, 2
        %v2470 = vadd.f32 %v2468, %v2469
        %v2471 = vrot.slane %v2470, 1
        %v2472 = vadd.f32 %v2470, %v2471
        %v2473 = vld [vmem:[#allocation9 + $0x3c0] sm:$0xff]
        %v2474 = vld [vmem:[#allocation9 + $0x3c8] sm:$0xff]
        %v2475 = vld [vmem:[#allocation9 + $0x3d0] sm:$0xf]
        %v2476 = vld [vmem:[#allocation9 + $0x3d4] sm:$0xff]
        %v2477 = vld [vmem:[#allocation9 + $0x3dc] sm:$0xff]
        %v2478 = vld [vmem:[#allocation9 + $0x3e4] sm:$0xf]
        %v2479 = vld [vmem:[#allocation9 + $0x3e8] sm:$0xff]
        %v2480 = vld [vmem:[#allocation9 + $0x3f0] sm:$0xff]
        %v2481 = vld [vmem:[#allocation9 + $0x3f8] sm:$0xf]
        %v2482 = vld [vmem:[#allocation9 + $0x3fc] sm:$0xff]
        %v2483 = vld [vmem:[#allocation9 + $0x404] sm:$0xff]
        %v2484 = vld [vmem:[#allocation9 + $0x40c] sm:$0xf]
        %v2485 = vld [vmem:[#allocation9 + $0x410] sm:$0xff]
        %v2486 = vld [vmem:[#allocation9 + $0x418] sm:$0xff]
        %v2487 = vld [vmem:[#allocation9 + $0x420] sm:$0xf]
        %v2488 = vld [vmem:[#allocation9 + $0x424] sm:$0xff]
        %v2489 = vld [vmem:[#allocation9 + $0x42c] sm:$0xff]
        %v2490 = vld [vmem:[#allocation9 + $0x434] sm:$0xf]
        %v2491 = vld [vmem:[#allocation9 + $0x438] sm:$0xff]
        %v2492 = vld [vmem:[#allocation9 + $0x440] sm:$0xff]
        %v2493 = vld [vmem:[#allocation9 + $0x448] sm:$0xf]
        %v2494 = vld [vmem:[#allocation9 + $0x44c] sm:$0xff]
        %v2495 = vld [vmem:[#allocation9 + $0x454] sm:$0xff]
        %v2496 = vld [vmem:[#allocation9 + $0x45c] sm:$0xf]
        %v2497 = vld [vmem:[#allocation9 + $0x460] sm:$0xff]
        %v2498 = vld [vmem:[#allocation9 + $0x468] sm:$0xff]
        %v2499 = vld [vmem:[#allocation9 + $0x470] sm:$0xf]
        %v2500 = vld [vmem:[#allocation9 + $0x474] sm:$0xff]
        %v2501 = vld [vmem:[#allocation9 + $0x47c] sm:$0xff]
        %v2502 = vld [vmem:[#allocation9 + $0x484] sm:$0xf]
        %v2503 = vld [vmem:[#allocation9 + $0x488] sm:$0xff]
        %v2504 = vld [vmem:[#allocation9 + $0x490] sm:$0xff]
        %v2505 = vld [vmem:[#allocation9 + $0x498] sm:$0xf]
        %v2506 = vld [vmem:[#allocation9 + $0x49c] sm:$0xff]
        %v2507 = vld [vmem:[#allocation9 + $0x4a4] sm:$0xff]
        %v2508 = vld [vmem:[#allocation9 + $0x4ac] sm:$0xf]
        %v2509 = vld [vmem:[#allocation9 + $0x4b0] sm:$0xff]
        %v2510 = vld [vmem:[#allocation9 + $0x4b8] sm:$0xff]
        %v2511 = vld [vmem:[#allocation9 + $0x4c0] sm:$0xf]
        %v2512 = vld [vmem:[#allocation9 + $0x4c4] sm:$0xff]
        %v2513 = vld [vmem:[#allocation9 + $0x4cc] sm:$0xff]
        %v2514 = vld [vmem:[#allocation9 + $0x4d4] sm:$0xf]
        %v2515 = vld [vmem:[#allocation9 + $0x4d8] sm:$0xff]
        %v2516 = vld [vmem:[#allocation9 + $0x4e0] sm:$0xff]
        %v2517 = vld [vmem:[#allocation9 + $0x4e8] sm:$0xf]
        %v2518 = vld [vmem:[#allocation9 + $0x4ec] sm:$0xff]
        %v2519 = vld [vmem:[#allocation9 + $0x4f4] sm:$0xff]
        %v2520 = vld [vmem:[#allocation9 + $0x4fc] sm:$0xf]
        %v2521 = vld [vmem:[#allocation9 + $0x500] sm:$0xff]
        %v2522 = vld [vmem:[#allocation9 + $0x508] sm:$0xff]
        %v2523 = vld [vmem:[#allocation9 + $0x510] sm:$0xf]
        %v2524 = vld [vmem:[#allocation9 + $0x514] sm:$0xff]
        %v2525 = vld [vmem:[#allocation9 + $0x51c] sm:$0xff]
        %v2526 = vld [vmem:[#allocation9 + $0x524] sm:$0xf]
        %v2527 = vld [vmem:[#allocation9 + $0x528] sm:$0xff]
        %v2528 = vld [vmem:[#allocation9 + $0x530] sm:$0xff]
        %v2529 = vld [vmem:[#allocation9 + $0x538] sm:$0xf]
        %v2530 = vld [vmem:[#allocation9 + $0x53c] sm:$0xff]
        %v2531 = vld [vmem:[#allocation9 + $0x544] sm:$0xff]
        %v2532 = vld [vmem:[#allocation9 + $0x54c] sm:$0xf]
        %v2533 = vld [vmem:[#allocation9 + $0x550] sm:$0xff]
        %v2534 = vld [vmem:[#allocation9 + $0x558] sm:$0xff]
        %v2535 = vld [vmem:[#allocation9 + $0x560] sm:$0xf]
        %v2536 = vld [vmem:[#allocation9 + $0x564] sm:$0xff]
        %v2537 = vld [vmem:[#allocation9 + $0x56c] sm:$0xff]
        %v2538 = vld [vmem:[#allocation9 + $0x574] sm:$0xf]
        %v2539 = vld [vmem:[#allocation9 + $0x578] sm:$0xff]
        %v2540 = vld [vmem:[#allocation9 + $0x580] sm:$0xff]
        %v2541 = vld [vmem:[#allocation9 + $0x588] sm:$0xf]
        %v2542 = vld [vmem:[#allocation9 + $0x58c] sm:$0xff]
        %v2543 = vld [vmem:[#allocation9 + $0x594] sm:$0xff]
        %v2544 = vld [vmem:[#allocation9 + $0x59c] sm:$0xf]
        %v2545 = vld [vmem:[#allocation9 + $0x5a0] sm:$0xff]
        %v2546 = vld [vmem:[#allocation9 + $0x5a8] sm:$0xff]
        %v2547 = vld [vmem:[#allocation9 + $0x5b0] sm:$0xf]
        %v2548 = vld [vmem:[#allocation9 + $0x5b4] sm:$0xff]
        %v2549 = vld [vmem:[#allocation9 + $0x5bc] sm:$0xff]
        %v2550 = vld [vmem:[#allocation9 + $0x5c4] sm:$0xf]
        %v2551 = vld [vmem:[#allocation9 + $0x5c8] sm:$0xff]
        %v2552 = vld [vmem:[#allocation9 + $0x5d0] sm:$0xff]
        %v2553 = vld [vmem:[#allocation9 + $0x5d8] sm:$0xf]
        %v2554 = vld [vmem:[#allocation9 + $0x5dc] sm:$0xff]
        %v2555 = vld [vmem:[#allocation9 + $0x5e4] sm:$0xff]
        %v2556 = vld [vmem:[#allocation9 + $0x5ec] sm:$0xf]
        %v2557 = vld [vmem:[#allocation9 + $0x5f0] sm:$0xff]
        %v2558 = vld [vmem:[#allocation9 + $0x5f8] sm:$0xff]
        %v2559 = vld [vmem:[#allocation9 + $0x600] sm:$0xf]
        %v2560 = vld [vmem:[#allocation9 + $0x604] sm:$0xff]
        %v2561 = vld [vmem:[#allocation9 + $0x60c] sm:$0xff]
        %v2562 = vld [vmem:[#allocation9 + $0x614] sm:$0xf]
        %v2563 = vld [vmem:[#allocation9 + $0x618] sm:$0xff]
        %v2564 = vld [vmem:[#allocation9 + $0x620] sm:$0xff]
        %v2565 = vld [vmem:[#allocation9 + $0x628] sm:$0xf]
        %v2566 = vld [vmem:[#allocation9 + $0x62c] sm:$0xff]
        %v2567 = vld [vmem:[#allocation9 + $0x634] sm:$0xff]
        %v2568 = vld [vmem:[#allocation9 + $0x63c] sm:$0xf]
        %v2569 = vld [vmem:[#allocation9 + $0x640] sm:$0xff]
        %v2570 = vld [vmem:[#allocation9 + $0x648] sm:$0xff]
        %v2571 = vld [vmem:[#allocation9 + $0x650] sm:$0xf]
        %v2572 = vld [vmem:[#allocation9 + $0x654] sm:$0xff]
        %v2573 = vld [vmem:[#allocation9 + $0x65c] sm:$0xff]
        %v2574 = vld [vmem:[#allocation9 + $0x664] sm:$0xf]
        %v2575 = vld [vmem:[#allocation9 + $0x668] sm:$0xff]
        %v2576 = vld [vmem:[#allocation9 + $0x670] sm:$0xff]
        %v2577 = vld [vmem:[#allocation9 + $0x678] sm:$0xf]
        %v2578 = vld [vmem:[#allocation9 + $0x67c] sm:$0xff]
        %v2579 = vld [vmem:[#allocation9 + $0x684] sm:$0xff]
        %v2580 = vld [vmem:[#allocation9 + $0x68c] sm:$0xf]
        %v2581 = vld [vmem:[#allocation9 + $0x690] sm:$0xff]
        %v2582 = vld [vmem:[#allocation9 + $0x698] sm:$0xff]
        %v2583 = vld [vmem:[#allocation9 + $0x6a0] sm:$0xf]
        %v2584 = vld [vmem:[#allocation9 + $0x6a4] sm:$0xff]
        %v2585 = vld [vmem:[#allocation9 + $0x6ac] sm:$0xff]
        %v2586 = vld [vmem:[#allocation9 + $0x6b4] sm:$0xf]
        %v2587 = vld [vmem:[#allocation9 + $0x6b8] sm:$0xff]
        %v2588 = vld [vmem:[#allocation9 + $0x6c0] sm:$0xff]
        %v2589 = vld [vmem:[#allocation9 + $0x6c8] sm:$0xf]
        %v2590 = vld [vmem:[#allocation9 + $0x6cc] sm:$0xff]
        %v2591 = vld [vmem:[#allocation9 + $0x6d4] sm:$0xff]
        %v2592 = vld [vmem:[#allocation9 + $0x6dc] sm:$0xf]
        %v2593 = vld [vmem:[#allocation9 + $0x6e0] sm:$0xff]
        %v2594 = vld [vmem:[#allocation9 + $0x6e8] sm:$0xff]
        %v2595 = vld [vmem:[#allocation9 + $0x6f0] sm:$0xf]
        %v2596 = vld [vmem:[#allocation9 + $0x6f4] sm:$0xff]
        %v2597 = vld [vmem:[#allocation9 + $0x6fc] sm:$0xff]
        %v2598 = vld [vmem:[#allocation9 + $0x704] sm:$0xf]
        %v2599 = vld [vmem:[#allocation9 + $0x708] sm:$0xff]
        %v2600 = vld [vmem:[#allocation9 + $0x710] sm:$0xff]
        %v2601 = vld [vmem:[#allocation9 + $0x718] sm:$0xf]
        %v2602 = vld [vmem:[#allocation9 + $0x71c] sm:$0xff]
        %v2603 = vld [vmem:[#allocation9 + $0x724] sm:$0xff]
        %v2604 = vld [vmem:[#allocation9 + $0x72c] sm:$0xf]
        %v2605 = vld [vmem:[#allocation9 + $0x730] sm:$0xff]
        %v2606 = vld [vmem:[#allocation9 + $0x738] sm:$0xff]
        %v2607 = vld [vmem:[#allocation9 + $0x740] sm:$0xf]
        %v2608 = vld [vmem:[#allocation9 + $0x744] sm:$0xff]
        %v2609 = vld [vmem:[#allocation9 + $0x74c] sm:$0xff]
        %v2610 = vld [vmem:[#allocation9 + $0x754] sm:$0xf]
        %v2611 = vld [vmem:[#allocation9 + $0x758] sm:$0xff]
        %v2612 = vld [vmem:[#allocation9 + $0x760] sm:$0xff]
        %v2613 = vld [vmem:[#allocation9 + $0x768] sm:$0xf]
        %v2614 = vld [vmem:[#allocation9 + $0x76c] sm:$0xff]
        %v2615 = vld [vmem:[#allocation9 + $0x774] sm:$0xff]
        %v2616 = vld [vmem:[#allocation9 + $0x77c] sm:$0xf]
        %s2617 = scalar_lea.vmem [#allocation12], 1
        %v2618 = vld [vmem:[%s2617] ss:$4 sm:$0x1f]
        %v2619 = vpack.c.bf16 %v568, %v568
        %v2668 = vunpack.c.l.b16 %v2569
        %v2669 = vunpack.c.h.b16 %v2569
        %v2670 = vunpack.c.l.b16 %v2570
        %v2671 = vunpack.c.h.b16 %v2570
        %v2672 = vunpack.c.l.b16 %v2571
        %v2673 = vunpack.c.l.b16 %v2572
        %v2674 = vunpack.c.h.b16 %v2572
        %v2675 = vunpack.c.l.b16 %v2573
        %v2676 = vunpack.c.h.b16 %v2573
        %v2677 = vunpack.c.l.b16 %v2574
        %v2678 = vunpack.c.l.b16 %v2575
        %v2679 = vunpack.c.h.b16 %v2575
        %v2680 = vunpack.c.l.b16 %v2576
        %v2681 = vunpack.c.h.b16 %v2576
        %v2682 = vunpack.c.l.b16 %v2577
        %v2683 = vunpack.c.l.b16 %v2578
        %v2684 = vunpack.c.h.b16 %v2578
        %v2685 = vunpack.c.l.b16 %v2579
        %v2686 = vunpack.c.h.b16 %v2579
        %v2687 = vunpack.c.l.b16 %v2580
        %v2688 = vunpack.c.l.b16 %v2581
        %v2689 = vunpack.c.h.b16 %v2581
        %v2690 = vunpack.c.l.b16 %v2582
        %v2691 = vunpack.c.h.b16 %v2582
        %v2692 = vunpack.c.l.b16 %v2583
        %v2693 = vunpack.c.l.b16 %v2584
        %v2694 = vunpack.c.h.b16 %v2584
        %v2695 = vunpack.c.l.b16 %v2585
        %v2696 = vunpack.c.h.b16 %v2585
        %v2697 = vunpack.c.l.b16 %v2586
        %v2698 = vunpack.c.l.b16 %v2587
        %v2699 = vunpack.c.h.b16 %v2587
        %v2700 = vunpack.c.l.b16 %v2588
        %v2701 = vunpack.c.h.b16 %v2588
        %v2702 = vunpack.c.l.b16 %v2589
        %v2703 = vunpack.c.l.b16 %v2590
        %v2704 = vunpack.c.h.b16 %v2590
        %v2705 = vunpack.c.l.b16 %v2591
        %v2706 = vunpack.c.h.b16 %v2591
        %v2707 = vunpack.c.l.b16 %v2592
        %v2708 = vunpack.c.l.b16 %v2593
        %v2709 = vunpack.c.h.b16 %v2593
        %v2710 = vunpack.c.l.b16 %v2594
        %v2711 = vunpack.c.h.b16 %v2594
        %v2712 = vunpack.c.l.b16 %v2595
        %v2713 = vunpack.c.l.b16 %v2596
        %v2714 = vunpack.c.h.b16 %v2596
        %v2715 = vunpack.c.l.b16 %v2597
        %v2716 = vunpack.c.h.b16 %v2597
        %v2717 = vunpack.c.l.b16 %v2598
        %v2718 = vunpack.c.l.b16 %v2599
        %v2719 = vunpack.c.h.b16 %v2599
        %v2720 = vunpack.c.l.b16 %v2600
        %v2721 = vunpack.c.h.b16 %v2600
        %v2722 = vunpack.c.l.b16 %v2601
        %v2723 = vunpack.c.l.b16 %v2602
        %v2724 = vunpack.c.h.b16 %v2602
        %v2725 = vunpack.c.l.b16 %v2603
        %v2726 = vunpack.c.h.b16 %v2603
        %v2727 = vunpack.c.l.b16 %v2604
        %v2728 = vunpack.c.l.b16 %v2605
        %v2729 = vunpack.c.h.b16 %v2605
        %v2730 = vunpack.c.l.b16 %v2606
        %v2731 = vunpack.c.h.b16 %v2606
        %v2732 = vunpack.c.l.b16 %v2607
        %v2733 = vunpack.c.l.b16 %v2608
        %v2734 = vunpack.c.h.b16 %v2608
        %v2735 = vunpack.c.l.b16 %v2609
        %v2736 = vunpack.c.h.b16 %v2609
        %v2737 = vunpack.c.l.b16 %v2610
        %v2738 = vunpack.c.l.b16 %v2611
        %v2739 = vunpack.c.h.b16 %v2611
        %v2740 = vunpack.c.l.b16 %v2612
        %v2741 = vunpack.c.h.b16 %v2612
        %v2742 = vunpack.c.l.b16 %v2613
        %v2743 = vunpack.c.l.b16 %v2614
        %v2744 = vunpack.c.h.b16 %v2614
        %v2745 = vunpack.c.l.b16 %v2615
        %v2746 = vunpack.c.h.b16 %v2615
        %v2747 = vunpack.c.l.b16 %v2616
        %v2748 = vpack.c.b16 %v2673, %v2668
        %v2749 = vpack.c.b16 %v2674, %v2669
        %v2750 = vpack.c.b16 %v2675, %v2670
        %v2751 = vpack.c.b16 %v2676, %v2671
        %v2752 = vpack.c.b16 %v2677, %v2672
        %v2753 = vpack.c.b16 %v2683, %v2678
        %v2754 = vpack.c.b16 %v2684, %v2679
        %v2755 = vpack.c.b16 %v2685, %v2680
        %v2756 = vpack.c.b16 %v2686, %v2681
        %v2757 = vpack.c.b16 %v2687, %v2682
        %v2758 = vpack.c.b16 %v2693, %v2688
        %v2759 = vpack.c.b16 %v2694, %v2689
        %v2760 = vpack.c.b16 %v2695, %v2690
        %v2761 = vpack.c.b16 %v2696, %v2691
        %v2762 = vpack.c.b16 %v2697, %v2692
        %v2763 = vpack.c.b16 %v2703, %v2698
        %v2764 = vpack.c.b16 %v2704, %v2699
        %v2765 = vpack.c.b16 %v2705, %v2700
        %v2766 = vpack.c.b16 %v2706, %v2701
        %v2767 = vpack.c.b16 %v2707, %v2702
        %v2768 = vpack.c.b16 %v2713, %v2708
        %v2769 = vpack.c.b16 %v2714, %v2709
        %v2770 = vpack.c.b16 %v2715, %v2710
        %v2771 = vpack.c.b16 %v2716, %v2711
        %v2772 = vpack.c.b16 %v2717, %v2712
        %v2773 = vpack.c.b16 %v2723, %v2718
        %v2774 = vpack.c.b16 %v2724, %v2719
        %v2775 = vpack.c.b16 %v2725, %v2720
        %v2776 = vpack.c.b16 %v2726, %v2721
        %v2777 = vpack.c.b16 %v2727, %v2722
        %v2778 = vpack.c.b16 %v2733, %v2728
        %v2779 = vpack.c.b16 %v2734, %v2729
        %v2780 = vpack.c.b16 %v2735, %v2730
        %v2781 = vpack.c.b16 %v2736, %v2731
        %v2782 = vpack.c.b16 %v2737, %v2732
        %v2783 = vpack.c.b16 %v2743, %v2738
        %v2784 = vpack.c.b16 %v2744, %v2739
        %v2785 = vpack.c.b16 %v2745, %v2740
        %v2786 = vpack.c.b16 %v2746, %v2741
        %v2787 = vpack.c.b16 %v2747, %v2742
        %2828 = vmatpush.bf16.msra.mxu0 %v2783
        %2829 = vmatpush.bf16.msra.mxu0 %v2778
        %2830 = vmatpush.bf16.msra.mxu0 %v2773
        %2831 = vmatpush.bf16.msra.mxu0 %v2768
        %2832 = vmatpush.bf16.msra.mxu0 %v2763
        %2833 = vmatpush.bf16.msra.mxu0 %v2758
        %2834 = vmatpush.bf16.msra.mxu0 %v2753
        %2835 = vmatpush.bf16.msra.mxu0 %v2748
        %2836 = vmatmul.bf16.gmra.mxu0 %v2619
        %v2837 = vpop.f32.mrf.mxu0
        %v2838 = vadd.f32 0.0, %v2837
        %v2839 = vpop.f32.mrf.mxu0
        %2840 = vdwg.mxu0
        %2841 = vmatpush.bf16.msra.mxu0 %v2784
        %2842 = vmatpush.bf16.msra.mxu0 %v2779
        %2843 = vmatpush.bf16.msra.mxu0 %v2774
        %2844 = vmatpush.bf16.msra.mxu0 %v2769
        %2845 = vmatpush.bf16.msra.mxu0 %v2764
        %2846 = vmatpush.bf16.msra.mxu0 %v2759
        %2847 = vmatpush.bf16.msra.mxu0 %v2754
        %2848 = vmatpush.bf16.msra.mxu0 %v2749
        %2849 = vmatmul.bf16.gmra.mxu0 %v2619
        %v2850 = vpop.f32.mrf.mxu0
        %v2851 = vadd.f32 0.0, %v2850
        %v2852 = vpop.f32.mrf.mxu0
        %2853 = vdwg.mxu0
        %2854 = vmatpush.bf16.msra.mxu0 %v2785
        %2855 = vmatpush.bf16.msra.mxu0 %v2780
        %2856 = vmatpush.bf16.msra.mxu0 %v2775
        %2857 = vmatpush.bf16.msra.mxu0 %v2770
        %2858 = vmatpush.bf16.msra.mxu0 %v2765
        %2859 = vmatpush.bf16.msra.mxu0 %v2760
        %2860 = vmatpush.bf16.msra.mxu0 %v2755
        %2861 = vmatpush.bf16.msra.mxu0 %v2750
        %2862 = vmatmul.bf16.gmra.mxu0 %v2619
        %v2863 = vpop.f32.mrf.mxu0
        %v2864 = vadd.f32 0.0, %v2863
        %v2865 = vpop.f32.mrf.mxu0
        %2866 = vdwg.mxu0
        %2867 = vmatpush.bf16.msra.mxu0 %v2786
        %2868 = vmatpush.bf16.msra.mxu0 %v2781
        %2869 = vmatpush.bf16.msra.mxu0 %v2776
        %2870 = vmatpush.bf16.msra.mxu0 %v2771
        %2871 = vmatpush.bf16.msra.mxu0 %v2766
        %2872 = vmatpush.bf16.msra.mxu0 %v2761
        %2873 = vmatpush.bf16.msra.mxu0 %v2756
        %2874 = vmatpush.bf16.msra.mxu0 %v2751
        %2875 = vmatmul.bf16.gmra.mxu0 %v2619
        %v2876 = vpop.f32.mrf.mxu0
        %v2877 = vadd.f32 0.0, %v2876
        %v2878 = vpop.f32.mrf.mxu0
        %2879 = vdwg.mxu0
        %2880 = vmatpush.bf16.msra.mxu0 %v2787
        %2881 = vmatpush.bf16.msra.mxu0 %v2782
        %2882 = vmatpush.bf16.msra.mxu0 %v2777
        %2883 = vmatpush.bf16.msra.mxu0 %v2772
        %2884 = vmatpush.bf16.msra.mxu0 %v2767
        %2885 = vmatpush.bf16.msra.mxu0 %v2762
        %2886 = vmatpush.bf16.msra.mxu0 %v2757
        %2887 = vmatpush.bf16.msra.mxu0 %v2752
        %2888 = vmatmul.bf16.gmra.mxu0 %v2619
        %v2889 = vpop.f32.mrf.mxu0
        %v2890 = vadd.f32 0.0, %v2889
        %v2891 = vpop.f32.mrf.mxu0
        %2892 = vdwg.mxu0
        %v2894 = vperm.slane %v2618, 0
        %v2895 = vperm.slane %v2618, 1
        %v2896 = vperm.slane %v2618, 2
        %v2897 = vperm.slane %v2618, 3
        %v2898 = vperm.slane %v2618, 4
        %v2904 = vadd.f32 %v2894, %v2838
        %v2905 = vadd.f32 %v2895, %v2851
        %v2906 = vadd.f32 %v2896, %v2864
        %v2907 = vadd.f32 %v2897, %v2877
        %v2908 = vadd.f32 %v2898, %v2890
        %v2957 = vunpack.c.l.b16 %v2473
        %v2958 = vunpack.c.h.b16 %v2473
        %v2959 = vunpack.c.l.b16 %v2474
        %v2960 = vunpack.c.h.b16 %v2474
        %v2961 = vunpack.c.l.b16 %v2475
        %v2962 = vunpack.c.l.b16 %v2476
        %v2963 = vunpack.c.h.b16 %v2476
        %v2964 = vunpack.c.l.b16 %v2477
        %v2965 = vunpack.c.h.b16 %v2477
        %v2966 = vunpack.c.l.b16 %v2478
        %v2967 = vunpack.c.l.b16 %v2479
        %v2968 = vunpack.c.h.b16 %v2479
        %v2969 = vunpack.c.l.b16 %v2480
        %v2970 = vunpack.c.h.b16 %v2480
        %v2971 = vunpack.c.l.b16 %v2481
        %v2972 = vunpack.c.l.b16 %v2482
        %v2973 = vunpack.c.h.b16 %v2482
        %v2974 = vunpack.c.l.b16 %v2483
        %v2975 = vunpack.c.h.b16 %v2483
        %v2976 = vunpack.c.l.b16 %v2484
        %v2977 = vunpack.c.l.b16 %v2485
        %v2978 = vunpack.c.h.b16 %v2485
        %v2979 = vunpack.c.l.b16 %v2486
        %v2980 = vunpack.c.h.b16 %v2486
        %v2981 = vunpack.c.l.b16 %v2487
        %v2982 = vunpack.c.l.b16 %v2488
        %v2983 = vunpack.c.h.b16 %v2488
        %v2984 = vunpack.c.l.b16 %v2489
        %v2985 = vunpack.c.h.b16 %v2489
        %v2986 = vunpack.c.l.b16 %v2490
        %v2987 = vunpack.c.l.b16 %v2491
        %v2988 = vunpack.c.h.b16 %v2491
        %v2989 = vunpack.c.l.b16 %v2492
        %v2990 = vunpack.c.h.b16 %v2492
        %v2991 = vunpack.c.l.b16 %v2493
        %v2992 = vunpack.c.l.b16 %v2494
        %v2993 = vunpack.c.h.b16 %v2494
        %v2994 = vunpack.c.l.b16 %v2495
        %v2995 = vunpack.c.h.b16 %v2495
        %v2996 = vunpack.c.l.b16 %v2496
        %v2997 = vunpack.c.l.b16 %v2497
        %v2998 = vunpack.c.h.b16 %v2497
        %v2999 = vunpack.c.l.b16 %v2498
        %v3000 = vunpack.c.h.b16 %v2498
        %v3001 = vunpack.c.l.b16 %v2499
        %v3002 = vunpack.c.l.b16 %v2500
        %v3003 = vunpack.c.h.b16 %v2500
        %v3004 = vunpack.c.l.b16 %v2501
        %v3005 = vunpack.c.h.b16 %v2501
        %v3006 = vunpack.c.l.b16 %v2502
        %v3007 = vunpack.c.l.b16 %v2503
        %v3008 = vunpack.c.h.b16 %v2503
        %v3009 = vunpack.c.l.b16 %v2504
        %v3010 = vunpack.c.h.b16 %v2504
        %v3011 = vunpack.c.l.b16 %v2505
        %v3012 = vunpack.c.l.b16 %v2506
        %v3013 = vunpack.c.h.b16 %v2506
        %v3014 = vunpack.c.l.b16 %v2507
        %v3015 = vunpack.c.h.b16 %v2507
        %v3016 = vunpack.c.l.b16 %v2508
        %v3017 = vunpack.c.l.b16 %v2509
        %v3018 = vunpack.c.h.b16 %v2509
        %v3019 = vunpack.c.l.b16 %v2510
        %v3020 = vunpack.c.h.b16 %v2510
        %v3021 = vunpack.c.l.b16 %v2511
        %v3022 = vunpack.c.l.b16 %v2512
        %v3023 = vunpack.c.h.b16 %v2512
        %v3024 = vunpack.c.l.b16 %v2513
        %v3025 = vunpack.c.h.b16 %v2513
        %v3026 = vunpack.c.l.b16 %v2514
        %v3027 = vunpack.c.l.b16 %v2515
        %v3028 = vunpack.c.h.b16 %v2515
        %v3029 = vunpack.c.l.b16 %v2516
        %v3030 = vunpack.c.h.b16 %v2516
        %v3031 = vunpack.c.l.b16 %v2517
        %v3032 = vunpack.c.l.b16 %v2518
        %v3033 = vunpack.c.h.b16 %v2518
        %v3034 = vunpack.c.l.b16 %v2519
        %v3035 = vunpack.c.h.b16 %v2519
        %v3036 = vunpack.c.l.b16 %v2520
        %v3037 = vpack.c.b16 %v2962, %v2957
        %v3038 = vpack.c.b16 %v2963, %v2958
        %v3039 = vpack.c.b16 %v2964, %v2959
        %v3040 = vpack.c.b16 %v2965, %v2960
        %v3041 = vpack.c.b16 %v2966, %v2961
        %v3042 = vpack.c.b16 %v2972, %v2967
        %v3043 = vpack.c.b16 %v2973, %v2968
        %v3044 = vpack.c.b16 %v2974, %v2969
        %v3045 = vpack.c.b16 %v2975, %v2970
        %v3046 = vpack.c.b16 %v2976, %v2971
        %v3047 = vpack.c.b16 %v2982, %v2977
        %v3048 = vpack.c.b16 %v2983, %v2978
        %v3049 = vpack.c.b16 %v2984, %v2979
        %v3050 = vpack.c.b16 %v2985, %v2980
        %v3051 = vpack.c.b16 %v2986, %v2981
        %v3052 = vpack.c.b16 %v2992, %v2987
        %v3053 = vpack.c.b16 %v2993, %v2988
        %v3054 = vpack.c.b16 %v2994, %v2989
        %v3055 = vpack.c.b16 %v2995, %v2990
        %v3056 = vpack.c.b16 %v2996, %v2991
        %v3057 = vpack.c.b16 %v3002, %v2997
        %v3058 = vpack.c.b16 %v3003, %v2998
        %v3059 = vpack.c.b16 %v3004, %v2999
        %v3060 = vpack.c.b16 %v3005, %v3000
        %v3061 = vpack.c.b16 %v3006, %v3001
        %v3062 = vpack.c.b16 %v3012, %v3007
        %v3063 = vpack.c.b16 %v3013, %v3008
        %v3064 = vpack.c.b16 %v3014, %v3009
        %v3065 = vpack.c.b16 %v3015, %v3010
        %v3066 = vpack.c.b16 %v3016, %v3011
        %v3067 = vpack.c.b16 %v3022, %v3017
        %v3068 = vpack.c.b16 %v3023, %v3018
        %v3069 = vpack.c.b16 %v3024, %v3019
        %v3070 = vpack.c.b16 %v3025, %v3020
        %v3071 = vpack.c.b16 %v3026, %v3021
        %v3072 = vpack.c.b16 %v3032, %v3027
        %v3073 = vpack.c.b16 %v3033, %v3028
        %v3074 = vpack.c.b16 %v3034, %v3029
        %v3075 = vpack.c.b16 %v3035, %v3030
        %v3076 = vpack.c.b16 %v3036, %v3031
        %3117 = vmatpush.bf16.msra.mxu0 %v3072
        %3118 = vmatpush.bf16.msra.mxu0 %v3067
        %3119 = vmatpush.bf16.msra.mxu0 %v3062
        %3120 = vmatpush.bf16.msra.mxu0 %v3057
        %3121 = vmatpush.bf16.msra.mxu0 %v3052
        %3122 = vmatpush.bf16.msra.mxu0 %v3047
        %3123 = vmatpush.bf16.msra.mxu0 %v3042
        %3124 = vmatpush.bf16.msra.mxu0 %v3037
        %3125 = vmatmul.bf16.gmra.mxu0 %v1645
        %v3126 = vpop.f32.mrf.mxu0
        %v3127 = vadd.f32 0.0, %v3126
        %v3128 = vpop.f32.mrf.mxu0
        %3129 = vdwg.mxu0
        %3130 = vmatpush.bf16.msra.mxu0 %v3073
        %3131 = vmatpush.bf16.msra.mxu0 %v3068
        %3132 = vmatpush.bf16.msra.mxu0 %v3063
        %3133 = vmatpush.bf16.msra.mxu0 %v3058
        %3134 = vmatpush.bf16.msra.mxu0 %v3053
        %3135 = vmatpush.bf16.msra.mxu0 %v3048
        %3136 = vmatpush.bf16.msra.mxu0 %v3043
        %3137 = vmatpush.bf16.msra.mxu0 %v3038
        %3138 = vmatmul.bf16.gmra.mxu0 %v1645
        %v3139 = vpop.f32.mrf.mxu0
        %v3140 = vadd.f32 0.0, %v3139
        %v3141 = vpop.f32.mrf.mxu0
        %3142 = vdwg.mxu0
        %3143 = vmatpush.bf16.msra.mxu0 %v3074
        %3144 = vmatpush.bf16.msra.mxu0 %v3069
        %3145 = vmatpush.bf16.msra.mxu0 %v3064
        %3146 = vmatpush.bf16.msra.mxu0 %v3059
        %3147 = vmatpush.bf16.msra.mxu0 %v3054
        %3148 = vmatpush.bf16.msra.mxu0 %v3049
        %3149 = vmatpush.bf16.msra.mxu0 %v3044
        %3150 = vmatpush.bf16.msra.mxu0 %v3039
        %3151 = vmatmul.bf16.gmra.mxu0 %v1645
        %v3152 = vpop.f32.mrf.mxu0
        %v3153 = vadd.f32 0.0, %v3152
        %v3154 = vpop.f32.mrf.mxu0
        %3155 = vdwg.mxu0
        %3156 = vmatpush.bf16.msra.mxu0 %v3075
        %3157 = vmatpush.bf16.msra.mxu0 %v3070
        %3158 = vmatpush.bf16.msra.mxu0 %v3065
        %3159 = vmatpush.bf16.msra.mxu0 %v3060
        %3160 = vmatpush.bf16.msra.mxu0 %v3055
        %3161 = vmatpush.bf16.msra.mxu0 %v3050
        %3162 = vmatpush.bf16.msra.mxu0 %v3045
        %3163 = vmatpush.bf16.msra.mxu0 %v3040
        %3164 = vmatmul.bf16.gmra.mxu0 %v1645
        %v3165 = vpop.f32.mrf.mxu0
        %v3166 = vadd.f32 0.0, %v3165
        %v3167 = vpop.f32.mrf.mxu0
        %3168 = vdwg.mxu0
        %3169 = vmatpush.bf16.msra.mxu0 %v3076
        %3170 = vmatpush.bf16.msra.mxu0 %v3071
        %3171 = vmatpush.bf16.msra.mxu0 %v3066
        %3172 = vmatpush.bf16.msra.mxu0 %v3061
        %3173 = vmatpush.bf16.msra.mxu0 %v3056
        %3174 = vmatpush.bf16.msra.mxu0 %v3051
        %3175 = vmatpush.bf16.msra.mxu0 %v3046
        %3176 = vmatpush.bf16.msra.mxu0 %v3041
        %3177 = vmatmul.bf16.gmra.mxu0 %v1645
        %v3178 = vpop.f32.mrf.mxu0
        %v3179 = vadd.f32 0.0, %v3178
        %v3180 = vpop.f32.mrf.mxu0
        %3181 = vdwg.mxu0
        %v3182 = vadd.f32 %v2904, %v3127
        %v3183 = vadd.f32 %v2905, %v3140
        %v3184 = vadd.f32 %v2906, %v3153
        %v3185 = vadd.f32 %v2907, %v3166
        %v3186 = vadd.f32 %v2908, %v3179
        %v3187 = vpack.c.bf16 %v2423, %v2423
        %v3188 = vpack.c.bf16 %v2430, %v2430
        %v3189 = vpack.c.bf16 %v2437, %v2437
        %v3190 = vpack.c.bf16 %v2444, %v2444
        %v3191 = vpack.c.bf16 %v2451, %v2451
        %v3192 = vpack.c.bf16 %v2458, %v2458
        %v3193 = vpack.c.bf16 %v2465, %v2465
        %v3194 = vpack.c.bf16 %v2472, %v2472
        %v3203 = vunpack.c.l.b16 %v3187
        %v3204 = vunpack.c.l.b16 %v3188
        %v3205 = vunpack.c.l.b16 %v3189
        %v3206 = vunpack.c.l.b16 %v3190
        %v3207 = vunpack.c.l.b16 %v3191
        %v3208 = vunpack.c.l.b16 %v3192
        %v3209 = vunpack.c.l.b16 %v3193
        %v3210 = vunpack.c.l.b16 %v3194
        %v3211 = vsel %vm1857, %v3204, %v3203
        %v3212 = vsel %vm1859, %v3205, %v3211
        %v3213 = vsel %vm1861, %v3206, %v3212
        %v3214 = vsel %vm1863, %v3207, %v3213
        %v3215 = vsel %vm1865, %v3208, %v3214
        %v3216 = vsel %vm1867, %v3209, %v3215
        %v3217 = vsel %vm1869, %v3210, %v3216
        %v3218 = vpack.c.b16 %v3217, %v3217
        %v3268 = vunpack.c.l.b16 %v2521
        %v3269 = vunpack.c.h.b16 %v2521
        %v3270 = vunpack.c.l.b16 %v2522
        %v3271 = vunpack.c.h.b16 %v2522
        %v3272 = vunpack.c.l.b16 %v2523
        %v3273 = vunpack.c.l.b16 %v2524
        %v3274 = vunpack.c.h.b16 %v2524
        %v3275 = vunpack.c.l.b16 %v2525
        %v3276 = vunpack.c.h.b16 %v2525
        %v3277 = vunpack.c.l.b16 %v2526
        %v3278 = vunpack.c.l.b16 %v2527
        %v3279 = vunpack.c.h.b16 %v2527
        %v3280 = vunpack.c.l.b16 %v2528
        %v3281 = vunpack.c.h.b16 %v2528
        %v3282 = vunpack.c.l.b16 %v2529
        %v3283 = vunpack.c.l.b16 %v2530
        %v3284 = vunpack.c.h.b16 %v2530
        %v3285 = vunpack.c.l.b16 %v2531
        %v3286 = vunpack.c.h.b16 %v2531
        %v3287 = vunpack.c.l.b16 %v2532
        %v3288 = vunpack.c.l.b16 %v2533
        %v3289 = vunpack.c.h.b16 %v2533
        %v3290 = vunpack.c.l.b16 %v2534
        %v3291 = vunpack.c.h.b16 %v2534
        %v3292 = vunpack.c.l.b16 %v2535
        %v3293 = vunpack.c.l.b16 %v2536
        %v3294 = vunpack.c.h.b16 %v2536
        %v3295 = vunpack.c.l.b16 %v2537
        %v3296 = vunpack.c.h.b16 %v2537
        %v3297 = vunpack.c.l.b16 %v2538
        %v3298 = vunpack.c.l.b16 %v2539
        %v3299 = vunpack.c.h.b16 %v2539
        %v3300 = vunpack.c.l.b16 %v2540
        %v3301 = vunpack.c.h.b16 %v2540
        %v3302 = vunpack.c.l.b16 %v2541
        %v3303 = vunpack.c.l.b16 %v2542
        %v3304 = vunpack.c.h.b16 %v2542
        %v3305 = vunpack.c.l.b16 %v2543
        %v3306 = vunpack.c.h.b16 %v2543
        %v3307 = vunpack.c.l.b16 %v2544
        %v3308 = vunpack.c.l.b16 %v2545
        %v3309 = vunpack.c.h.b16 %v2545
        %v3310 = vunpack.c.l.b16 %v2546
        %v3311 = vunpack.c.h.b16 %v2546
        %v3312 = vunpack.c.l.b16 %v2547
        %v3313 = vunpack.c.l.b16 %v2548
        %v3314 = vunpack.c.h.b16 %v2548
        %v3315 = vunpack.c.l.b16 %v2549
        %v3316 = vunpack.c.h.b16 %v2549
        %v3317 = vunpack.c.l.b16 %v2550
        %v3318 = vunpack.c.l.b16 %v2551
        %v3319 = vunpack.c.h.b16 %v2551
        %v3320 = vunpack.c.l.b16 %v2552
        %v3321 = vunpack.c.h.b16 %v2552
        %v3322 = vunpack.c.l.b16 %v2553
        %v3323 = vunpack.c.l.b16 %v2554
        %v3324 = vunpack.c.h.b16 %v2554
        %v3325 = vunpack.c.l.b16 %v2555
        %v3326 = vunpack.c.h.b16 %v2555
        %v3327 = vunpack.c.l.b16 %v2556
        %v3328 = vunpack.c.l.b16 %v2557
        %v3329 = vunpack.c.h.b16 %v2557
        %v3330 = vunpack.c.l.b16 %v2558
        %v3331 = vunpack.c.h.b16 %v2558
        %v3332 = vunpack.c.l.b16 %v2559
        %v3333 = vunpack.c.l.b16 %v2560
        %v3334 = vunpack.c.h.b16 %v2560
        %v3335 = vunpack.c.l.b16 %v2561
        %v3336 = vunpack.c.h.b16 %v2561
        %v3337 = vunpack.c.l.b16 %v2562
        %v3338 = vunpack.c.l.b16 %v2563
        %v3339 = vunpack.c.h.b16 %v2563
        %v3340 = vunpack.c.l.b16 %v2564
        %v3341 = vunpack.c.h.b16 %v2564
        %v3342 = vunpack.c.l.b16 %v2565
        %v3343 = vunpack.c.l.b16 %v2566
        %v3344 = vunpack.c.h.b16 %v2566
        %v3345 = vunpack.c.l.b16 %v2567
        %v3346 = vunpack.c.h.b16 %v2567
        %v3347 = vunpack.c.l.b16 %v2568
        %v3348 = vpack.c.b16 %v3273, %v3268
        %v3349 = vpack.c.b16 %v3274, %v3269
        %v3350 = vpack.c.b16 %v3275, %v3270
        %v3351 = vpack.c.b16 %v3276, %v3271
        %v3352 = vpack.c.b16 %v3277, %v3272
        %v3353 = vpack.c.b16 %v3283, %v3278
        %v3354 = vpack.c.b16 %v3284, %v3279
        %v3355 = vpack.c.b16 %v3285, %v3280
        %v3356 = vpack.c.b16 %v3286, %v3281
        %v3357 = vpack.c.b16 %v3287, %v3282
        %v3358 = vpack.c.b16 %v3293, %v3288
        %v3359 = vpack.c.b16 %v3294, %v3289
        %v3360 = vpack.c.b16 %v3295, %v3290
        %v3361 = vpack.c.b16 %v3296, %v3291
        %v3362 = vpack.c.b16 %v3297, %v3292
        %v3363 = vpack.c.b16 %v3303, %v3298
        %v3364 = vpack.c.b16 %v3304, %v3299
        %v3365 = vpack.c.b16 %v3305, %v3300
        %v3366 = vpack.c.b16 %v3306, %v3301
        %v3367 = vpack.c.b16 %v3307, %v3302
        %v3368 = vpack.c.b16 %v3313, %v3308
        %v3369 = vpack.c.b16 %v3314, %v3309
        %v3370 = vpack.c.b16 %v3315, %v3310
        %v3371 = vpack.c.b16 %v3316, %v3311
        %v3372 = vpack.c.b16 %v3317, %v3312
        %v3373 = vpack.c.b16 %v3323, %v3318
        %v3374 = vpack.c.b16 %v3324, %v3319
        %v3375 = vpack.c.b16 %v3325, %v3320
        %v3376 = vpack.c.b16 %v3326, %v3321
        %v3377 = vpack.c.b16 %v3327, %v3322
        %v3378 = vpack.c.b16 %v3333, %v3328
        %v3379 = vpack.c.b16 %v3334, %v3329
        %v3380 = vpack.c.b16 %v3335, %v3330
        %v3381 = vpack.c.b16 %v3336, %v3331
        %v3382 = vpack.c.b16 %v3337, %v3332
        %v3383 = vpack.c.b16 %v3343, %v3338
        %v3384 = vpack.c.b16 %v3344, %v3339
        %v3385 = vpack.c.b16 %v3345, %v3340
        %v3386 = vpack.c.b16 %v3346, %v3341
        %v3387 = vpack.c.b16 %v3347, %v3342
        %3428 = vmatpush.bf16.msra.mxu0 %v3383
        %3429 = vmatpush.bf16.msra.mxu0 %v3378
        %3430 = vmatpush.bf16.msra.mxu0 %v3373
        %3431 = vmatpush.bf16.msra.mxu0 %v3368
        %3432 = vmatpush.bf16.msra.mxu0 %v3363
        %3433 = vmatpush.bf16.msra.mxu0 %v3358
        %3434 = vmatpush.bf16.msra.mxu0 %v3353
        %3435 = vmatpush.bf16.msra.mxu0 %v3348
        %3436 = vmatmul.bf16.gmra.mxu0 %v3218
        %v3437 = vpop.f32.mrf.mxu0
        %v3438 = vadd.f32 0.0, %v3437
        %v3439 = vpop.f32.mrf.mxu0
        %3440 = vdwg.mxu0
        %3441 = vmatpush.bf16.msra.mxu0 %v3384
        %3442 = vmatpush.bf16.msra.mxu0 %v3379
        %3443 = vmatpush.bf16.msra.mxu0 %v3374
        %3444 = vmatpush.bf16.msra.mxu0 %v3369
        %3445 = vmatpush.bf16.msra.mxu0 %v3364
        %3446 = vmatpush.bf16.msra.mxu0 %v3359
        %3447 = vmatpush.bf16.msra.mxu0 %v3354
        %3448 = vmatpush.bf16.msra.mxu0 %v3349
        %3449 = vmatmul.bf16.gmra.mxu0 %v3218
        %v3450 = vpop.f32.mrf.mxu0
        %v3451 = vadd.f32 0.0, %v3450
        %v3452 = vpop.f32.mrf.mxu0
        %3453 = vdwg.mxu0
        %3454 = vmatpush.bf16.msra.mxu0 %v3385
        %3455 = vmatpush.bf16.msra.mxu0 %v3380
        %3456 = vmatpush.bf16.msra.mxu0 %v3375
        %3457 = vmatpush.bf16.msra.mxu0 %v3370
        %3458 = vmatpush.bf16.msra.mxu0 %v3365
        %3459 = vmatpush.bf16.msra.mxu0 %v3360
        %3460 = vmatpush.bf16.msra.mxu0 %v3355
        %3461 = vmatpush.bf16.msra.mxu0 %v3350
        %3462 = vmatmul.bf16.gmra.mxu0 %v3218
        %v3463 = vpop.f32.mrf.mxu0
        %v3464 = vadd.f32 0.0, %v3463
        %v3465 = vpop.f32.mrf.mxu0
        %3466 = vdwg.mxu0
        %3467 = vmatpush.bf16.msra.mxu0 %v3386
        %3468 = vmatpush.bf16.msra.mxu0 %v3381
        %3469 = vmatpush.bf16.msra.mxu0 %v3376
        %3470 = vmatpush.bf16.msra.mxu0 %v3371
        %3471 = vmatpush.bf16.msra.mxu0 %v3366
        %3472 = vmatpush.bf16.msra.mxu0 %v3361
        %3473 = vmatpush.bf16.msra.mxu0 %v3356
        %3474 = vmatpush.bf16.msra.mxu0 %v3351
        %3475 = vmatmul.bf16.gmra.mxu0 %v3218
        %v3476 = vpop.f32.mrf.mxu0
        %v3477 = vadd.f32 0.0, %v3476
        %v3478 = vpop.f32.mrf.mxu0
        %3479 = vdwg.mxu0
        %3480 = vmatpush.bf16.msra.mxu0 %v3387
        %3481 = vmatpush.bf16.msra.mxu0 %v3382
        %3482 = vmatpush.bf16.msra.mxu0 %v3377
        %3483 = vmatpush.bf16.msra.mxu0 %v3372
        %3484 = vmatpush.bf16.msra.mxu0 %v3367
        %3485 = vmatpush.bf16.msra.mxu0 %v3362
        %3486 = vmatpush.bf16.msra.mxu0 %v3357
        %3487 = vmatpush.bf16.msra.mxu0 %v3352
        %3488 = vmatmul.bf16.gmra.mxu0 %v3218
        %v3489 = vpop.f32.mrf.mxu0
        %v3490 = vadd.f32 0.0, %v3489
        %v3491 = vpop.f32.mrf.mxu0
        %3492 = vdwg.mxu0
        %v3493 = vadd.f32 %v3182, %v3438
        %v3494 = vadd.f32 %v3183, %v3451
        %v3495 = vadd.f32 %v3184, %v3464
        %v3496 = vadd.f32 %v3185, %v3477
        %v3497 = vadd.f32 %v3186, %v3490
        %v3498 = vxor.u32 %v3493, 2147483648
        %v3499 = vxor.u32 %v3494, 2147483648
        %v3500 = vxor.u32 %v3495, 2147483648
        %v3501 = vmul.f32 %v3498, 1.442695
        %v3502 = vpow.pop %v3501
        %v3503 = vmul.f32 %v3499, 1.442695
        %v3504 = vpow.pop %v3503
        %v3505 = vmul.f32 %v3500, 1.442695
        %v3506 = vpow.pop %v3505
        %v3507 = vadd.f32 %v3502, 1.0
        %v3508 = vadd.f32 %v3504, 1.0
        %v3509 = vadd.f32 %v3506, 1.0
        %v3510 = vrcp.pop %v3507
        %v3511 = vmul.f32 %v3507, %v3510
        %v3512 = vsub.f32 1.0, %v3511
        %v3513 = vmul.f32 %v3510, %v3512
        %v3514 = vadd.f32 %v3510, %v3513
        %vm3515 = vweird.f32 %v3507
        %vm3516 = vweird.f32 %v3510
        %vm3517 = vmor %vm3515, %vm3516
        %v3518 = vsel %vm3517, %v3510, %v3514
        %v3519 = vand.u32 2147483647, %v3507
        %vm3520 = vcmp.eq.f32.partialorder %v3519, 8.507059e+37
        %v3521 = vand.u32 %v3507, 2147483648
        %v3522 = vor.u32 1.1754944e-38, %v3521
        %v3523 = vsel %vm3520, %v3522, %v3518
        %v3524 = vmul.f32 1.0, %v3523
        %v3525 = vrcp.pop %v3508
        %v3526 = vmul.f32 %v3508, %v3525
        %v3527 = vsub.f32 1.0, %v3526
        %v3528 = vmul.f32 %v3525, %v3527
        %v3529 = vadd.f32 %v3525, %v3528
        %vm3530 = vweird.f32 %v3508
        %vm3531 = vweird.f32 %v3525
        %vm3532 = vmor %vm3530, %vm3531
        %v3533 = vsel %vm3532, %v3525, %v3529
        %v3534 = vand.u32 2147483647, %v3508
        %vm3535 = vcmp.eq.f32.partialorder %v3534, 8.507059e+37
        %v3536 = vand.u32 %v3508, 2147483648
        %v3537 = vor.u32 1.1754944e-38, %v3536
        %v3538 = vsel %vm3535, %v3537, %v3533
        %v3539 = vmul.f32 1.0, %v3538
        %v3540 = vrcp.pop %v3509
        %v3541 = vmul.f32 %v3509, %v3540
        %v3542 = vsub.f32 1.0, %v3541
        %v3543 = vmul.f32 %v3540, %v3542
        %v3544 = vadd.f32 %v3540, %v3543
        %vm3545 = vweird.f32 %v3509
        %vm3546 = vweird.f32 %v3540
        %vm3547 = vmor %vm3545, %vm3546
        %v3548 = vsel %vm3547, %v3540, %v3544
        %v3549 = vand.u32 2147483647, %v3509
        %vm3550 = vcmp.eq.f32.partialorder %v3549, 8.507059e+37
        %v3551 = vand.u32 %v3509, 2147483648
        %v3552 = vor.u32 1.1754944e-38, %v3551
        %v3553 = vsel %vm3550, %v3552, %v3548
        %v3554 = vmul.f32 1.0, %v3553
        %v3555 = vmax.f32 %v3496, %v3497
        %v3556 = vmul.f32 %v3539, %v571
        %v3557 = vmul.f32 %v3524, %v3555
        %v3558 = vadd.f32 %v3556, %v3557
        %v3559 = vtanh.pop %v3558
        %v3560 = vmul.f32 %v3554, %v3559
        %v3561 = vld [vmem:[#allocation10 + $0x80] sm:$0xf]
        %v3562 = vld [vmem:[#allocation10 + $0x84] sm:$0xf]
        %v3563 = vld [vmem:[#allocation10 + $0x88] sm:$0xf]
        %v3564 = vld [vmem:[#allocation10 + $0x8c] sm:$0xf]
        %v3565 = vld [vmem:[#allocation10 + $0x90] sm:$0xf]
        %v3566 = vld [vmem:[#allocation10 + $0x94] sm:$0xf]
        %v3567 = vld [vmem:[#allocation10 + $0x98] sm:$0xf]
        %v3568 = vld [vmem:[#allocation10 + $0x9c] sm:$0xf]
        %v3569 = vld [vmem:[#allocation10 + $0xa0] sm:$0xf]
        %v3570 = vld [vmem:[#allocation10 + $0xa4] sm:$0xf]
        %v3571 = vld [vmem:[#allocation10 + $0xa8] sm:$0xf]
        %v3572 = vld [vmem:[#allocation10 + $0xac] sm:$0xf]
        %v3573 = vld [vmem:[#allocation10 + $0xb0] sm:$0xf]
        %v3574 = vld [vmem:[#allocation10 + $0xb4] sm:$0xf]
        %v3575 = vld [vmem:[#allocation10 + $0xb8] sm:$0xf]
        %v3576 = vld [vmem:[#allocation10 + $0xbc] sm:$0xf]
        %v3593 = vunpack.c.l.b16 %v3561
        %v3594 = vunpack.c.l.b16 %v3562
        %v3595 = vunpack.c.l.b16 %v3563
        %v3596 = vunpack.c.l.b16 %v3564
        %v3597 = vunpack.c.l.b16 %v3565
        %v3598 = vunpack.c.l.b16 %v3566
        %v3599 = vunpack.c.l.b16 %v3567
        %v3600 = vunpack.c.l.b16 %v3568
        %v3601 = vunpack.c.l.b16 %v3569
        %v3602 = vunpack.c.l.b16 %v3570
        %v3603 = vunpack.c.l.b16 %v3571
        %v3604 = vunpack.c.l.b16 %v3572
        %v3605 = vunpack.c.l.b16 %v3573
        %v3606 = vunpack.c.l.b16 %v3574
        %v3607 = vunpack.c.l.b16 %v3575
        %v3608 = vunpack.c.l.b16 %v3576
        %v3609 = vpack.c.b16 %v3594, %v3593
        %v3610 = vpack.c.b16 %v3596, %v3595
        %v3611 = vpack.c.b16 %v3598, %v3597
        %v3612 = vpack.c.b16 %v3600, %v3599
        %v3613 = vpack.c.b16 %v3602, %v3601
        %v3614 = vpack.c.b16 %v3604, %v3603
        %v3615 = vpack.c.b16 %v3606, %v3605
        %v3616 = vpack.c.b16 %v3608, %v3607
        %3625 = vmatpush.bf16.msra.mxu0 %v3616
        %3626 = vmatpush.bf16.msra.mxu0 %v3615
        %3627 = vmatpush.bf16.msra.mxu0 %v3614
        %3628 = vmatpush.bf16.msra.mxu0 %v3613
        %3629 = vmatpush.bf16.msra.mxu0 %v3612
        %3630 = vmatpush.bf16.msra.mxu0 %v3611
        %3631 = vmatpush.bf16.msra.mxu0 %v3610
        %3632 = vmatpush.bf16.msra.mxu0 %v3609
        %3633 = vmatmul.bf16.gmra.mxu0 %v3218
        %v3634 = vpop.f32.mrf.mxu0
        %v3635 = vadd.f32 0.0, %v3634
        %v3636 = vpop.f32.mrf.mxu0
        %3637 = vdwg.mxu0
        %v3638 = vadd.f32 %v3560, %v3635
        %v3639 = vld [vmem:[#allocation13 + $0x2] sm:$0x1]
        %v3640 = vperm.slane %v3639, 0
        %v3641 = vadd.f32 %v3638, %v3640
        %v3642 = vld [vmem:[#allocation10 + $0x40] sm:$0xf]
        %v3643 = vld [vmem:[#allocation10 + $0x44] sm:$0xf]
        %v3644 = vld [vmem:[#allocation10 + $0x48] sm:$0xf]
        %v3645 = vld [vmem:[#allocation10 + $0x4c] sm:$0xf]
        %v3646 = vld [vmem:[#allocation10 + $0x50] sm:$0xf]
        %v3647 = vld [vmem:[#allocation10 + $0x54] sm:$0xf]
        %v3648 = vld [vmem:[#allocation10 + $0x58] sm:$0xf]
        %v3649 = vld [vmem:[#allocation10 + $0x5c] sm:$0xf]
        %v3650 = vld [vmem:[#allocation10 + $0x60] sm:$0xf]
        %v3651 = vld [vmem:[#allocation10 + $0x64] sm:$0xf]
        %v3652 = vld [vmem:[#allocation10 + $0x68] sm:$0xf]
        %v3653 = vld [vmem:[#allocation10 + $0x6c] sm:$0xf]
        %v3654 = vld [vmem:[#allocation10 + $0x70] sm:$0xf]
        %v3655 = vld [vmem:[#allocation10 + $0x74] sm:$0xf]
        %v3656 = vld [vmem:[#allocation10 + $0x78] sm:$0xf]
        %v3657 = vld [vmem:[#allocation10 + $0x7c] sm:$0xf]
        %v3658 = vld [vmem:[#allocation13 + $0x1] sm:$0x1]
        %v3659 = vld [vmem:[#allocation13 + $0x4] sm:$0x1]
        %v3660 = vpack.c.bf16 %v3641, %v3641
        %v3661 = vperm.slane %v3658, 0
        %v3678 = vunpack.c.l.b16 %v3642
        %v3679 = vunpack.c.l.b16 %v3643
        %v3680 = vunpack.c.l.b16 %v3644
        %v3681 = vunpack.c.l.b16 %v3645
        %v3682 = vunpack.c.l.b16 %v3646
        %v3683 = vunpack.c.l.b16 %v3647
        %v3684 = vunpack.c.l.b16 %v3648
        %v3685 = vunpack.c.l.b16 %v3649
        %v3686 = vunpack.c.l.b16 %v3650
        %v3687 = vunpack.c.l.b16 %v3651
        %v3688 = vunpack.c.l.b16 %v3652
        %v3689 = vunpack.c.l.b16 %v3653
        %v3690 = vunpack.c.l.b16 %v3654
        %v3691 = vunpack.c.l.b16 %v3655
        %v3692 = vunpack.c.l.b16 %v3656
        %v3693 = vunpack.c.l.b16 %v3657
        %v3694 = vpack.c.b16 %v3679, %v3678
        %v3695 = vpack.c.b16 %v3681, %v3680
        %v3696 = vpack.c.b16 %v3683, %v3682
        %v3697 = vpack.c.b16 %v3685, %v3684
        %v3698 = vpack.c.b16 %v3687, %v3686
        %v3699 = vpack.c.b16 %v3689, %v3688
        %v3700 = vpack.c.b16 %v3691, %v3690
        %v3701 = vpack.c.b16 %v3693, %v3692
        %3710 = vmatpush.bf16.msra.mxu0 %v3701
        %3711 = vmatpush.bf16.msra.mxu0 %v3700
        %3712 = vmatpush.bf16.msra.mxu0 %v3699
        %3713 = vmatpush.bf16.msra.mxu0 %v3698
        %3714 = vmatpush.bf16.msra.mxu0 %v3697
        %3715 = vmatpush.bf16.msra.mxu0 %v3696
        %3716 = vmatpush.bf16.msra.mxu0 %v3695
        %3717 = vmatpush.bf16.msra.mxu0 %v3694
        %3718 = vmatmul.bf16.gmra.mxu0 %v3660
        %v3719 = vpop.f32.mrf.mxu0
        %v3720 = vadd.f32 %v3661, %v3719
        %v3721 = vpop.f32.mrf.mxu0
        %3722 = vdwg.mxu0
        %v3724 = vrot.slane %v3720, 1
        %v3725 = vrot.slane %v3720, 2
        %v3726 = vrot.slane %v3720, 3
        %v3727 = vrot.slane %v3720, 4
        %v3728 = vrot.slane %v3720, 5
        %v3729 = vrot.slane %v3720, 6
        %v3730 = vrot.slane %v3720, 7
        %v3731 = vperm.slane %v3720, 0
        %v3732 = vperm.slane %v3724, 0
        %v3733 = vperm.slane %v3725, 0
        %v3734 = vperm.slane %v3726, 0
        %v3735 = vperm.slane %v3727, 0
        %v3736 = vperm.slane %v3728, 0
        %v3737 = vperm.slane %v3729, 0
        %v3738 = vperm.slane %v3730, 0
        %v3747 = vadd.f32 %v551, %v3731
        %v3748 = vadd.f32 %v552, %v3731
        %v3749 = vadd.f32 %v553, %v3732
        %v3750 = vadd.f32 %v554, %v3732
        %v3751 = vadd.f32 %v555, %v3733
        %v3752 = vadd.f32 %v556, %v3733
        %v3753 = vadd.f32 %v557, %v3734
        %v3754 = vadd.f32 %v558, %v3734
        %v3755 = vadd.f32 %v559, %v3735
        %v3756 = vadd.f32 %v560, %v3735
        %v3757 = vadd.f32 %v561, %v3736
        %v3758 = vadd.f32 %v562, %v3736
        %v3759 = vadd.f32 %v563, %v3737
        %v3760 = vadd.f32 %v564, %v3737
        %v3761 = vadd.f32 %v565, %v3738
        %v3762 = vadd.f32 %v566, %v3738
        %v3763 = vtanh.pop %v3747
        %v3764 = vtanh.pop %v3748
        %v3765 = vtanh.pop %v3749
        %v3766 = vtanh.pop %v3750
        %v3767 = vtanh.pop %v3751
        %v3768 = vtanh.pop %v3752
        %v3769 = vtanh.pop %v3753
        %v3770 = vtanh.pop %v3754
        %v3771 = vtanh.pop %v3755
        %v3772 = vtanh.pop %v3756
        %v3773 = vtanh.pop %v3757
        %v3774 = vtanh.pop %v3758
        %v3775 = vtanh.pop %v3759
        %v3776 = vtanh.pop %v3760
        %v3777 = vtanh.pop %v3761
        %v3778 = vtanh.pop %v3762
        %v3779 = vperm.slane %v3659, 0
        %v3780 = vmul.f32 %v3763, %v3779
        %v3781 = vmul.f32 %v3764, %v3779
        %v3782 = vmul.f32 %v3765, %v3779
        %v3783 = vmul.f32 %v3766, %v3779
        %v3784 = vmul.f32 %v3767, %v3779
        %v3785 = vmul.f32 %v3768, %v3779
        %v3786 = vmul.f32 %v3769, %v3779
        %v3787 = vmul.f32 %v3770, %v3779
        %v3788 = vmul.f32 %v3771, %v3779
        %v3789 = vmul.f32 %v3772, %v3779
        %v3790 = vmul.f32 %v3773, %v3779
        %v3791 = vmul.f32 %v3774, %v3779
        %v3792 = vmul.f32 %v3775, %v3779
        %v3793 = vmul.f32 %v3776, %v3779
        %v3794 = vmul.f32 %v3777, %v3779
        %v3795 = vmul.f32 %v3778, %v3779
        %3796 = vadd.xlane.f32.xlu0 %v3780
        %v3797 = vpop.xlane.xlu0 %3796
        %3798 = vadd.xlane.f32.xlu0 %v3781
        %v3799 = vpop.xlane.xlu0 %3798
        %3800 = vadd.xlane.f32.xlu0 %v3782
        %v3801 = vpop.xlane.xlu0 %3800
        %3802 = vadd.xlane.f32.xlu0 %v3783
        %v3803 = vpop.xlane.xlu0 %3802
        %3804 = vadd.xlane.f32.xlu0 %v3784
        %v3805 = vpop.xlane.xlu0 %3804
        %3806 = vadd.xlane.f32.xlu0 %v3785
        %v3807 = vpop.xlane.xlu0 %3806
        %3808 = vadd.xlane.f32.xlu0 %v3786
        %v3809 = vpop.xlane.xlu0 %3808
        %3810 = vadd.xlane.f32.xlu0 %v3787
        %v3811 = vpop.xlane.xlu0 %3810
        %3812 = vadd.xlane.f32.xlu0 %v3788
        %v3813 = vpop.xlane.xlu0 %3812
        %3814 = vadd.xlane.f32.xlu0 %v3789
        %v3815 = vpop.xlane.xlu0 %3814
        %3816 = vadd.xlane.f32.xlu0 %v3790
        %v3817 = vpop.xlane.xlu0 %3816
        %3818 = vadd.xlane.f32.xlu0 %v3791
        %v3819 = vpop.xlane.xlu0 %3818
        %3820 = vadd.xlane.f32.xlu0 %v3792
        %v3821 = vpop.xlane.xlu0 %3820
        %3822 = vadd.xlane.f32.xlu0 %v3793
        %v3823 = vpop.xlane.xlu0 %3822
        %3824 = vadd.xlane.f32.xlu0 %v3794
        %v3825 = vpop.xlane.xlu0 %3824
        %3826 = vadd.xlane.f32.xlu0 %v3795
        %v3827 = vpop.xlane.xlu0 %3826
        %v3844 = vperm.slane %v3797, %v1830
        %v3845 = vperm.slane %v3799, %v1832
        %v3846 = vsel %vm1834, %v3845, %v3844
        %v3847 = vperm.slane %v3801, %v1830
        %v3848 = vperm.slane %v3803, %v1832
        %v3849 = vsel %vm1834, %v3848, %v3847
        %v3850 = vperm.slane %v3805, %v1830
        %v3851 = vperm.slane %v3807, %v1832
        %v3852 = vsel %vm1834, %v3851, %v3850
        %v3853 = vperm.slane %v3809, %v1830
        %v3854 = vperm.slane %v3811, %v1832
        %v3855 = vsel %vm1834, %v3854, %v3853
        %v3856 = vperm.slane %v3813, %v1830
        %v3857 = vperm.slane %v3815, %v1832
        %v3858 = vsel %vm1834, %v3857, %v3856
        %v3859 = vperm.slane %v3817, %v1830
        %v3860 = vperm.slane %v3819, %v1832
        %v3861 = vsel %vm1834, %v3860, %v3859
        %v3862 = vperm.slane %v3821, %v1830
        %v3863 = vperm.slane %v3823, %v1832
        %v3864 = vsel %vm1834, %v3863, %v3862
        %v3865 = vperm.slane %v3825, %v1830
        %v3866 = vperm.slane %v3827, %v1832
        %v3867 = vsel %vm1834, %v3866, %v3865
        %v3868 = vsel %vm1857, %v3849, %v3846
        %v3869 = vsel %vm1859, %v3852, %v3868
        %v3870 = vsel %vm1861, %v3855, %v3869
        %v3871 = vsel %vm1863, %v3858, %v3870
        %v3872 = vsel %vm1865, %v3861, %v3871
        %v3873 = vsel %vm1867, %v3864, %v3872
        %v3874 = vsel %vm1869, %v3867, %v3873
        %v3876 = vsel %vm1872, %v3874, -inf
        %3877 = vmax.xlane.f32.xlu0 %v3876
        %v3878 = vpop.xlane.xlu0 %3877
        %v3880 = vperm.slane %v3878, 0
        %v3881 = vperm.slane %v3878, 1
        %v3882 = vperm.slane %v3878, 2
        %v3883 = vperm.slane %v3878, 3
        %v3884 = vperm.slane %v3878, 4
        %v3885 = vperm.slane %v3878, 5
        %v3886 = vperm.slane %v3878, 6
        %v3887 = vperm.slane %v3878, 7
        %v3896 = vsub.f32 %v3797, %v3880
        %v3897 = vsub.f32 %v3799, %v3880
        %v3898 = vsub.f32 %v3801, %v3881
        %v3899 = vsub.f32 %v3803, %v3881
        %v3900 = vsub.f32 %v3805, %v3882
        %v3901 = vsub.f32 %v3807, %v3882
        %v3902 = vsub.f32 %v3809, %v3883
        %v3903 = vsub.f32 %v3811, %v3883
        %v3904 = vsub.f32 %v3813, %v3884
        %v3905 = vsub.f32 %v3815, %v3884
        %v3906 = vsub.f32 %v3817, %v3885
        %v3907 = vsub.f32 %v3819, %v3885
        %v3908 = vsub.f32 %v3821, %v3886
        %v3909 = vsub.f32 %v3823, %v3886
        %v3910 = vsub.f32 %v3825, %v3887
        %v3911 = vsub.f32 %v3827, %v3887
        %v3912 = vmul.f32 %v3896, 1.442695
        %v3913 = vpow.pop %v3912
        %v3914 = vmul.f32 %v3897, 1.442695
        %v3915 = vpow.pop %v3914
        %v3916 = vmul.f32 %v3898, 1.442695
        %v3917 = vpow.pop %v3916
        %v3918 = vmul.f32 %v3899, 1.442695
        %v3919 = vpow.pop %v3918
        %v3920 = vmul.f32 %v3900, 1.442695
        %v3921 = vpow.pop %v3920
        %v3922 = vmul.f32 %v3901, 1.442695
        %v3923 = vpow.pop %v3922
        %v3924 = vmul.f32 %v3902, 1.442695
        %v3925 = vpow.pop %v3924
        %v3926 = vmul.f32 %v3903, 1.442695
        %v3927 = vpow.pop %v3926
        %v3928 = vmul.f32 %v3904, 1.442695
        %v3929 = vpow.pop %v3928
        %v3930 = vmul.f32 %v3905, 1.442695
        %v3931 = vpow.pop %v3930
        %v3932 = vmul.f32 %v3906, 1.442695
        %v3933 = vpow.pop %v3932
        %v3934 = vmul.f32 %v3907, 1.442695
        %v3935 = vpow.pop %v3934
        %v3936 = vmul.f32 %v3908, 1.442695
        %v3937 = vpow.pop %v3936
        %v3938 = vmul.f32 %v3909, 1.442695
        %v3939 = vpow.pop %v3938
        %v3940 = vmul.f32 %v3910, 1.442695
        %v3941 = vpow.pop %v3940
        %v3942 = vmul.f32 %v3911, 1.442695
        %v3943 = vpow.pop %v3942
        %3960 = vset.pattern.permute.xlu0 0
        %3961 = vperm.xlu0 %3960, %v3913
        %v3962 = vpop.permute.xlu0 %3961
        %3963 = vset.pattern.permute.xlu0 0
        %3964 = vperm.xlu0 %3963, %v3915
        %v3965 = vpop.permute.xlu0 %3964
        %3966 = vset.pattern.permute.xlu0 0
        %3967 = vperm.xlu0 %3966, %v3917
        %v3968 = vpop.permute.xlu0 %3967
        %3969 = vset.pattern.permute.xlu0 0
        %3970 = vperm.xlu0 %3969, %v3919
        %v3971 = vpop.permute.xlu0 %3970
        %3972 = vset.pattern.permute.xlu0 0
        %3973 = vperm.xlu0 %3972, %v3921
        %v3974 = vpop.permute.xlu0 %3973
        %3975 = vset.pattern.permute.xlu0 0
        %3976 = vperm.xlu0 %3975, %v3923
        %v3977 = vpop.permute.xlu0 %3976
        %3978 = vset.pattern.permute.xlu0 0
        %3979 = vperm.xlu0 %3978, %v3925
        %v3980 = vpop.permute.xlu0 %3979
        %3981 = vset.pattern.permute.xlu0 0
        %3982 = vperm.xlu0 %3981, %v3927
        %v3983 = vpop.permute.xlu0 %3982
        %3984 = vset.pattern.permute.xlu0 0
        %3985 = vperm.xlu0 %3984, %v3929
        %v3986 = vpop.permute.xlu0 %3985
        %3987 = vset.pattern.permute.xlu0 0
        %3988 = vperm.xlu0 %3987, %v3931
        %v3989 = vpop.permute.xlu0 %3988
        %3990 = vset.pattern.permute.xlu0 0
        %3991 = vperm.xlu0 %3990, %v3933
        %v3992 = vpop.permute.xlu0 %3991
        %3993 = vset.pattern.permute.xlu0 0
        %3994 = vperm.xlu0 %3993, %v3935
        %v3995 = vpop.permute.xlu0 %3994
        %3996 = vset.pattern.permute.xlu0 0
        %3997 = vperm.xlu0 %3996, %v3937
        %v3998 = vpop.permute.xlu0 %3997
        %3999 = vset.pattern.permute.xlu0 0
        %4000 = vperm.xlu0 %3999, %v3939
        %v4001 = vpop.permute.xlu0 %4000
        %4002 = vset.pattern.permute.xlu0 0
        %4003 = vperm.xlu0 %4002, %v3941
        %v4004 = vpop.permute.xlu0 %4003
        %4005 = vset.pattern.permute.xlu0 0
        %4006 = vperm.xlu0 %4005, %v3943
        %v4007 = vpop.permute.xlu0 %4006
        %v4008 = vperm.slane %v3962, %v1830
        %v4009 = vperm.slane %v3965, %v1832
        %v4010 = vsel %vm1834, %v4009, %v4008
        %v4011 = vperm.slane %v3968, %v1830
        %v4012 = vperm.slane %v3971, %v1832
        %v4013 = vsel %vm1834, %v4012, %v4011
        %v4014 = vperm.slane %v3974, %v1830
        %v4015 = vperm.slane %v3977, %v1832
        %v4016 = vsel %vm1834, %v4015, %v4014
        %v4017 = vperm.slane %v3980, %v1830
        %v4018 = vperm.slane %v3983, %v1832
        %v4019 = vsel %vm1834, %v4018, %v4017
        %v4020 = vperm.slane %v3986, %v1830
        %v4021 = vperm.slane %v3989, %v1832
        %v4022 = vsel %vm1834, %v4021, %v4020
        %v4023 = vperm.slane %v3992, %v1830
        %v4024 = vperm.slane %v3995, %v1832
        %v4025 = vsel %vm1834, %v4024, %v4023
        %v4026 = vperm.slane %v3998, %v1830
        %v4027 = vperm.slane %v4001, %v1832
        %v4028 = vsel %vm1834, %v4027, %v4026
        %v4029 = vperm.slane %v4004, %v1830
        %v4030 = vperm.slane %v4007, %v1832
        %v4031 = vsel %vm1834, %v4030, %v4029
        %v4032 = vsel %vm1857, %v4013, %v4010
        %v4033 = vsel %vm1859, %v4016, %v4032
        %v4034 = vsel %vm1861, %v4019, %v4033
        %v4035 = vsel %vm1863, %v4022, %v4034
        %v4036 = vsel %vm1865, %v4025, %v4035
        %v4037 = vsel %vm1867, %v4028, %v4036
        %v4038 = vsel %vm1869, %v4031, %v4037
        %v4040 = vsel %vm1872, %v4038, 0.0
        %4041 = vadd.xlane.f32.xlu0 %v4040
        %v4042 = vpop.xlane.xlu0 %4041
        %v4044 = vperm.slane %v4042, 0
        %v4045 = vperm.slane %v4042, 1
        %v4046 = vperm.slane %v4042, 2
        %v4047 = vperm.slane %v4042, 3
        %v4048 = vperm.slane %v4042, 4
        %v4049 = vperm.slane %v4042, 5
        %v4050 = vperm.slane %v4042, 6
        %v4051 = vperm.slane %v4042, 7
        %v4060 = vrcp.pop %v4044
        %v4061 = vmul.f32 %v4044, %v4060
        %v4062 = vsub.f32 1.0, %v4061
        %v4063 = vmul.f32 %v4060, %v4062
        %v4064 = vadd.f32 %v4060, %v4063
        %vm4065 = vweird.f32 %v4044
        %vm4066 = vweird.f32 %v4060
        %vm4067 = vmor %vm4065, %vm4066
        %v4068 = vsel %vm4067, %v4060, %v4064
        %v4069 = vand.u32 2147483647, %v4044
        %vm4070 = vcmp.eq.f32.partialorder %v4069, 8.507059e+37
        %v4071 = vand.u32 %v4044, 2147483648
        %v4072 = vor.u32 1.1754944e-38, %v4071
        %v4073 = vsel %vm4070, %v4072, %v4068
        %v4074 = vmul.f32 %v3913, %v4073
        %v4075 = vmul.f32 %v3915, %v4073
        %v4076 = vrcp.pop %v4045
        %v4077 = vmul.f32 %v4045, %v4076
        %v4078 = vsub.f32 1.0, %v4077
        %v4079 = vmul.f32 %v4076, %v4078
        %v4080 = vadd.f32 %v4076, %v4079
        %vm4081 = vweird.f32 %v4045
        %vm4082 = vweird.f32 %v4076
        %vm4083 = vmor %vm4081, %vm4082
        %v4084 = vsel %vm4083, %v4076, %v4080
        %v4085 = vand.u32 2147483647, %v4045
        %vm4086 = vcmp.eq.f32.partialorder %v4085, 8.507059e+37
        %v4087 = vand.u32 %v4045, 2147483648
        %v4088 = vor.u32 1.1754944e-38, %v4087
        %v4089 = vsel %vm4086, %v4088, %v4084
        %v4090 = vmul.f32 %v3917, %v4089
        %v4091 = vmul.f32 %v3919, %v4089
        %v4092 = vrcp.pop %v4046
        %v4093 = vmul.f32 %v4046, %v4092
        %v4094 = vsub.f32 1.0, %v4093
        %v4095 = vmul.f32 %v4092, %v4094
        %v4096 = vadd.f32 %v4092, %v4095
        %vm4097 = vweird.f32 %v4046
        %vm4098 = vweird.f32 %v4092
        %vm4099 = vmor %vm4097, %vm4098
        %v4100 = vsel %vm4099, %v4092, %v4096
        %v4101 = vand.u32 2147483647, %v4046
        %vm4102 = vcmp.eq.f32.partialorder %v4101, 8.507059e+37
        %v4103 = vand.u32 %v4046, 2147483648
        %v4104 = vor.u32 1.1754944e-38, %v4103
        %v4105 = vsel %vm4102, %v4104, %v4100
        %v4106 = vmul.f32 %v3921, %v4105
        %v4107 = vmul.f32 %v3923, %v4105
        %v4108 = vrcp.pop %v4047
        %v4109 = vmul.f32 %v4047, %v4108
        %v4110 = vsub.f32 1.0, %v4109
        %v4111 = vmul.f32 %v4108, %v4110
        %v4112 = vadd.f32 %v4108, %v4111
        %vm4113 = vweird.f32 %v4047
        %vm4114 = vweird.f32 %v4108
        %vm4115 = vmor %vm4113, %vm4114
        %v4116 = vsel %vm4115, %v4108, %v4112
        %v4117 = vand.u32 2147483647, %v4047
        %vm4118 = vcmp.eq.f32.partialorder %v4117, 8.507059e+37
        %v4119 = vand.u32 %v4047, 2147483648
        %v4120 = vor.u32 1.1754944e-38, %v4119
        %v4121 = vsel %vm4118, %v4120, %v4116
        %v4122 = vmul.f32 %v3925, %v4121
        %v4123 = vmul.f32 %v3927, %v4121
        %v4124 = vrcp.pop %v4048
        %v4125 = vmul.f32 %v4048, %v4124
        %v4126 = vsub.f32 1.0, %v4125
        %v4127 = vmul.f32 %v4124, %v4126
        %v4128 = vadd.f32 %v4124, %v4127
        %vm4129 = vweird.f32 %v4048
        %vm4130 = vweird.f32 %v4124
        %vm4131 = vmor %vm4129, %vm4130
        %v4132 = vsel %vm4131, %v4124, %v4128
        %v4133 = vand.u32 2147483647, %v4048
        %vm4134 = vcmp.eq.f32.partialorder %v4133, 8.507059e+37
        %v4135 = vand.u32 %v4048, 2147483648
        %v4136 = vor.u32 1.1754944e-38, %v4135
        %v4137 = vsel %vm4134, %v4136, %v4132
        %v4138 = vmul.f32 %v3929, %v4137
        %v4139 = vmul.f32 %v3931, %v4137
        %v4140 = vrcp.pop %v4049
        %v4141 = vmul.f32 %v4049, %v4140
        %v4142 = vsub.f32 1.0, %v4141
        %v4143 = vmul.f32 %v4140, %v4142
        %v4144 = vadd.f32 %v4140, %v4143
        %vm4145 = vweird.f32 %v4049
        %vm4146 = vweird.f32 %v4140
        %vm4147 = vmor %vm4145, %vm4146
        %v4148 = vsel %vm4147, %v4140, %v4144
        %v4149 = vand.u32 2147483647, %v4049
        %vm4150 = vcmp.eq.f32.partialorder %v4149, 8.507059e+37
        %v4151 = vand.u32 %v4049, 2147483648
        %v4152 = vor.u32 1.1754944e-38, %v4151
        %v4153 = vsel %vm4150, %v4152, %v4148
        %v4154 = vmul.f32 %v3933, %v4153
        %v4155 = vmul.f32 %v3935, %v4153
        %v4156 = vrcp.pop %v4050
        %v4157 = vmul.f32 %v4050, %v4156
        %v4158 = vsub.f32 1.0, %v4157
        %v4159 = vmul.f32 %v4156, %v4158
        %v4160 = vadd.f32 %v4156, %v4159
        %vm4161 = vweird.f32 %v4050
        %vm4162 = vweird.f32 %v4156
        %vm4163 = vmor %vm4161, %vm4162
        %v4164 = vsel %vm4163, %v4156, %v4160
        %v4165 = vand.u32 2147483647, %v4050
        %vm4166 = vcmp.eq.f32.partialorder %v4165, 8.507059e+37
        %v4167 = vand.u32 %v4050, 2147483648
        %v4168 = vor.u32 1.1754944e-38, %v4167
        %v4169 = vsel %vm4166, %v4168, %v4164
        %v4170 = vmul.f32 %v3937, %v4169
        %v4171 = vmul.f32 %v3939, %v4169
        %v4172 = vrcp.pop %v4051
        %v4173 = vmul.f32 %v4051, %v4172
        %v4174 = vsub.f32 1.0, %v4173
        %v4175 = vmul.f32 %v4172, %v4174
        %v4176 = vadd.f32 %v4172, %v4175
        %vm4177 = vweird.f32 %v4051
        %vm4178 = vweird.f32 %v4172
        %vm4179 = vmor %vm4177, %vm4178
        %v4180 = vsel %vm4179, %v4172, %v4176
        %v4181 = vand.u32 2147483647, %v4051
        %vm4182 = vcmp.eq.f32.partialorder %v4181, 8.507059e+37
        %v4183 = vand.u32 %v4051, 2147483648
        %v4184 = vor.u32 1.1754944e-38, %v4183
        %v4185 = vsel %vm4182, %v4184, %v4180
        %v4186 = vmul.f32 %v3941, %v4185
        %v4187 = vmul.f32 %v3943, %v4185
        %v4188 = vpack.c.bf16 %v4074, %v4074
        %v4189 = vpack.c.bf16 %v4075, %v4075
        %v4190 = vpack.c.bf16 %v4090, %v4090
        %v4191 = vpack.c.bf16 %v4091, %v4091
        %v4192 = vpack.c.bf16 %v4106, %v4106
        %v4193 = vpack.c.bf16 %v4107, %v4107
        %v4194 = vpack.c.bf16 %v4122, %v4122
        %v4195 = vpack.c.bf16 %v4123, %v4123
        %v4196 = vpack.c.bf16 %v4138, %v4138
        %v4197 = vpack.c.bf16 %v4139, %v4139
        %v4198 = vpack.c.bf16 %v4154, %v4154
        %v4199 = vpack.c.bf16 %v4155, %v4155
        %v4200 = vpack.c.bf16 %v4170, %v4170
        %v4201 = vpack.c.bf16 %v4171, %v4171
        %v4202 = vpack.c.bf16 %v4186, %v4186
        %v4203 = vpack.c.bf16 %v4187, %v4187
        %4205 = vset.pattern.permute.xlu0 0
        %4206 = vperm.xlu0 %4205, %v4188
        %v4207 = vpop.permute.xlu0 %4206
        %v4210 = vunpack.c.l.s4 839922192
        %v4211 = vunpack.c.0.s8 %v4210
        %v4212 = vperm.slane %v4207, %v4211
        %4214 = vset.pattern.permute.xlu0 0
        %4215 = vperm.xlu0 %4214, %v4189
        %v4216 = vpop.permute.xlu0 %4215
        %v4219 = vunpack.c.l.s4 839922192
        %v4220 = vunpack.c.0.s8 %v4219
        %v4221 = vperm.slane %v4216, %v4220
        %4223 = vset.pattern.permute.xlu0 0
        %4224 = vperm.xlu0 %4223, %v4190
        %v4225 = vpop.permute.xlu0 %4224
        %v4228 = vunpack.c.l.s4 839922192
        %v4229 = vunpack.c.0.s8 %v4228
        %v4230 = vperm.slane %v4225, %v4229
        %4232 = vset.pattern.permute.xlu0 0
        %4233 = vperm.xlu0 %4232, %v4191
        %v4234 = vpop.permute.xlu0 %4233
        %v4237 = vunpack.c.l.s4 839922192
        %v4238 = vunpack.c.0.s8 %v4237
        %v4239 = vperm.slane %v4234, %v4238
        %4241 = vset.pattern.permute.xlu0 0
        %4242 = vperm.xlu0 %4241, %v4192
        %v4243 = vpop.permute.xlu0 %4242
        %v4246 = vunpack.c.l.s4 839922192
        %v4247 = vunpack.c.0.s8 %v4246
        %v4248 = vperm.slane %v4243, %v4247
        %4250 = vset.pattern.permute.xlu0 0
        %4251 = vperm.xlu0 %4250, %v4193
        %v4252 = vpop.permute.xlu0 %4251
        %v4255 = vunpack.c.l.s4 839922192
        %v4256 = vunpack.c.0.s8 %v4255
        %v4257 = vperm.slane %v4252, %v4256
        %4259 = vset.pattern.permute.xlu0 0
        %4260 = vperm.xlu0 %4259, %v4194
        %v4261 = vpop.permute.xlu0 %4260
        %v4264 = vunpack.c.l.s4 839922192
        %v4265 = vunpack.c.0.s8 %v4264
        %v4266 = vperm.slane %v4261, %v4265
        %4268 = vset.pattern.permute.xlu0 0
        %4269 = vperm.xlu0 %4268, %v4195
        %v4270 = vpop.permute.xlu0 %4269
        %v4273 = vunpack.c.l.s4 839922192
        %v4274 = vunpack.c.0.s8 %v4273
        %v4275 = vperm.slane %v4270, %v4274
        %4277 = vset.pattern.permute.xlu0 0
        %4278 = vperm.xlu0 %4277, %v4196
        %v4279 = vpop.permute.xlu0 %4278
        %v4282 = vunpack.c.l.s4 839922192
        %v4283 = vunpack.c.0.s8 %v4282
        %v4284 = vperm.slane %v4279, %v4283
        %4286 = vset.pattern.permute.xlu0 0
        %4287 = vperm.xlu0 %4286, %v4197
        %v4288 = vpop.permute.xlu0 %4287
        %v4291 = vunpack.c.l.s4 839922192
        %v4292 = vunpack.c.0.s8 %v4291
        %v4293 = vperm.slane %v4288, %v4292
        %4295 = vset.pattern.permute.xlu0 0
        %4296 = vperm.xlu0 %4295, %v4198
        %v4297 = vpop.permute.xlu0 %4296
        %v4300 = vunpack.c.l.s4 839922192
        %v4301 = vunpack.c.0.s8 %v4300
        %v4302 = vperm.slane %v4297, %v4301
        %4304 = vset.pattern.permute.xlu0 0
        %4305 = vperm.xlu0 %4304, %v4199
        %v4306 = vpop.permute.xlu0 %4305
        %v4309 = vunpack.c.l.s4 839922192
        %v4310 = vunpack.c.0.s8 %v4309
        %v4311 = vperm.slane %v4306, %v4310
        %4313 = vset.pattern.permute.xlu0 0
        %4314 = vperm.xlu0 %4313, %v4200
        %v4315 = vpop.permute.xlu0 %4314
        %v4318 = vunpack.c.l.s4 839922192
        %v4319 = vunpack.c.0.s8 %v4318
        %v4320 = vperm.slane %v4315, %v4319
        %4322 = vset.pattern.permute.xlu0 0
        %4323 = vperm.xlu0 %4322, %v4201
        %v4324 = vpop.permute.xlu0 %4323
        %v4327 = vunpack.c.l.s4 839922192
        %v4328 = vunpack.c.0.s8 %v4327
        %v4329 = vperm.slane %v4324, %v4328
        %4331 = vset.pattern.permute.xlu0 0
        %4332 = vperm.xlu0 %4331, %v4202
        %v4333 = vpop.permute.xlu0 %4332
        %v4336 = vunpack.c.l.s4 839922192
        %v4337 = vunpack.c.0.s8 %v4336
        %v4338 = vperm.slane %v4333, %v4337
        %4340 = vset.pattern.permute.xlu0 0
        %4341 = vperm.xlu0 %4340, %v4203
        %v4342 = vpop.permute.xlu0 %4341
        %v4345 = vunpack.c.l.s4 839922192
        %v4346 = vunpack.c.0.s8 %v4345
        %v4347 = vperm.slane %v4342, %v4346
        %v4348 = vunpack.c.l.bf16 %v4212
        %v4349 = vunpack.c.l.bf16 %v4221
        %v4350 = vunpack.c.l.bf16 %v4230
        %v4351 = vunpack.c.l.bf16 %v4239
        %v4352 = vunpack.c.l.bf16 %v4248
        %v4353 = vunpack.c.l.bf16 %v4257
        %v4354 = vunpack.c.l.bf16 %v4266
        %v4355 = vunpack.c.l.bf16 %v4275
        %v4356 = vunpack.c.l.bf16 %v4284
        %v4357 = vunpack.c.l.bf16 %v4293
        %v4358 = vunpack.c.l.bf16 %v4302
        %v4359 = vunpack.c.l.bf16 %v4311
        %v4360 = vunpack.c.l.bf16 %v4320
        %v4361 = vunpack.c.l.bf16 %v4329
        %v4362 = vunpack.c.l.bf16 %v4338
        %v4363 = vunpack.c.l.bf16 %v4347
        %v4364 = vmul.f32 %v4348, %v2361
        %v4365 = vmul.f32 %v4349, %v2362
        %v4366 = vmul.f32 %v4350, %v2363
        %v4367 = vmul.f32 %v4351, %v2364
        %v4368 = vmul.f32 %v4352, %v2365
        %v4369 = vmul.f32 %v4353, %v2366
        %v4370 = vmul.f32 %v4354, %v2367
        %v4371 = vmul.f32 %v4355, %v2368
        %v4372 = vmul.f32 %v4356, %v2369
        %v4373 = vmul.f32 %v4357, %v2370
        %v4374 = vmul.f32 %v4358, %v2371
        %v4375 = vmul.f32 %v4359, %v2372
        %v4376 = vmul.f32 %v4360, %v2373
        %v4377 = vmul.f32 %v4361, %v2374
        %v4378 = vmul.f32 %v4362, %v2375
        %v4379 = vmul.f32 %v4363, %v2376
        %v4380 = vpack.c.bf16 %v4365, %v4364
        %v4381 = vpack.c.bf16 %v4367, %v4366
        %v4382 = vpack.c.bf16 %v4369, %v4368
        %v4383 = vpack.c.bf16 %v4371, %v4370
        %v4384 = vpack.c.bf16 %v4373, %v4372
        %v4385 = vpack.c.bf16 %v4375, %v4374
        %v4386 = vpack.c.bf16 %v4377, %v4376
        %v4387 = vpack.c.bf16 %v4379, %v4378
        %v4388 = vunpack.c.l.bf16 %v4380
        %v4389 = vunpack.c.h.bf16 %v4380
        %v4390 = vunpack.c.l.bf16 %v4381
        %v4391 = vunpack.c.h.bf16 %v4381
        %v4392 = vunpack.c.l.bf16 %v4382
        %v4393 = vunpack.c.h.bf16 %v4382
        %v4394 = vunpack.c.l.bf16 %v4383
        %v4395 = vunpack.c.h.bf16 %v4383
        %v4396 = vunpack.c.l.bf16 %v4384
        %v4397 = vunpack.c.h.bf16 %v4384
        %v4398 = vunpack.c.l.bf16 %v4385
        %v4399 = vunpack.c.h.bf16 %v4385
        %v4400 = vunpack.c.l.bf16 %v4386
        %v4401 = vunpack.c.h.bf16 %v4386
        %v4402 = vunpack.c.l.bf16 %v4387
        %v4403 = vunpack.c.h.bf16 %v4387
        %v4404 = vadd.f32 %v4388, %v4389
        %v4405 = vrot.slane %v4404, 4
        %v4406 = vadd.f32 %v4404, %v4405
        %v4407 = vrot.slane %v4406, 2
        %v4408 = vadd.f32 %v4406, %v4407
        %v4409 = vrot.slane %v4408, 1
        %v4410 = vadd.f32 %v4408, %v4409
        %v4411 = vadd.f32 %v4390, %v4391
        %v4412 = vrot.slane %v4411, 4
        %v4413 = vadd.f32 %v4411, %v4412
        %v4414 = vrot.slane %v4413, 2
        %v4415 = vadd.f32 %v4413, %v4414
        %v4416 = vrot.slane %v4415, 1
        %v4417 = vadd.f32 %v4415, %v4416
        %v4418 = vadd.f32 %v4392, %v4393
        %v4419 = vrot.slane %v4418, 4
        %v4420 = vadd.f32 %v4418, %v4419
        %v4421 = vrot.slane %v4420, 2
        %v4422 = vadd.f32 %v4420, %v4421
        %v4423 = vrot.slane %v4422, 1
        %v4424 = vadd.f32 %v4422, %v4423
        %v4425 = vadd.f32 %v4394, %v4395
        %v4426 = vrot.slane %v4425, 4
        %v4427 = vadd.f32 %v4425, %v4426
        %v4428 = vrot.slane %v4427, 2
        %v4429 = vadd.f32 %v4427, %v4428
        %v4430 = vrot.slane %v4429, 1
        %v4431 = vadd.f32 %v4429, %v4430
        %v4432 = vadd.f32 %v4396, %v4397
        %v4433 = vrot.slane %v4432, 4
        %v4434 = vadd.f32 %v4432, %v4433
        %v4435 = vrot.slane %v4434, 2
        %v4436 = vadd.f32 %v4434, %v4435
        %v4437 = vrot.slane %v4436, 1
        %v4438 = vadd.f32 %v4436, %v4437
        %v4439 = vadd.f32 %v4398, %v4399
        %v4440 = vrot.slane %v4439, 4
        %v4441 = vadd.f32 %v4439, %v4440
        %v4442 = vrot.slane %v4441, 2
        %v4443 = vadd.f32 %v4441, %v4442
        %v4444 = vrot.slane %v4443, 1
        %v4445 = vadd.f32 %v4443, %v4444
        %v4446 = vadd.f32 %v4400, %v4401
        %v4447 = vrot.slane %v4446, 4
        %v4448 = vadd.f32 %v4446, %v4447
        %v4449 = vrot.slane %v4448, 2
        %v4450 = vadd.f32 %v4448, %v4449
        %v4451 = vrot.slane %v4450, 1
        %v4452 = vadd.f32 %v4450, %v4451
        %v4453 = vadd.f32 %v4402, %v4403
        %v4454 = vrot.slane %v4453, 4
        %v4455 = vadd.f32 %v4453, %v4454
        %v4456 = vrot.slane %v4455, 2
        %v4457 = vadd.f32 %v4455, %v4456
        %v4458 = vrot.slane %v4457, 1
        %v4459 = vadd.f32 %v4457, %v4458
        %v4460 = vld [vmem:[#allocation9 + $0x780] sm:$0xff]
        %v4461 = vld [vmem:[#allocation9 + $0x788] sm:$0xff]
        %v4462 = vld [vmem:[#allocation9 + $0x790] sm:$0xf]
        %v4463 = vld [vmem:[#allocation9 + $0x794] sm:$0xff]
        %v4464 = vld [vmem:[#allocation9 + $0x79c] sm:$0xff]
        %v4465 = vld [vmem:[#allocation9 + $0x7a4] sm:$0xf]
        %v4466 = vld [vmem:[#allocation9 + $0x7a8] sm:$0xff]
        %v4467 = vld [vmem:[#allocation9 + $0x7b0] sm:$0xff]
        %v4468 = vld [vmem:[#allocation9 + $0x7b8] sm:$0xf]
        %v4469 = vld [vmem:[#allocation9 + $0x7bc] sm:$0xff]
        %v4470 = vld [vmem:[#allocation9 + $0x7c4] sm:$0xff]
        %v4471 = vld [vmem:[#allocation9 + $0x7cc] sm:$0xf]
        %v4472 = vld [vmem:[#allocation9 + $0x7d0] sm:$0xff]
        %v4473 = vld [vmem:[#allocation9 + $0x7d8] sm:$0xff]
        %v4474 = vld [vmem:[#allocation9 + $0x7e0] sm:$0xf]
        %v4475 = vld [vmem:[#allocation9 + $0x7e4] sm:$0xff]
        %v4476 = vld [vmem:[#allocation9 + $0x7ec] sm:$0xff]
        %v4477 = vld [vmem:[#allocation9 + $0x7f4] sm:$0xf]
        %v4478 = vld [vmem:[#allocation9 + $0x7f8] sm:$0xff]
        %v4479 = vld [vmem:[#allocation9 + $0x800] sm:$0xff]
        %v4480 = vld [vmem:[#allocation9 + $0x808] sm:$0xf]
        %v4481 = vld [vmem:[#allocation9 + $0x80c] sm:$0xff]
        %v4482 = vld [vmem:[#allocation9 + $0x814] sm:$0xff]
        %v4483 = vld [vmem:[#allocation9 + $0x81c] sm:$0xf]
        %v4484 = vld [vmem:[#allocation9 + $0x820] sm:$0xff]
        %v4485 = vld [vmem:[#allocation9 + $0x828] sm:$0xff]
        %v4486 = vld [vmem:[#allocation9 + $0x830] sm:$0xf]
        %v4487 = vld [vmem:[#allocation9 + $0x834] sm:$0xff]
        %v4488 = vld [vmem:[#allocation9 + $0x83c] sm:$0xff]
        %v4489 = vld [vmem:[#allocation9 + $0x844] sm:$0xf]
        %v4490 = vld [vmem:[#allocation9 + $0x848] sm:$0xff]
        %v4491 = vld [vmem:[#allocation9 + $0x850] sm:$0xff]
        %v4492 = vld [vmem:[#allocation9 + $0x858] sm:$0xf]
        %v4493 = vld [vmem:[#allocation9 + $0x85c] sm:$0xff]
        %v4494 = vld [vmem:[#allocation9 + $0x864] sm:$0xff]
        %v4495 = vld [vmem:[#allocation9 + $0x86c] sm:$0xf]
        %v4496 = vld [vmem:[#allocation9 + $0x870] sm:$0xff]
        %v4497 = vld [vmem:[#allocation9 + $0x878] sm:$0xff]
        %v4498 = vld [vmem:[#allocation9 + $0x880] sm:$0xf]
        %v4499 = vld [vmem:[#allocation9 + $0x884] sm:$0xff]
        %v4500 = vld [vmem:[#allocation9 + $0x88c] sm:$0xff]
        %v4501 = vld [vmem:[#allocation9 + $0x894] sm:$0xf]
        %v4502 = vld [vmem:[#allocation9 + $0x898] sm:$0xff]
        %v4503 = vld [vmem:[#allocation9 + $0x8a0] sm:$0xff]
        %v4504 = vld [vmem:[#allocation9 + $0x8a8] sm:$0xf]
        %v4505 = vld [vmem:[#allocation9 + $0x8ac] sm:$0xff]
        %v4506 = vld [vmem:[#allocation9 + $0x8b4] sm:$0xff]
        %v4507 = vld [vmem:[#allocation9 + $0x8bc] sm:$0xf]
        %v4508 = vld [vmem:[#allocation9 + $0x8c0] sm:$0xff]
        %v4509 = vld [vmem:[#allocation9 + $0x8c8] sm:$0xff]
        %v4510 = vld [vmem:[#allocation9 + $0x8d0] sm:$0xf]
        %v4511 = vld [vmem:[#allocation9 + $0x8d4] sm:$0xff]
        %v4512 = vld [vmem:[#allocation9 + $0x8dc] sm:$0xff]
        %v4513 = vld [vmem:[#allocation9 + $0x8e4] sm:$0xf]
        %v4514 = vld [vmem:[#allocation9 + $0x8e8] sm:$0xff]
        %v4515 = vld [vmem:[#allocation9 + $0x8f0] sm:$0xff]
        %v4516 = vld [vmem:[#allocation9 + $0x8f8] sm:$0xf]
        %v4517 = vld [vmem:[#allocation9 + $0x8fc] sm:$0xff]
        %v4518 = vld [vmem:[#allocation9 + $0x904] sm:$0xff]
        %v4519 = vld [vmem:[#allocation9 + $0x90c] sm:$0xf]
        %v4520 = vld [vmem:[#allocation9 + $0x910] sm:$0xff]
        %v4521 = vld [vmem:[#allocation9 + $0x918] sm:$0xff]
        %v4522 = vld [vmem:[#allocation9 + $0x920] sm:$0xf]
        %v4523 = vld [vmem:[#allocation9 + $0x924] sm:$0xff]
        %v4524 = vld [vmem:[#allocation9 + $0x92c] sm:$0xff]
        %v4525 = vld [vmem:[#allocation9 + $0x934] sm:$0xf]
        %v4526 = vld [vmem:[#allocation9 + $0x938] sm:$0xff]
        %v4527 = vld [vmem:[#allocation9 + $0x940] sm:$0xff]
        %v4528 = vld [vmem:[#allocation9 + $0x948] sm:$0xf]
        %v4529 = vld [vmem:[#allocation9 + $0x94c] sm:$0xff]
        %v4530 = vld [vmem:[#allocation9 + $0x954] sm:$0xff]
        %v4531 = vld [vmem:[#allocation9 + $0x95c] sm:$0xf]
        %v4532 = vld [vmem:[#allocation9 + $0x960] sm:$0xff]
        %v4533 = vld [vmem:[#allocation9 + $0x968] sm:$0xff]
        %v4534 = vld [vmem:[#allocation9 + $0x970] sm:$0xf]
        %v4535 = vld [vmem:[#allocation9 + $0x974] sm:$0xff]
        %v4536 = vld [vmem:[#allocation9 + $0x97c] sm:$0xff]
        %v4537 = vld [vmem:[#allocation9 + $0x984] sm:$0xf]
        %v4538 = vld [vmem:[#allocation9 + $0x988] sm:$0xff]
        %v4539 = vld [vmem:[#allocation9 + $0x990] sm:$0xff]
        %v4540 = vld [vmem:[#allocation9 + $0x998] sm:$0xf]
        %v4541 = vld [vmem:[#allocation9 + $0x99c] sm:$0xff]
        %v4542 = vld [vmem:[#allocation9 + $0x9a4] sm:$0xff]
        %v4543 = vld [vmem:[#allocation9 + $0x9ac] sm:$0xf]
        %v4544 = vld [vmem:[#allocation9 + $0x9b0] sm:$0xff]
        %v4545 = vld [vmem:[#allocation9 + $0x9b8] sm:$0xff]
        %v4546 = vld [vmem:[#allocation9 + $0x9c0] sm:$0xf]
        %v4547 = vld [vmem:[#allocation9 + $0x9c4] sm:$0xff]
        %v4548 = vld [vmem:[#allocation9 + $0x9cc] sm:$0xff]
        %v4549 = vld [vmem:[#allocation9 + $0x9d4] sm:$0xf]
        %v4550 = vld [vmem:[#allocation9 + $0x9d8] sm:$0xff]
        %v4551 = vld [vmem:[#allocation9 + $0x9e0] sm:$0xff]
        %v4552 = vld [vmem:[#allocation9 + $0x9e8] sm:$0xf]
        %v4553 = vld [vmem:[#allocation9 + $0x9ec] sm:$0xff]
        %v4554 = vld [vmem:[#allocation9 + $0x9f4] sm:$0xff]
        %v4555 = vld [vmem:[#allocation9 + $0x9fc] sm:$0xf]
        %v4556 = vld [vmem:[#allocation9 + $0xa00] sm:$0xff]
        %v4557 = vld [vmem:[#allocation9 + $0xa08] sm:$0xff]
        %v4558 = vld [vmem:[#allocation9 + $0xa10] sm:$0xf]
        %v4559 = vld [vmem:[#allocation9 + $0xa14] sm:$0xff]
        %v4560 = vld [vmem:[#allocation9 + $0xa1c] sm:$0xff]
        %v4561 = vld [vmem:[#allocation9 + $0xa24] sm:$0xf]
        %v4562 = vld [vmem:[#allocation9 + $0xa28] sm:$0xff]
        %v4563 = vld [vmem:[#allocation9 + $0xa30] sm:$0xff]
        %v4564 = vld [vmem:[#allocation9 + $0xa38] sm:$0xf]
        %v4565 = vld [vmem:[#allocation9 + $0xa3c] sm:$0xff]
        %v4566 = vld [vmem:[#allocation9 + $0xa44] sm:$0xff]
        %v4567 = vld [vmem:[#allocation9 + $0xa4c] sm:$0xf]
        %v4568 = vld [vmem:[#allocation9 + $0xa50] sm:$0xff]
        %v4569 = vld [vmem:[#allocation9 + $0xa58] sm:$0xff]
        %v4570 = vld [vmem:[#allocation9 + $0xa60] sm:$0xf]
        %v4571 = vld [vmem:[#allocation9 + $0xa64] sm:$0xff]
        %v4572 = vld [vmem:[#allocation9 + $0xa6c] sm:$0xff]
        %v4573 = vld [vmem:[#allocation9 + $0xa74] sm:$0xf]
        %v4574 = vld [vmem:[#allocation9 + $0xa78] sm:$0xff]
        %v4575 = vld [vmem:[#allocation9 + $0xa80] sm:$0xff]
        %v4576 = vld [vmem:[#allocation9 + $0xa88] sm:$0xf]
        %v4577 = vld [vmem:[#allocation9 + $0xa8c] sm:$0xff]
        %v4578 = vld [vmem:[#allocation9 + $0xa94] sm:$0xff]
        %v4579 = vld [vmem:[#allocation9 + $0xa9c] sm:$0xf]
        %v4580 = vld [vmem:[#allocation9 + $0xaa0] sm:$0xff]
        %v4581 = vld [vmem:[#allocation9 + $0xaa8] sm:$0xff]
        %v4582 = vld [vmem:[#allocation9 + $0xab0] sm:$0xf]
        %v4583 = vld [vmem:[#allocation9 + $0xab4] sm:$0xff]
        %v4584 = vld [vmem:[#allocation9 + $0xabc] sm:$0xff]
        %v4585 = vld [vmem:[#allocation9 + $0xac4] sm:$0xf]
        %v4586 = vld [vmem:[#allocation9 + $0xac8] sm:$0xff]
        %v4587 = vld [vmem:[#allocation9 + $0xad0] sm:$0xff]
        %v4588 = vld [vmem:[#allocation9 + $0xad8] sm:$0xf]
        %v4589 = vld [vmem:[#allocation9 + $0xadc] sm:$0xff]
        %v4590 = vld [vmem:[#allocation9 + $0xae4] sm:$0xff]
        %v4591 = vld [vmem:[#allocation9 + $0xaec] sm:$0xf]
        %v4592 = vld [vmem:[#allocation9 + $0xaf0] sm:$0xff]
        %v4593 = vld [vmem:[#allocation9 + $0xaf8] sm:$0xff]
        %v4594 = vld [vmem:[#allocation9 + $0xb00] sm:$0xf]
        %v4595 = vld [vmem:[#allocation9 + $0xb04] sm:$0xff]
        %v4596 = vld [vmem:[#allocation9 + $0xb0c] sm:$0xff]
        %v4597 = vld [vmem:[#allocation9 + $0xb14] sm:$0xf]
        %v4598 = vld [vmem:[#allocation9 + $0xb18] sm:$0xff]
        %v4599 = vld [vmem:[#allocation9 + $0xb20] sm:$0xff]
        %v4600 = vld [vmem:[#allocation9 + $0xb28] sm:$0xf]
        %v4601 = vld [vmem:[#allocation9 + $0xb2c] sm:$0xff]
        %v4602 = vld [vmem:[#allocation9 + $0xb34] sm:$0xff]
        %v4603 = vld [vmem:[#allocation9 + $0xb3c] sm:$0xf]
        %s4604 = scalar_lea.vmem [#allocation12], 2
        %v4605 = vld [vmem:[%s4604] ss:$4 sm:$0x1f]
        %v4606 = vpack.c.bf16 %v569, %v569
        %v4655 = vunpack.c.l.b16 %v4556
        %v4656 = vunpack.c.h.b16 %v4556
        %v4657 = vunpack.c.l.b16 %v4557
        %v4658 = vunpack.c.h.b16 %v4557
        %v4659 = vunpack.c.l.b16 %v4558
        %v4660 = vunpack.c.l.b16 %v4559
        %v4661 = vunpack.c.h.b16 %v4559
        %v4662 = vunpack.c.l.b16 %v4560
        %v4663 = vunpack.c.h.b16 %v4560
        %v4664 = vunpack.c.l.b16 %v4561
        %v4665 = vunpack.c.l.b16 %v4562
        %v4666 = vunpack.c.h.b16 %v4562
        %v4667 = vunpack.c.l.b16 %v4563
        %v4668 = vunpack.c.h.b16 %v4563
        %v4669 = vunpack.c.l.b16 %v4564
        %v4670 = vunpack.c.l.b16 %v4565
        %v4671 = vunpack.c.h.b16 %v4565
        %v4672 = vunpack.c.l.b16 %v4566
        %v4673 = vunpack.c.h.b16 %v4566
        %v4674 = vunpack.c.l.b16 %v4567
        %v4675 = vunpack.c.l.b16 %v4568
        %v4676 = vunpack.c.h.b16 %v4568
        %v4677 = vunpack.c.l.b16 %v4569
        %v4678 = vunpack.c.h.b16 %v4569
        %v4679 = vunpack.c.l.b16 %v4570
        %v4680 = vunpack.c.l.b16 %v4571
        %v4681 = vunpack.c.h.b16 %v4571
        %v4682 = vunpack.c.l.b16 %v4572
        %v4683 = vunpack.c.h.b16 %v4572
        %v4684 = vunpack.c.l.b16 %v4573
        %v4685 = vunpack.c.l.b16 %v4574
        %v4686 = vunpack.c.h.b16 %v4574
        %v4687 = vunpack.c.l.b16 %v4575
        %v4688 = vunpack.c.h.b16 %v4575
        %v4689 = vunpack.c.l.b16 %v4576
        %v4690 = vunpack.c.l.b16 %v4577
        %v4691 = vunpack.c.h.b16 %v4577
        %v4692 = vunpack.c.l.b16 %v4578
        %v4693 = vunpack.c.h.b16 %v4578
        %v4694 = vunpack.c.l.b16 %v4579
        %v4695 = vunpack.c.l.b16 %v4580
        %v4696 = vunpack.c.h.b16 %v4580
        %v4697 = vunpack.c.l.b16 %v4581
        %v4698 = vunpack.c.h.b16 %v4581
        %v4699 = vunpack.c.l.b16 %v4582
        %v4700 = vunpack.c.l.b16 %v4583
        %v4701 = vunpack.c.h.b16 %v4583
        %v4702 = vunpack.c.l.b16 %v4584
        %v4703 = vunpack.c.h.b16 %v4584
        %v4704 = vunpack.c.l.b16 %v4585
        %v4705 = vunpack.c.l.b16 %v4586
        %v4706 = vunpack.c.h.b16 %v4586
        %v4707 = vunpack.c.l.b16 %v4587
        %v4708 = vunpack.c.h.b16 %v4587
        %v4709 = vunpack.c.l.b16 %v4588
        %v4710 = vunpack.c.l.b16 %v4589
        %v4711 = vunpack.c.h.b16 %v4589
        %v4712 = vunpack.c.l.b16 %v4590
        %v4713 = vunpack.c.h.b16 %v4590
        %v4714 = vunpack.c.l.b16 %v4591
        %v4715 = vunpack.c.l.b16 %v4592
        %v4716 = vunpack.c.h.b16 %v4592
        %v4717 = vunpack.c.l.b16 %v4593
        %v4718 = vunpack.c.h.b16 %v4593
        %v4719 = vunpack.c.l.b16 %v4594
        %v4720 = vunpack.c.l.b16 %v4595
        %v4721 = vunpack.c.h.b16 %v4595
        %v4722 = vunpack.c.l.b16 %v4596
        %v4723 = vunpack.c.h.b16 %v4596
        %v4724 = vunpack.c.l.b16 %v4597
        %v4725 = vunpack.c.l.b16 %v4598
        %v4726 = vunpack.c.h.b16 %v4598
        %v4727 = vunpack.c.l.b16 %v4599
        %v4728 = vunpack.c.h.b16 %v4599
        %v4729 = vunpack.c.l.b16 %v4600
        %v4730 = vunpack.c.l.b16 %v4601
        %v4731 = vunpack.c.h.b16 %v4601
        %v4732 = vunpack.c.l.b16 %v4602
        %v4733 = vunpack.c.h.b16 %v4602
        %v4734 = vunpack.c.l.b16 %v4603
        %v4735 = vpack.c.b16 %v4660, %v4655
        %v4736 = vpack.c.b16 %v4661, %v4656
        %v4737 = vpack.c.b16 %v4662, %v4657
        %v4738 = vpack.c.b16 %v4663, %v4658
        %v4739 = vpack.c.b16 %v4664, %v4659
        %v4740 = vpack.c.b16 %v4670, %v4665
        %v4741 = vpack.c.b16 %v4671, %v4666
        %v4742 = vpack.c.b16 %v4672, %v4667
        %v4743 = vpack.c.b16 %v4673, %v4668
        %v4744 = vpack.c.b16 %v4674, %v4669
        %v4745 = vpack.c.b16 %v4680, %v4675
        %v4746 = vpack.c.b16 %v4681, %v4676
        %v4747 = vpack.c.b16 %v4682, %v4677
        %v4748 = vpack.c.b16 %v4683, %v4678
        %v4749 = vpack.c.b16 %v4684, %v4679
        %v4750 = vpack.c.b16 %v4690, %v4685
        %v4751 = vpack.c.b16 %v4691, %v4686
        %v4752 = vpack.c.b16 %v4692, %v4687
        %v4753 = vpack.c.b16 %v4693, %v4688
        %v4754 = vpack.c.b16 %v4694, %v4689
        %v4755 = vpack.c.b16 %v4700, %v4695
        %v4756 = vpack.c.b16 %v4701, %v4696
        %v4757 = vpack.c.b16 %v4702, %v4697
        %v4758 = vpack.c.b16 %v4703, %v4698
        %v4759 = vpack.c.b16 %v4704, %v4699
        %v4760 = vpack.c.b16 %v4710, %v4705
        %v4761 = vpack.c.b16 %v4711, %v4706
        %v4762 = vpack.c.b16 %v4712, %v4707
        %v4763 = vpack.c.b16 %v4713, %v4708
        %v4764 = vpack.c.b16 %v4714, %v4709
        %v4765 = vpack.c.b16 %v4720, %v4715
        %v4766 = vpack.c.b16 %v4721, %v4716
        %v4767 = vpack.c.b16 %v4722, %v4717
        %v4768 = vpack.c.b16 %v4723, %v4718
        %v4769 = vpack.c.b16 %v4724, %v4719
        %v4770 = vpack.c.b16 %v4730, %v4725
        %v4771 = vpack.c.b16 %v4731, %v4726
        %v4772 = vpack.c.b16 %v4732, %v4727
        %v4773 = vpack.c.b16 %v4733, %v4728
        %v4774 = vpack.c.b16 %v4734, %v4729
        %4815 = vmatpush.bf16.msra.mxu0 %v4770
        %4816 = vmatpush.bf16.msra.mxu0 %v4765
        %4817 = vmatpush.bf16.msra.mxu0 %v4760
        %4818 = vmatpush.bf16.msra.mxu0 %v4755
        %4819 = vmatpush.bf16.msra.mxu0 %v4750
        %4820 = vmatpush.bf16.msra.mxu0 %v4745
        %4821 = vmatpush.bf16.msra.mxu0 %v4740
        %4822 = vmatpush.bf16.msra.mxu0 %v4735
        %4823 = vmatmul.bf16.gmra.mxu0 %v4606
        %v4824 = vpop.f32.mrf.mxu0
        %v4825 = vadd.f32 0.0, %v4824
        %v4826 = vpop.f32.mrf.mxu0
        %4827 = vdwg.mxu0
        %4828 = vmatpush.bf16.msra.mxu0 %v4771
        %4829 = vmatpush.bf16.msra.mxu0 %v4766
        %4830 = vmatpush.bf16.msra.mxu0 %v4761
        %4831 = vmatpush.bf16.msra.mxu0 %v4756
        %4832 = vmatpush.bf16.msra.mxu0 %v4751
        %4833 = vmatpush.bf16.msra.mxu0 %v4746
        %4834 = vmatpush.bf16.msra.mxu0 %v4741
        %4835 = vmatpush.bf16.msra.mxu0 %v4736
        %4836 = vmatmul.bf16.gmra.mxu0 %v4606
        %v4837 = vpop.f32.mrf.mxu0
        %v4838 = vadd.f32 0.0, %v4837
        %v4839 = vpop.f32.mrf.mxu0
        %4840 = vdwg.mxu0
        %4841 = vmatpush.bf16.msra.mxu0 %v4772
        %4842 = vmatpush.bf16.msra.mxu0 %v4767
        %4843 = vmatpush.bf16.msra.mxu0 %v4762
        %4844 = vmatpush.bf16.msra.mxu0 %v4757
        %4845 = vmatpush.bf16.msra.mxu0 %v4752
        %4846 = vmatpush.bf16.msra.mxu0 %v4747
        %4847 = vmatpush.bf16.msra.mxu0 %v4742
        %4848 = vmatpush.bf16.msra.mxu0 %v4737
        %4849 = vmatmul.bf16.gmra.mxu0 %v4606
        %v4850 = vpop.f32.mrf.mxu0
        %v4851 = vadd.f32 0.0, %v4850
        %v4852 = vpop.f32.mrf.mxu0
        %4853 = vdwg.mxu0
        %4854 = vmatpush.bf16.msra.mxu0 %v4773
        %4855 = vmatpush.bf16.msra.mxu0 %v4768
        %4856 = vmatpush.bf16.msra.mxu0 %v4763
        %4857 = vmatpush.bf16.msra.mxu0 %v4758
        %4858 = vmatpush.bf16.msra.mxu0 %v4753
        %4859 = vmatpush.bf16.msra.mxu0 %v4748
        %4860 = vmatpush.bf16.msra.mxu0 %v4743
        %4861 = vmatpush.bf16.msra.mxu0 %v4738
        %4862 = vmatmul.bf16.gmra.mxu0 %v4606
        %v4863 = vpop.f32.mrf.mxu0
        %v4864 = vadd.f32 0.0, %v4863
        %v4865 = vpop.f32.mrf.mxu0
        %4866 = vdwg.mxu0
        %4867 = vmatpush.bf16.msra.mxu0 %v4774
        %4868 = vmatpush.bf16.msra.mxu0 %v4769
        %4869 = vmatpush.bf16.msra.mxu0 %v4764
        %4870 = vmatpush.bf16.msra.mxu0 %v4759
        %4871 = vmatpush.bf16.msra.mxu0 %v4754
        %4872 = vmatpush.bf16.msra.mxu0 %v4749
        %4873 = vmatpush.bf16.msra.mxu0 %v4744
        %4874 = vmatpush.bf16.msra.mxu0 %v4739
        %4875 = vmatmul.bf16.gmra.mxu0 %v4606
        %v4876 = vpop.f32.mrf.mxu0
        %v4877 = vadd.f32 0.0, %v4876
        %v4878 = vpop.f32.mrf.mxu0
        %4879 = vdwg.mxu0
        %v4881 = vperm.slane %v4605, 0
        %v4882 = vperm.slane %v4605, 1
        %v4883 = vperm.slane %v4605, 2
        %v4884 = vperm.slane %v4605, 3
        %v4885 = vperm.slane %v4605, 4
        %v4891 = vadd.f32 %v4881, %v4825
        %v4892 = vadd.f32 %v4882, %v4838
        %v4893 = vadd.f32 %v4883, %v4851
        %v4894 = vadd.f32 %v4884, %v4864
        %v4895 = vadd.f32 %v4885, %v4877
        %v4896 = vpack.c.bf16 %v3560, %v3560
        %v4945 = vunpack.c.l.b16 %v4460
        %v4946 = vunpack.c.h.b16 %v4460
        %v4947 = vunpack.c.l.b16 %v4461
        %v4948 = vunpack.c.h.b16 %v4461
        %v4949 = vunpack.c.l.b16 %v4462
        %v4950 = vunpack.c.l.b16 %v4463
        %v4951 = vunpack.c.h.b16 %v4463
        %v4952 = vunpack.c.l.b16 %v4464
        %v4953 = vunpack.c.h.b16 %v4464
        %v4954 = vunpack.c.l.b16 %v4465
        %v4955 = vunpack.c.l.b16 %v4466
        %v4956 = vunpack.c.h.b16 %v4466
        %v4957 = vunpack.c.l.b16 %v4467
        %v4958 = vunpack.c.h.b16 %v4467
        %v4959 = vunpack.c.l.b16 %v4468
        %v4960 = vunpack.c.l.b16 %v4469
        %v4961 = vunpack.c.h.b16 %v4469
        %v4962 = vunpack.c.l.b16 %v4470
        %v4963 = vunpack.c.h.b16 %v4470
        %v4964 = vunpack.c.l.b16 %v4471
        %v4965 = vunpack.c.l.b16 %v4472
        %v4966 = vunpack.c.h.b16 %v4472
        %v4967 = vunpack.c.l.b16 %v4473
        %v4968 = vunpack.c.h.b16 %v4473
        %v4969 = vunpack.c.l.b16 %v4474
        %v4970 = vunpack.c.l.b16 %v4475
        %v4971 = vunpack.c.h.b16 %v4475
        %v4972 = vunpack.c.l.b16 %v4476
        %v4973 = vunpack.c.h.b16 %v4476
        %v4974 = vunpack.c.l.b16 %v4477
        %v4975 = vunpack.c.l.b16 %v4478
        %v4976 = vunpack.c.h.b16 %v4478
        %v4977 = vunpack.c.l.b16 %v4479
        %v4978 = vunpack.c.h.b16 %v4479
        %v4979 = vunpack.c.l.b16 %v4480
        %v4980 = vunpack.c.l.b16 %v4481
        %v4981 = vunpack.c.h.b16 %v4481
        %v4982 = vunpack.c.l.b16 %v4482
        %v4983 = vunpack.c.h.b16 %v4482
        %v4984 = vunpack.c.l.b16 %v4483
        %v4985 = vunpack.c.l.b16 %v4484
        %v4986 = vunpack.c.h.b16 %v4484
        %v4987 = vunpack.c.l.b16 %v4485
        %v4988 = vunpack.c.h.b16 %v4485
        %v4989 = vunpack.c.l.b16 %v4486
        %v4990 = vunpack.c.l.b16 %v4487
        %v4991 = vunpack.c.h.b16 %v4487
        %v4992 = vunpack.c.l.b16 %v4488
        %v4993 = vunpack.c.h.b16 %v4488
        %v4994 = vunpack.c.l.b16 %v4489
        %v4995 = vunpack.c.l.b16 %v4490
        %v4996 = vunpack.c.h.b16 %v4490
        %v4997 = vunpack.c.l.b16 %v4491
        %v4998 = vunpack.c.h.b16 %v4491
        %v4999 = vunpack.c.l.b16 %v4492
        %v5000 = vunpack.c.l.b16 %v4493
        %v5001 = vunpack.c.h.b16 %v4493
        %v5002 = vunpack.c.l.b16 %v4494
        %v5003 = vunpack.c.h.b16 %v4494
        %v5004 = vunpack.c.l.b16 %v4495
        %v5005 = vunpack.c.l.b16 %v4496
        %v5006 = vunpack.c.h.b16 %v4496
        %v5007 = vunpack.c.l.b16 %v4497
        %v5008 = vunpack.c.h.b16 %v4497
        %v5009 = vunpack.c.l.b16 %v4498
        %v5010 = vunpack.c.l.b16 %v4499
        %v5011 = vunpack.c.h.b16 %v4499
        %v5012 = vunpack.c.l.b16 %v4500
        %v5013 = vunpack.c.h.b16 %v4500
        %v5014 = vunpack.c.l.b16 %v4501
        %v5015 = vunpack.c.l.b16 %v4502
        %v5016 = vunpack.c.h.b16 %v4502
        %v5017 = vunpack.c.l.b16 %v4503
        %v5018 = vunpack.c.h.b16 %v4503
        %v5019 = vunpack.c.l.b16 %v4504
        %v5020 = vunpack.c.l.b16 %v4505
        %v5021 = vunpack.c.h.b16 %v4505
        %v5022 = vunpack.c.l.b16 %v4506
        %v5023 = vunpack.c.h.b16 %v4506
        %v5024 = vunpack.c.l.b16 %v4507
        %v5025 = vpack.c.b16 %v4950, %v4945
        %v5026 = vpack.c.b16 %v4951, %v4946
        %v5027 = vpack.c.b16 %v4952, %v4947
        %v5028 = vpack.c.b16 %v4953, %v4948
        %v5029 = vpack.c.b16 %v4954, %v4949
        %v5030 = vpack.c.b16 %v4960, %v4955
        %v5031 = vpack.c.b16 %v4961, %v4956
        %v5032 = vpack.c.b16 %v4962, %v4957
        %v5033 = vpack.c.b16 %v4963, %v4958
        %v5034 = vpack.c.b16 %v4964, %v4959
        %v5035 = vpack.c.b16 %v4970, %v4965
        %v5036 = vpack.c.b16 %v4971, %v4966
        %v5037 = vpack.c.b16 %v4972, %v4967
        %v5038 = vpack.c.b16 %v4973, %v4968
        %v5039 = vpack.c.b16 %v4974, %v4969
        %v5040 = vpack.c.b16 %v4980, %v4975
        %v5041 = vpack.c.b16 %v4981, %v4976
        %v5042 = vpack.c.b16 %v4982, %v4977
        %v5043 = vpack.c.b16 %v4983, %v4978
        %v5044 = vpack.c.b16 %v4984, %v4979
        %v5045 = vpack.c.b16 %v4990, %v4985
        %v5046 = vpack.c.b16 %v4991, %v4986
        %v5047 = vpack.c.b16 %v4992, %v4987
        %v5048 = vpack.c.b16 %v4993, %v4988
        %v5049 = vpack.c.b16 %v4994, %v4989
        %v5050 = vpack.c.b16 %v5000, %v4995
        %v5051 = vpack.c.b16 %v5001, %v4996
        %v5052 = vpack.c.b16 %v5002, %v4997
        %v5053 = vpack.c.b16 %v5003, %v4998
        %v5054 = vpack.c.b16 %v5004, %v4999
        %v5055 = vpack.c.b16 %v5010, %v5005
        %v5056 = vpack.c.b16 %v5011, %v5006
        %v5057 = vpack.c.b16 %v5012, %v5007
        %v5058 = vpack.c.b16 %v5013, %v5008
        %v5059 = vpack.c.b16 %v5014, %v5009
        %v5060 = vpack.c.b16 %v5020, %v5015
        %v5061 = vpack.c.b16 %v5021, %v5016
        %v5062 = vpack.c.b16 %v5022, %v5017
        %v5063 = vpack.c.b16 %v5023, %v5018
        %v5064 = vpack.c.b16 %v5024, %v5019
        %5105 = vmatpush.bf16.msra.mxu0 %v5060
        %5106 = vmatpush.bf16.msra.mxu0 %v5055
        %5107 = vmatpush.bf16.msra.mxu0 %v5050
        %5108 = vmatpush.bf16.msra.mxu0 %v5045
        %5109 = vmatpush.bf16.msra.mxu0 %v5040
        %5110 = vmatpush.bf16.msra.mxu0 %v5035
        %5111 = vmatpush.bf16.msra.mxu0 %v5030
        %5112 = vmatpush.bf16.msra.mxu0 %v5025
        %5113 = vmatmul.bf16.gmra.mxu0 %v4896
        %v5114 = vpop.f32.mrf.mxu0
        %v5115 = vadd.f32 0.0, %v5114
        %v5116 = vpop.f32.mrf.mxu0
        %5117 = vdwg.mxu0
        %5118 = vmatpush.bf16.msra.mxu0 %v5061
        %5119 = vmatpush.bf16.msra.mxu0 %v5056
        %5120 = vmatpush.bf16.msra.mxu0 %v5051
        %5121 = vmatpush.bf16.msra.mxu0 %v5046
        %5122 = vmatpush.bf16.msra.mxu0 %v5041
        %5123 = vmatpush.bf16.msra.mxu0 %v5036
        %5124 = vmatpush.bf16.msra.mxu0 %v5031
        %5125 = vmatpush.bf16.msra.mxu0 %v5026
        %5126 = vmatmul.bf16.gmra.mxu0 %v4896
        %v5127 = vpop.f32.mrf.mxu0
        %v5128 = vadd.f32 0.0, %v5127
        %v5129 = vpop.f32.mrf.mxu0
        %5130 = vdwg.mxu0
        %5131 = vmatpush.bf16.msra.mxu0 %v5062
        %5132 = vmatpush.bf16.msra.mxu0 %v5057
        %5133 = vmatpush.bf16.msra.mxu0 %v5052
        %5134 = vmatpush.bf16.msra.mxu0 %v5047
        %5135 = vmatpush.bf16.msra.mxu0 %v5042
        %5136 = vmatpush.bf16.msra.mxu0 %v5037
        %5137 = vmatpush.bf16.msra.mxu0 %v5032
        %5138 = vmatpush.bf16.msra.mxu0 %v5027
        %5139 = vmatmul.bf16.gmra.mxu0 %v4896
        %v5140 = vpop.f32.mrf.mxu0
        %v5141 = vadd.f32 0.0, %v5140
        %v5142 = vpop.f32.mrf.mxu0
        %5143 = vdwg.mxu0
        %5144 = vmatpush.bf16.msra.mxu0 %v5063
        %5145 = vmatpush.bf16.msra.mxu0 %v5058
        %5146 = vmatpush.bf16.msra.mxu0 %v5053
        %5147 = vmatpush.bf16.msra.mxu0 %v5048
        %5148 = vmatpush.bf16.msra.mxu0 %v5043
        %5149 = vmatpush.bf16.msra.mxu0 %v5038
        %5150 = vmatpush.bf16.msra.mxu0 %v5033
        %5151 = vmatpush.bf16.msra.mxu0 %v5028
        %5152 = vmatmul.bf16.gmra.mxu0 %v4896
        %v5153 = vpop.f32.mrf.mxu0
        %v5154 = vadd.f32 0.0, %v5153
        %v5155 = vpop.f32.mrf.mxu0
        %5156 = vdwg.mxu0
        %5157 = vmatpush.bf16.msra.mxu0 %v5064
        %5158 = vmatpush.bf16.msra.mxu0 %v5059
        %5159 = vmatpush.bf16.msra.mxu0 %v5054
        %5160 = vmatpush.bf16.msra.mxu0 %v5049
        %5161 = vmatpush.bf16.msra.mxu0 %v5044
        %5162 = vmatpush.bf16.msra.mxu0 %v5039
        %5163 = vmatpush.bf16.msra.mxu0 %v5034
        %5164 = vmatpush.bf16.msra.mxu0 %v5029
        %5165 = vmatmul.bf16.gmra.mxu0 %v4896
        %v5166 = vpop.f32.mrf.mxu0
        %v5167 = vadd.f32 0.0, %v5166
        %v5168 = vpop.f32.mrf.mxu0
        %5169 = vdwg.mxu0
        %v5170 = vadd.f32 %v4891, %v5115
        %v5171 = vadd.f32 %v4892, %v5128
        %v5172 = vadd.f32 %v4893, %v5141
        %v5173 = vadd.f32 %v4894, %v5154
        %v5174 = vadd.f32 %v4895, %v5167
        %v5175 = vpack.c.bf16 %v4410, %v4410
        %v5176 = vpack.c.bf16 %v4417, %v4417
        %v5177 = vpack.c.bf16 %v4424, %v4424
        %v5178 = vpack.c.bf16 %v4431, %v4431
        %v5179 = vpack.c.bf16 %v4438, %v4438
        %v5180 = vpack.c.bf16 %v4445, %v4445
        %v5181 = vpack.c.bf16 %v4452, %v4452
        %v5182 = vpack.c.bf16 %v4459, %v4459
        %v5191 = vunpack.c.l.b16 %v5175
        %v5192 = vunpack.c.l.b16 %v5176
        %v5193 = vunpack.c.l.b16 %v5177
        %v5194 = vunpack.c.l.b16 %v5178
        %v5195 = vunpack.c.l.b16 %v5179
        %v5196 = vunpack.c.l.b16 %v5180
        %v5197 = vunpack.c.l.b16 %v5181
        %v5198 = vunpack.c.l.b16 %v5182
        %v5199 = vsel %vm1857, %v5192, %v5191
        %v5200 = vsel %vm1859, %v5193, %v5199
        %v5201 = vsel %vm1861, %v5194, %v5200
        %v5202 = vsel %vm1863, %v5195, %v5201
        %v5203 = vsel %vm1865, %v5196, %v5202
        %v5204 = vsel %vm1867, %v5197, %v5203
        %v5205 = vsel %vm1869, %v5198, %v5204
        %v5206 = vpack.c.b16 %v5205, %v5205
        %v5256 = vunpack.c.l.b16 %v4508
        %v5257 = vunpack.c.h.b16 %v4508
        %v5258 = vunpack.c.l.b16 %v4509
        %v5259 = vunpack.c.h.b16 %v4509
        %v5260 = vunpack.c.l.b16 %v4510
        %v5261 = vunpack.c.l.b16 %v4511
        %v5262 = vunpack.c.h.b16 %v4511
        %v5263 = vunpack.c.l.b16 %v4512
        %v5264 = vunpack.c.h.b16 %v4512
        %v5265 = vunpack.c.l.b16 %v4513
        %v5266 = vunpack.c.l.b16 %v4514
        %v5267 = vunpack.c.h.b16 %v4514
        %v5268 = vunpack.c.l.b16 %v4515
        %v5269 = vunpack.c.h.b16 %v4515
        %v5270 = vunpack.c.l.b16 %v4516
        %v5271 = vunpack.c.l.b16 %v4517
        %v5272 = vunpack.c.h.b16 %v4517
        %v5273 = vunpack.c.l.b16 %v4518
        %v5274 = vunpack.c.h.b16 %v4518
        %v5275 = vunpack.c.l.b16 %v4519
        %v5276 = vunpack.c.l.b16 %v4520
        %v5277 = vunpack.c.h.b16 %v4520
        %v5278 = vunpack.c.l.b16 %v4521
        %v5279 = vunpack.c.h.b16 %v4521
        %v5280 = vunpack.c.l.b16 %v4522
        %v5281 = vunpack.c.l.b16 %v4523
        %v5282 = vunpack.c.h.b16 %v4523
        %v5283 = vunpack.c.l.b16 %v4524
        %v5284 = vunpack.c.h.b16 %v4524
        %v5285 = vunpack.c.l.b16 %v4525
        %v5286 = vunpack.c.l.b16 %v4526
        %v5287 = vunpack.c.h.b16 %v4526
        %v5288 = vunpack.c.l.b16 %v4527
        %v5289 = vunpack.c.h.b16 %v4527
        %v5290 = vunpack.c.l.b16 %v4528
        %v5291 = vunpack.c.l.b16 %v4529
        %v5292 = vunpack.c.h.b16 %v4529
        %v5293 = vunpack.c.l.b16 %v4530
        %v5294 = vunpack.c.h.b16 %v4530
        %v5295 = vunpack.c.l.b16 %v4531
        %v5296 = vunpack.c.l.b16 %v4532
        %v5297 = vunpack.c.h.b16 %v4532
        %v5298 = vunpack.c.l.b16 %v4533
        %v5299 = vunpack.c.h.b16 %v4533
        %v5300 = vunpack.c.l.b16 %v4534
        %v5301 = vunpack.c.l.b16 %v4535
        %v5302 = vunpack.c.h.b16 %v4535
        %v5303 = vunpack.c.l.b16 %v4536
        %v5304 = vunpack.c.h.b16 %v4536
        %v5305 = vunpack.c.l.b16 %v4537
        %v5306 = vunpack.c.l.b16 %v4538
        %v5307 = vunpack.c.h.b16 %v4538
        %v5308 = vunpack.c.l.b16 %v4539
        %v5309 = vunpack.c.h.b16 %v4539
        %v5310 = vunpack.c.l.b16 %v4540
        %v5311 = vunpack.c.l.b16 %v4541
        %v5312 = vunpack.c.h.b16 %v4541
        %v5313 = vunpack.c.l.b16 %v4542
        %v5314 = vunpack.c.h.b16 %v4542
        %v5315 = vunpack.c.l.b16 %v4543
        %v5316 = vunpack.c.l.b16 %v4544
        %v5317 = vunpack.c.h.b16 %v4544
        %v5318 = vunpack.c.l.b16 %v4545
        %v5319 = vunpack.c.h.b16 %v4545
        %v5320 = vunpack.c.l.b16 %v4546
        %v5321 = vunpack.c.l.b16 %v4547
        %v5322 = vunpack.c.h.b16 %v4547
        %v5323 = vunpack.c.l.b16 %v4548
        %v5324 = vunpack.c.h.b16 %v4548
        %v5325 = vunpack.c.l.b16 %v4549
        %v5326 = vunpack.c.l.b16 %v4550
        %v5327 = vunpack.c.h.b16 %v4550
        %v5328 = vunpack.c.l.b16 %v4551
        %v5329 = vunpack.c.h.b16 %v4551
        %v5330 = vunpack.c.l.b16 %v4552
        %v5331 = vunpack.c.l.b16 %v4553
        %v5332 = vunpack.c.h.b16 %v4553
        %v5333 = vunpack.c.l.b16 %v4554
        %v5334 = vunpack.c.h.b16 %v4554
        %v5335 = vunpack.c.l.b16 %v4555
        %v5336 = vpack.c.b16 %v5261, %v5256
        %v5337 = vpack.c.b16 %v5262, %v5257
        %v5338 = vpack.c.b16 %v5263, %v5258
        %v5339 = vpack.c.b16 %v5264, %v5259
        %v5340 = vpack.c.b16 %v5265, %v5260
        %v5341 = vpack.c.b16 %v5271, %v5266
        %v5342 = vpack.c.b16 %v5272, %v5267
        %v5343 = vpack.c.b16 %v5273, %v5268
        %v5344 = vpack.c.b16 %v5274, %v5269
        %v5345 = vpack.c.b16 %v5275, %v5270
        %v5346 = vpack.c.b16 %v5281, %v5276
        %v5347 = vpack.c.b16 %v5282, %v5277
        %v5348 = vpack.c.b16 %v5283, %v5278
        %v5349 = vpack.c.b16 %v5284, %v5279
        %v5350 = vpack.c.b16 %v5285, %v5280
        %v5351 = vpack.c.b16 %v5291, %v5286
        %v5352 = vpack.c.b16 %v5292, %v5287
        %v5353 = vpack.c.b16 %v5293, %v5288
        %v5354 = vpack.c.b16 %v5294, %v5289
        %v5355 = vpack.c.b16 %v5295, %v5290
        %v5356 = vpack.c.b16 %v5301, %v5296
        %v5357 = vpack.c.b16 %v5302, %v5297
        %v5358 = vpack.c.b16 %v5303, %v5298
        %v5359 = vpack.c.b16 %v5304, %v5299
        %v5360 = vpack.c.b16 %v5305, %v5300
        %v5361 = vpack.c.b16 %v5311, %v5306
        %v5362 = vpack.c.b16 %v5312, %v5307
        %v5363 = vpack.c.b16 %v5313, %v5308
        %v5364 = vpack.c.b16 %v5314, %v5309
        %v5365 = vpack.c.b16 %v5315, %v5310
        %v5366 = vpack.c.b16 %v5321, %v5316
        %v5367 = vpack.c.b16 %v5322, %v5317
        %v5368 = vpack.c.b16 %v5323, %v5318
        %v5369 = vpack.c.b16 %v5324, %v5319
        %v5370 = vpack.c.b16 %v5325, %v5320
        %v5371 = vpack.c.b16 %v5331, %v5326
        %v5372 = vpack.c.b16 %v5332, %v5327
        %v5373 = vpack.c.b16 %v5333, %v5328
        %v5374 = vpack.c.b16 %v5334, %v5329
        %v5375 = vpack.c.b16 %v5335, %v5330
        %5416 = vmatpush.bf16.msra.mxu0 %v5371
        %5417 = vmatpush.bf16.msra.mxu0 %v5366
        %5418 = vmatpush.bf16.msra.mxu0 %v5361
        %5419 = vmatpush.bf16.msra.mxu0 %v5356
        %5420 = vmatpush.bf16.msra.mxu0 %v5351
        %5421 = vmatpush.bf16.msra.mxu0 %v5346
        %5422 = vmatpush.bf16.msra.mxu0 %v5341
        %5423 = vmatpush.bf16.msra.mxu0 %v5336
        %5424 = vmatmul.bf16.gmra.mxu0 %v5206
        %v5425 = vpop.f32.mrf.mxu0
        %v5426 = vadd.f32 0.0, %v5425
        %v5427 = vpop.f32.mrf.mxu0
        %5428 = vdwg.mxu0
        %5429 = vmatpush.bf16.msra.mxu0 %v5372
        %5430 = vmatpush.bf16.msra.mxu0 %v5367
        %5431 = vmatpush.bf16.msra.mxu0 %v5362
        %5432 = vmatpush.bf16.msra.mxu0 %v5357
        %5433 = vmatpush.bf16.msra.mxu0 %v5352
        %5434 = vmatpush.bf16.msra.mxu0 %v5347
        %5435 = vmatpush.bf16.msra.mxu0 %v5342
        %5436 = vmatpush.bf16.msra.mxu0 %v5337
        %5437 = vmatmul.bf16.gmra.mxu0 %v5206
        %v5438 = vpop.f32.mrf.mxu0
        %v5439 = vadd.f32 0.0, %v5438
        %v5440 = vpop.f32.mrf.mxu0
        %5441 = vdwg.mxu0
        %5442 = vmatpush.bf16.msra.mxu0 %v5373
        %5443 = vmatpush.bf16.msra.mxu0 %v5368
        %5444 = vmatpush.bf16.msra.mxu0 %v5363
        %5445 = vmatpush.bf16.msra.mxu0 %v5358
        %5446 = vmatpush.bf16.msra.mxu0 %v5353
        %5447 = vmatpush.bf16.msra.mxu0 %v5348
        %5448 = vmatpush.bf16.msra.mxu0 %v5343
        %5449 = vmatpush.bf16.msra.mxu0 %v5338
        %5450 = vmatmul.bf16.gmra.mxu0 %v5206
        %v5451 = vpop.f32.mrf.mxu0
        %v5452 = vadd.f32 0.0, %v5451
        %v5453 = vpop.f32.mrf.mxu0
        %5454 = vdwg.mxu0
        %5455 = vmatpush.bf16.msra.mxu0 %v5374
        %5456 = vmatpush.bf16.msra.mxu0 %v5369
        %5457 = vmatpush.bf16.msra.mxu0 %v5364
        %5458 = vmatpush.bf16.msra.mxu0 %v5359
        %5459 = vmatpush.bf16.msra.mxu0 %v5354
        %5460 = vmatpush.bf16.msra.mxu0 %v5349
        %5461 = vmatpush.bf16.msra.mxu0 %v5344
        %5462 = vmatpush.bf16.msra.mxu0 %v5339
        %5463 = vmatmul.bf16.gmra.mxu0 %v5206
        %v5464 = vpop.f32.mrf.mxu0
        %v5465 = vadd.f32 0.0, %v5464
        %v5466 = vpop.f32.mrf.mxu0
        %5467 = vdwg.mxu0
        %5468 = vmatpush.bf16.msra.mxu0 %v5375
        %5469 = vmatpush.bf16.msra.mxu0 %v5370
        %5470 = vmatpush.bf16.msra.mxu0 %v5365
        %5471 = vmatpush.bf16.msra.mxu0 %v5360
        %5472 = vmatpush.bf16.msra.mxu0 %v5355
        %5473 = vmatpush.bf16.msra.mxu0 %v5350
        %5474 = vmatpush.bf16.msra.mxu0 %v5345
        %5475 = vmatpush.bf16.msra.mxu0 %v5340
        %5476 = vmatmul.bf16.gmra.mxu0 %v5206
        %v5477 = vpop.f32.mrf.mxu0
        %v5478 = vadd.f32 0.0, %v5477
        %v5479 = vpop.f32.mrf.mxu0
        %5480 = vdwg.mxu0
        %v5481 = vadd.f32 %v5170, %v5426
        %v5482 = vadd.f32 %v5171, %v5439
        %v5483 = vadd.f32 %v5172, %v5452
        %v5484 = vadd.f32 %v5173, %v5465
        %v5485 = vadd.f32 %v5174, %v5478
        %v5486 = vxor.u32 %v5481, 2147483648
        %v5487 = vxor.u32 %v5482, 2147483648
        %v5488 = vxor.u32 %v5483, 2147483648
        %v5489 = vmul.f32 %v5486, 1.442695
        %v5490 = vpow.pop %v5489
        %v5491 = vmul.f32 %v5487, 1.442695
        %v5492 = vpow.pop %v5491
        %v5493 = vmul.f32 %v5488, 1.442695
        %v5494 = vpow.pop %v5493
        %v5495 = vadd.f32 %v5490, 1.0
        %v5496 = vadd.f32 %v5492, 1.0
        %v5497 = vadd.f32 %v5494, 1.0
        %v5498 = vrcp.pop %v5495
        %v5499 = vmul.f32 %v5495, %v5498
        %v5500 = vsub.f32 1.0, %v5499
        %v5501 = vmul.f32 %v5498, %v5500
        %v5502 = vadd.f32 %v5498, %v5501
        %vm5503 = vweird.f32 %v5495
        %vm5504 = vweird.f32 %v5498
        %vm5505 = vmor %vm5503, %vm5504
        %v5506 = vsel %vm5505, %v5498, %v5502
        %v5507 = vand.u32 2147483647, %v5495
        %vm5508 = vcmp.eq.f32.partialorder %v5507, 8.507059e+37
        %v5509 = vand.u32 %v5495, 2147483648
        %v5510 = vor.u32 1.1754944e-38, %v5509
        %v5511 = vsel %vm5508, %v5510, %v5506
        %v5512 = vmul.f32 1.0, %v5511
        %v5513 = vrcp.pop %v5496
        %v5514 = vmul.f32 %v5496, %v5513
        %v5515 = vsub.f32 1.0, %v5514
        %v5516 = vmul.f32 %v5513, %v5515
        %v5517 = vadd.f32 %v5513, %v5516
        %vm5518 = vweird.f32 %v5496
        %vm5519 = vweird.f32 %v5513
        %vm5520 = vmor %vm5518, %vm5519
        %v5521 = vsel %vm5520, %v5513, %v5517
        %v5522 = vand.u32 2147483647, %v5496
        %vm5523 = vcmp.eq.f32.partialorder %v5522, 8.507059e+37
        %v5524 = vand.u32 %v5496, 2147483648
        %v5525 = vor.u32 1.1754944e-38, %v5524
        %v5526 = vsel %vm5523, %v5525, %v5521
        %v5527 = vmul.f32 1.0, %v5526
        %v5528 = vrcp.pop %v5497
        %v5529 = vmul.f32 %v5497, %v5528
        %v5530 = vsub.f32 1.0, %v5529
        %v5531 = vmul.f32 %v5528, %v5530
        %v5532 = vadd.f32 %v5528, %v5531
        %vm5533 = vweird.f32 %v5497
        %vm5534 = vweird.f32 %v5528
        %vm5535 = vmor %vm5533, %vm5534
        %v5536 = vsel %vm5535, %v5528, %v5532
        %v5537 = vand.u32 2147483647, %v5497
        %vm5538 = vcmp.eq.f32.partialorder %v5537, 8.507059e+37
        %v5539 = vand.u32 %v5497, 2147483648
        %v5540 = vor.u32 1.1754944e-38, %v5539
        %v5541 = vsel %vm5538, %v5540, %v5536
        %v5542 = vmul.f32 1.0, %v5541
        %v5543 = vmax.f32 %v5484, %v5485
        %v5544 = vmul.f32 %v5527, %v572
        %v5545 = vmul.f32 %v5512, %v5543
        %v5546 = vadd.f32 %v5544, %v5545
        %v5547 = vtanh.pop %v5546
        %v5548 = vmul.f32 %v5542, %v5547
        %5549 = vst [vmem:[%s492] sm:$0xff] %v5548
        %5550 = vst [vmem:[#allocation2] sm:$0xff] %v1626
        %s5551 = scalar_lea.vmem [#allocation2], 8
        %5552 = vst [vmem:[%s5551] sm:$0xff] %v3560
        %s5553 = scalar_lea.vmem [#allocation2], 16
        %5554 = vst [vmem:[%s5553] sm:$0xff] %v5548
        %5555 = vst [vmem:[#allocation3] sm:$0xff] %v1624
        %s5556 = scalar_lea.vmem [#allocation3], 8
        %5557 = vst [vmem:[%s5556] sm:$0xff] %v3558
        %s5558 = scalar_lea.vmem [#allocation3], 16
        %5559 = vst [vmem:[%s5558] sm:$0xff] %v5546
        %p5560 = scmp.eq.s32.totalorder %s32, 3
        // Predicated region
        $region89: #{stack_att_core_steps.1} parent=59 // pred_check
          %p5561 = pneg %p5560
        $region90: #{stack_att_core_steps.1} parent=59 // pred_check_branch
          %5563 = sbr.rel (%p5561) target = $region92
        $region91: #{stack_att_core_steps.1} parent=59 // pred_region
          %v5564 = vld [vmem:[#allocation2] sm:$0xff]
          %v5565 = vld [vmem:[#allocation2 + $0x8] sm:$0xff]
          %v5566 = vld [vmem:[#allocation2 + $0x10] sm:$0xff]
          %5567 = vst [vmem:[#allocation16] sm:$0xff] %v5564
          %5568 = vst [vmem:[#allocation16 + $0x8] sm:$0xff] %v5565
          %5569 = vst [vmem:[#allocation16 + $0x10] sm:$0xff] %v5566
          %v5570 = vld [vmem:[#allocation3] sm:$0xff]
          %v5571 = vld [vmem:[#allocation3 + $0x8] sm:$0xff]
          %v5572 = vld [vmem:[#allocation3 + $0x10] sm:$0xff]
          %5573 = vst [vmem:[#allocation18] sm:$0xff] %v5570
          %5574 = vst [vmem:[#allocation18 + $0x8] sm:$0xff] %v5571
          %5575 = vst [vmem:[#allocation18 + $0x10] sm:$0xff] %v5572
        $region92: #{stack_att_core_steps.1} parent=59 // pred_fallthru
          _
        %s5576 = sand.u32 %s255, 1
        %s5577 = scalar_lea.sflag [#allocation6], %s5576
        %s5578 = sand.u32 %s255, 1
        %s5579 = smul.addr %s5578, 8
        %s5580 = scalar_lea.vmem [#allocation15], %s5579
        // Predicated region
        $region93: #{stack_att_core_steps.1} parent=59 // pred_check
          %p5581 = pneg %p265
        $region94: #{stack_att_core_steps.1} parent=59 // pred_check_branch
          %5583 = sbr.rel (%p5581) target = $region96
        $region95: #{stack_att_core_steps.1} parent=59 // pred_region
          %5585 = vsyncadd %s5577, 0
          %s5586 = smul.addr %s32, 8
          %s5587 = scalar_lea.hbm %s10, %s5586
          %s5589 = sshll.u32 %s5580, 4
          %s5590 = int_to_ptr.vmem [resolvable:$true] %s5589
          %s5591 = sshll.u32 %s5587, 4
          %s5592 = int_to_ptr.hbm [resolvable:$true] %s5591
          %5594 = dma.vmem_to_hbm [thread:$0]  %s5590, 128, %s5592, %s5577
        $region96: #{stack_att_core_steps.1} parent=59 // pred_fallthru
          _
        // Predicated region
        $region97: #{stack_att_core_steps.1} parent=59 // pred_check
          %p5595 = pneg %p286
        $region98: #{stack_att_core_steps.1} parent=59 // pred_check_branch
          %5597 = sbr.rel (%p5595) target = $region100
        $region99: #{stack_att_core_steps.1} parent=59 // pred_region
          %5599 = vsyncadd [#allocation17], 0
          %s5600 = sshll.u32 [#allocation16], 4
          %s5601 = int_to_ptr.vmem [resolvable:$true] %s5600
          %s5602 = sshll.u32 %s11, 4
          %s5603 = int_to_ptr.hbm [resolvable:$true] %s5602
          %5608 = dma.vmem_to_hbm [thread:$0]  %s5601, 384, %s5603, [#allocation17], 128, 128, 8
        $region100: #{stack_att_core_steps.1} parent=59 // pred_fallthru
          _
        // Predicated region
        $region101: #{stack_att_core_steps.1} parent=59 // pred_check
          %p5609 = pneg %p307
        $region102: #{stack_att_core_steps.1} parent=59 // pred_check_branch
          %5611 = sbr.rel (%p5609) target = $region104
        $region103: #{stack_att_core_steps.1} parent=59 // pred_region
          %5613 = vsyncadd [#allocation17], 0
          %s5614 = sshll.u32 [#allocation18], 4
          %s5615 = int_to_ptr.vmem [resolvable:$true] %s5614
          %s5616 = sshll.u32 %s12, 4
          %s5617 = int_to_ptr.hbm [resolvable:$true] %s5616
          %5622 = dma.vmem_to_hbm [thread:$0]  %s5615, 384, %s5617, [#allocation17], 128, 128, 8
        $region104: #{stack_att_core_steps.1} parent=59 // pred_fallthru
          _
        // Predicated region
        $region105: #{stack_att_core_steps.1} parent=59 // pred_check
          %p5623 = pneg %p286
        $region106: #{stack_att_core_steps.1} parent=59 // pred_check_branch
          %5625 = sbr.rel (%p5623) target = $region108
        $region107: #{stack_att_core_steps.1} parent=59 // pred_region
          %5627 = dma.done [#allocation17], 384
        $region108: #{stack_att_core_steps.1} parent=59 // pred_fallthru
          _
        // Predicated region
        $region109: #{stack_att_core_steps.1} parent=59 // pred_check
          %p5628 = pneg %p307
        $region110: #{stack_att_core_steps.1} parent=59 // pred_check_branch
          %5630 = sbr.rel (%p5628) target = $region112
        $region111: #{stack_att_core_steps.1} parent=59 // pred_region
          %5632 = dma.done [#allocation17], 384
        $region112: #{stack_att_core_steps.1} parent=59 // pred_fallthru
          _
      $region60: #{stack_att_core_steps.1} parent=5 // pred_fallthru
        _
      %p5633 = scmp.le.s32.totalorder 2, %s27
      // Predicated region
      $region113: #{stack_att_core_steps.1} parent=5 // pred_check
        %p5634 = pneg %p5633
      $region114: #{stack_att_core_steps.1} parent=5 // pred_check_branch
        %5636 = sbr.rel (%p5634) target = $region116
      $region115: #{stack_att_core_steps.1} parent=5 // pred_region
        %s5637 = ssub.s32 %s27, 2
        // Predicated region
        $region117: #{stack_att_core_steps.1} parent=115 // pred_check
          %p5638 = pneg %p271
        $region118: #{stack_att_core_steps.1} parent=115 // pred_check_branch
          %5640 = sbr.rel (%p5638) target = $region120
        $region119: #{stack_att_core_steps.1} parent=115 // pred_region
          %s5641 = sand.u32 %s256, 1
          %s5642 = scalar_lea.sflag [#allocation6], %s5641
          %s5643 = sand.u32 %s256, 1
          %s5644 = smul.addr %s5643, 8
          %s5645 = scalar_lea.vmem [#allocation15], %s5644
          %5647 = dma.done %s5642, 128
        $region120: #{stack_att_core_steps.1} parent=115 // pred_fallthru
          _
      $region116: #{stack_att_core_steps.1} parent=5 // pred_fallthru
        _
    $region6: #{stack_att_core_steps.1} parent=1 // loop_footer
      %s31 = sadd.s32 1, %s27
    $region7: #{stack_att_core_steps.1} parent=1 // loop_footer_branch
      %26 = sbr.rel target = $region3
    $region8: #{stack_att_core_steps.1} parent=1 // loop_exit
      _
    %5648 = vsyncpa [#allocation5], 1
    %s5649 = scalar_lea.sflag [#allocation5], 1
    %5650 = vsyncpa %s5649, 1
    %5651 = vsyncpa [#allocation8], 1
    %5652 = vsyncpa [#allocation11], 1
    %5653 = vsyncpa [#allocation14], 1
    %5654 = vsyncpa [#allocation6], 1
    %s5655 = scalar_lea.sflag [#allocation6], 1
    %5656 = vsyncpa %s5655, 1
    %5657 = vsyncpa [#allocation17], 1

</llo_original>
